<compile_context>
chip_gen: v6e
topology: v6e:2x2x1
jax: 0.10.0
libtpu: 0.0.40
codegen_flags: <defaults>
</compile_context>

<pallas_src>
import functools
import math

import jax
import jax.numpy as jnp
from jax import lax
from jax.experimental import pallas as pl
from jax.experimental.pallas import tpu as pltpu

LN_EPS = 1e-5   # nn.LayerNorm default
CHUNK = 8       # tokens per scan chunk (== f32 sublane count)


def _mamba_layer_kernel(x_ref, tok_ref, ln_g_ref, ln_b_ref, w_in_ref,
                        conv_w_ref, conv_b_ref, w_x_ref, b_dt_ref, a_flat_ref,
                        e_b_ref, e_d_ref, d_ref, w_out_t_ref,
                        out_ref,
                        dt_sc, dtu_sc, b_sc, c_sc, y_sc, g_sc,
                        *, tokens_per_batch):
    BL = x_ref.shape[0]                      # folded batches * tokens per step
    d_inner = w_in_ref.shape[1] // 2
    d_state = e_b_ref.shape[0]
    sd = a_flat_ref.shape[1]                 # d_state * d_inner (lane-dense state)
    K = conv_w_ref.shape[0]
    T = CHUNK
    nchunks = BL // T
    cpb = tokens_per_batch // T              # chunks per batch element

    x = x_ref[...]                           # (BL, C) f32
    tok = tok_ref[...]                       # (BL, 1) int32 per-batch token index

    # ---- LayerNorm over channels ----
    mu = jnp.mean(x, axis=-1, keepdims=True)
    xc = x - mu
    var = jnp.mean(xc * xc, axis=-1, keepdims=True)
    xn = xc * lax.rsqrt(var + LN_EPS) * ln_g_ref[...] + ln_b_ref[...]

    # ---- in_proj (no bias): x-branch | gate z  (bf16 MXU, f32 accum) ----
    xz = jnp.dot(xn.astype(jnp.bfloat16), w_in_ref[...],
                 preferred_element_type=jnp.float32)          # (BL, 2*di)
    xs = xz[:, :d_inner]
    z = xz[:, d_inner:]
    g_sc[...] = z * jax.nn.sigmoid(z)        # SiLU(z) gate, stashed for the end

    # ---- causal depthwise conv1d + SiLU (per-batch causality via tok mask) --
    acc = jnp.broadcast_to(conv_b_ref[...], (BL, d_inner))
    for j in range(K):                       # out[t] = b + sum_j w[K-1-j]*in[t-j]
        shifted = xs
        if j:
            m = (tok >= j).astype(jnp.float32)               # (BL, 1)
            shifted = pltpu.roll(xs, j, axis=0) * m
        acc = acc + conv_w_ref[pl.ds(K - 1 - j, 1), :] * shifted
    u = acc * jax.nn.sigmoid(acc)                             # (BL, di)

    # ---- fused x_proj + dt_proj: one matmul, columns = [dt | B | C] ----
    proj = jnp.dot(u.astype(jnp.bfloat16), w_x_ref[...],
                   preferred_element_type=jnp.float32)        # (BL, di+2*ds)
    dt = jax.nn.softplus(proj[:, :d_inner] + b_dt_ref[...])   # (BL, di)
    dt_sc[...] = dt
    dtu_sc[...] = dt * u
    b_sc[...] = proj[:, d_inner:d_inner + d_state]
    c_sc[...] = proj[:, d_inner + d_state:]
    y_sc[...] = u * d_ref[...]               # D*u skip pre-folded into scan output

    # ---- chunked selective scan, lane-dense flattened (n, d) state ----
    t_iota = lax.broadcasted_iota(jnp.int32, (T, 1), 0)

    def chunk_body(c, h_carry):
        row0 = pl.multiple_of(c * T, T)
        dt_c = dt_sc[pl.ds(row0, T), :].astype(jnp.bfloat16)    # (T, di)
        dtu_c = dtu_sc[pl.ds(row0, T), :].astype(jnp.bfloat16)  # (T, di)
        b_c = b_sc[pl.ds(row0, T), :].astype(jnp.bfloat16)      # (T, ds)

        # Broadcast to the flat (n, d) state layout via exact 0/1 selection
        # matmuls (bf16 operands, f32 accumulation) on the otherwise-idle MXU.
        dt_f = jnp.dot(dt_c, e_d_ref[...], preferred_element_type=jnp.float32)
        dtu_f = jnp.dot(dtu_c, e_d_ref[...], preferred_element_type=jnp.float32)
        b_f = jnp.dot(b_c, e_b_ref[...], preferred_element_type=jnp.float32)

        aa = jnp.exp(dt_f * a_flat_ref[...])                  # deltaA    (T, sd)
        bb = dtu_f * b_f                                      # deltaB*u  (T, sd)

        # Hillis-Steele inclusive scan over the T tokens of this chunk.
        shift = 1
        while shift < T:
            keep = (t_iota >= shift).astype(jnp.float32)      # (T, 1)
            a_sh = pltpu.roll(aa, shift, axis=0)
            b_sh = pltpu.roll(bb, shift, axis=0)
            bb = bb + keep * (aa * b_sh)                      # uses old aa
            aa = aa * (a_sh * keep + (1.0 - keep))
            shift *= 2

        # Reset the carry at batch boundaries (first chunk of each batch).
        gate = (c % cpb != 0).astype(jnp.float32)
        h_all = aa * (h_carry * gate) + bb                    # (T, sd)

        # y[t, d] = sum_n C[t, n] * h[t, n, d]; C-proj + reduction kept outside
        # the scan's live range to limit vreg pressure.
        c_c = c_sc[pl.ds(row0, T), :].astype(jnp.bfloat16)
        c_f = jnp.dot(c_c, e_b_ref[...], preferred_element_type=jnp.float32)
        y_c = lax.dot_general((c_f * h_all).astype(jnp.bfloat16), e_d_ref[...],
                              dimension_numbers=(((1,), (1,)), ((), ())),
                              preferred_element_type=jnp.float32)   # (T, di)
        y_sc[pl.ds(row0, T), :] = y_sc[pl.ds(row0, T), :] + y_c
        return h_all[T - 1:T, :]                              # carry (1, sd)

    h0 = jnp.zeros((1, sd), jnp.float32)
    lax.fori_loop(0, nchunks, chunk_body, h0)

    # ---- SiLU gate, out_proj, lane-dense channel-major store ----
    y_gated = (y_sc[...] * g_sc[...]).astype(jnp.bfloat16)    # (BL, di)
    out_cl = lax.dot_general(w_out_t_ref[...], y_gated,
                             dimension_numbers=(((1,), (1,)), ((), ())),
                             preferred_element_type=jnp.float32)    # (C, BL)
    out_ref[...] = out_cl.astype(out_ref.dtype)


def prepare_params(params):
    """One-time parameter preprocessing: fold dt_proj into x_proj, build the
    lane-dense scan constants, and pre-cast matmul weights to bf16."""
    d_inner = params["w_in"].shape[1] // 2
    d_state = params["a_log_t"].shape[0]
    sd = d_state * d_inner
    hp = lax.Precision.HIGHEST

    # Fold dt_proj into x_proj:  u @ [w_xdt @ w_dt | w_xb | w_xc]
    w_x = jnp.concatenate(
        [jnp.matmul(params["w_xdt"], params["w_dt"], precision=hp),
         params["w_xb"], params["w_xc"]], axis=1)             # (di, di+2*ds)

    # Lane-dense flattened (n-major) state constants for the selective scan.
    a_flat = (-jnp.exp(params["a_log_t"])).reshape(1, sd)      # (1, ds*di) f32
    k_idx = jnp.arange(sd, dtype=jnp.int32)
    e_b = (jnp.arange(d_state, dtype=jnp.int32)[:, None]
           == (k_idx // d_inner)[None, :])                     # (ds, sd)
    e_d = (jnp.arange(d_inner, dtype=jnp.int32)[:, None]
           == (k_idx % d_inner)[None, :])                      # (di, sd)

    return {
        "ln_g": params["ln_g"], "ln_b": params["ln_b"],
        "w_in": params["w_in"].astype(jnp.bfloat16),           # (C, 2*di)
        "conv_w": params["conv_w"], "conv_b": params["conv_b"],
        "w_x": w_x.astype(jnp.bfloat16),                       # (di, di+2*ds)
        "b_dt": params["b_dt"],
        "a_flat": a_flat,
        "e_b": e_b.astype(jnp.bfloat16),                       # exact 0/1
        "e_d": e_d.astype(jnp.bfloat16),                       # exact 0/1
        "d": params["d"],
        "w_out_t": jnp.transpose(params["w_out"]).astype(jnp.bfloat16),  # (C, di)
    }


def mamba_layer_forward(x, prep):
    """x: (B, C, H, W) -> (B, C, H, W).  prep = prepare_params(raw_params)."""
    B, C, H, W = x.shape
    L = H * W
    assert L % CHUNK == 0, "token count must be a multiple of the scan chunk"

    # Fold enough batch elements per grid step to make the matmul M dim and
    # the output lane dim >= 128 (lane-dense, unmasked stores).
    bblk = min(B, max(1, pl.cdiv(128, L)))
    while B % bblk:
        bblk -= 1
    BL = bblk * L

    d_inner = prep["w_in"].shape[1] // 2
    d_state = prep["e_b"].shape[0]

    x_flat = (jnp.transpose(x.reshape(B, C, L), (0, 2, 1))
              .reshape(B * L, C).astype(jnp.float32))           # (B*L, C)
    tok_idx = jnp.tile(jnp.arange(L, dtype=jnp.int32), bblk).reshape(BL, 1)

    weights = [prep["ln_g"], prep["ln_b"], prep["w_in"], prep["conv_w"],
               prep["conv_b"], prep["w_x"], prep["b_dt"], prep["a_flat"],
               prep["e_b"], prep["e_d"], prep["d"], prep["w_out_t"]]

    def full_spec(a):
        return pl.BlockSpec(a.shape, lambda g: (0,) * a.ndim)

    kernel = functools.partial(_mamba_layer_kernel, tokens_per_batch=L)

    out_cl = pl.pallas_call(
        kernel,
        out_shape=jax.ShapeDtypeStruct((C, B * L), jnp.float32),
        grid_spec=pltpu.PrefetchScalarGridSpec(
            num_scalar_prefetch=0,
            grid=(B // bblk,),
            in_specs=[pl.BlockSpec((BL, C), lambda g: (g, 0)),
                      full_spec(tok_idx)]
                     + [full_spec(w) for w in weights],
            out_specs=pl.BlockSpec((C, BL), lambda g: (0, g)),
            scratch_shapes=[
                pltpu.VMEM((BL, d_inner), jnp.float32),       # dt
                pltpu.VMEM((BL, d_inner), jnp.float32),       # dt * u
                pltpu.VMEM((BL, d_state), jnp.float32),       # B
                pltpu.VMEM((BL, d_state), jnp.float32),       # C
                pltpu.VMEM((BL, d_inner), jnp.float32),       # y = scan + D*u
                pltpu.VMEM((BL, d_inner), jnp.float32),       # SiLU(z) gate
            ],
        ),
        compiler_params=pltpu.CompilerParams(
            dimension_semantics=("parallel",),
            vmem_limit_bytes=32 * 1024 * 1024),
    )(x_flat, tok_idx, *weights)

    out = (out_cl.reshape(C, B, L).transpose(1, 0, 2)
           .reshape(B, C, H, W).astype(x.dtype))
    return out


def init_params(key, dim, d_state=16, d_conv=4, expand=2):
    """Deterministic synthetic parameters matching Mamba(d_model=dim, ...)."""
    d_inner = expand * dim
    dt_rank = math.ceil(dim / 16)
    ks = jax.random.split(key, 9)

    def lin(k, fan_in, shape):
        bound = 1.0 / math.sqrt(fan_in)
        return jax.random.uniform(k, shape, jnp.float32, -bound, bound)

    return {
        "ln_g": jnp.ones((1, dim), jnp.float32),
        "ln_b": jnp.zeros((1, dim), jnp.float32),
        # in_proj.weight (2*d_inner, dim) stored transposed -> (dim, 2*d_inner)
        "w_in": lin(ks[0], dim, (dim, 2 * d_inner)),
        # depthwise conv1d weight (d_inner, 1, d_conv) stored as (d_conv, d_inner)
        "conv_w": lin(ks[1], d_conv, (d_conv, d_inner)),
        "conv_b": lin(ks[2], d_conv, (1, d_inner)),
        # x_proj.weight split into dt / B / C projections (transposed)
        "w_xdt": lin(ks[3], d_inner, (d_inner, dt_rank)),
        "w_xb": lin(ks[4], d_inner, (d_inner, d_state)),
        "w_xc": lin(ks[5], d_inner, (d_inner, d_state)),
        # dt_proj.weight (d_inner, dt_rank) transposed -> (dt_rank, d_inner)
        "w_dt": lin(ks[6], dt_rank, (dt_rank, d_inner)),
        "b_dt": lin(ks[7], dt_rank, (1, d_inner)),
        # A_log[d, n] = log(n + 1) (S4D-real init), stored transposed (ds, di)
        "a_log_t": jnp.log(jnp.arange(1, d_state + 1, dtype=jnp.float32))[:, None]
                   * jnp.ones((1, d_inner), jnp.float32),
        "d": jnp.ones((1, d_inner), jnp.float32),
        # out_proj.weight (dim, d_inner) transposed -> (d_inner, dim)
        "w_out": lin(ks[8], d_inner, (d_inner, dim)),
    }


def mamba_layer_ref(x, params):
    """Pure-JAX f32 reference of the same forward (for verification)."""
    B, C, H, W = x.shape
    L = H * W
    xf = jnp.transpose(x.reshape(B, C, L), (0, 2, 1)).astype(jnp.float32)
    mu = xf.mean(-1, keepdims=True)
    var = ((xf - mu) ** 2).mean(-1, keepdims=True)
    xn = (xf - mu) / jnp.sqrt(var + LN_EPS) * params["ln_g"][0] + params["ln_b"][0]

    hp = lax.Precision.HIGHEST
    xz = jnp.matmul(xn, params["w_in"], precision=hp)
    d_inner = params["w_in"].shape[1] // 2
    xs, z = xz[..., :d_inner], xz[..., d_inner:]

    K = params["conv_w"].shape[0]
    xs_pad = jnp.pad(xs, ((0, 0), (K - 1, 0), (0, 0)))
    conv = params["conv_b"][0] + sum(
        params["conv_w"][k] * xs_pad[:, k:k + L, :] for k in range(K))
    u = jax.nn.silu(conv)

    dt_low = jnp.matmul(u, params["w_xdt"], precision=hp)
    Bm = jnp.matmul(u, params["w_xb"], precision=hp)
    Cm = jnp.matmul(u, params["w_xc"], precision=hp)
    dt = jax.nn.softplus(jnp.matmul(dt_low, params["w_dt"], precision=hp)
                         + params["b_dt"][0])

    A = -jnp.exp(jnp.transpose(params["a_log_t"]))          # (di, ds)
    dA = jnp.exp(jnp.einsum("bld,dn->bldn", dt, A))
    dBu = jnp.einsum("bld,bln,bld->bldn", dt, Bm, u)

    def step(h, inp):
        dA_t, dBu_t, C_t = inp
        h = dA_t * h + dBu_t
        y = jnp.einsum("bdn,bn->bd", h, C_t)
        return h, y

    h0 = jnp.zeros((B, d_inner, A.shape[1]), jnp.float32)
    _, ys = lax.scan(step, h0, (dA.transpose(1, 0, 2, 3),
                                dBu.transpose(1, 0, 2, 3),
                                Cm.transpose(1, 0, 2)))
    y = ys.transpose(1, 0, 2) + u * params["d"][0]
    y = y * jax.nn.silu(z)
    out = jnp.matmul(y, params["w_out"], precision=hp)
    return jnp.transpose(out, (0, 2, 1)).reshape(B, C, H, W).astype(x.dtype)


if __name__ == "__main__":
    dim, d_state, d_conv, expand = 32, 16, 4, 2
    B, H, W = 2, 8, 8

    key = jax.random.PRNGKey(0)
    kx, kp = jax.random.split(key)
    x = jax.random.normal(kx, (B, dim, H, W), jnp.float32)
    params = init_params(kp, dim, d_state=d_state, d_conv=d_conv, expand=expand)

    prep = prepare_params(params)            # done once, outside the hot path
    fwd = jax.jit(mamba_layer_forward)

    out = jax.block_until_ready(fwd(x, prep))
    assert out.shape == x.shape and out.dtype == x.dtype

    ref = jax.block_until_ready(mamba_layer_ref(x, params))
    max_diff = float(jnp.max(jnp.abs(out - ref)))
    # Tolerance accounts for bf16 MXU inputs (f32 accumulation) vs the f32
    # HIGHEST-precision reference; all elementwise/scan math stays f32.
    assert max_diff < 1e-2, f"kernel/reference mismatch: {max_diff}"

    print("KERNEL_OK")
</pallas_src>

<mosaic_0001>
module attributes {stable_mosaic.version = 11 : i64} {
  func.func @_mamba_layer_kernel(%arg0: i32, %arg1: memref<128x32xf32, #tpu.memory_space<vmem>>, %arg2: memref<128x1xi32, #tpu.memory_space<vmem>>, %arg3: memref<1x32xf32, #tpu.memory_space<vmem>>, %arg4: memref<1x32xf32, #tpu.memory_space<vmem>>, %arg5: memref<32x128xbf16, #tpu.memory_space<vmem>>, %arg6: memref<4x64xf32, #tpu.memory_space<vmem>>, %arg7: memref<1x64xf32, #tpu.memory_space<vmem>>, %arg8: memref<64x96xbf16, #tpu.memory_space<vmem>>, %arg9: memref<1x64xf32, #tpu.memory_space<vmem>>, %arg10: memref<1x1024xf32, #tpu.memory_space<vmem>>, %arg11: memref<16x1024xbf16, #tpu.memory_space<vmem>>, %arg12: memref<64x1024xbf16, #tpu.memory_space<vmem>>, %arg13: memref<1x64xf32, #tpu.memory_space<vmem>>, %arg14: memref<32x64xbf16, #tpu.memory_space<vmem>>, %arg15: memref<32x128xf32, #tpu.memory_space<vmem>>, %arg16: memref<128x64xf32, #tpu.memory_space<vmem>>, %arg17: memref<128x64xf32, #tpu.memory_space<vmem>>, %arg18: memref<128x16xf32, #tpu.memory_space<vmem>>, %arg19: memref<128x16xf32, #tpu.memory_space<vmem>>, %arg20: memref<128x64xf32, #tpu.memory_space<vmem>>, %arg21: memref<128x64xf32, #tpu.memory_space<vmem>>) attributes {dimension_semantics = [#tpu.dimension_semantics<parallel>], iteration_bounds = array<i64: 1>, scalar_prefetch = 0 : i64, scratch_operands = 6 : i64, tpu.core_type = #tpu.core_type<tc>, window_params = [{transform_indices = @transform_0, window_bounds = array<i64: 128, 32>}, {pipeline_mode = #tpu.pipeline_mode<synchronous>, transform_indices = @transform_1, window_bounds = array<i64: 128, 1>}, {pipeline_mode = #tpu.pipeline_mode<synchronous>, transform_indices = @transform_2, window_bounds = array<i64: 1, 32>}, {pipeline_mode = #tpu.pipeline_mode<synchronous>, transform_indices = @transform_3, window_bounds = array<i64: 1, 32>}, {pipeline_mode = #tpu.pipeline_mode<synchronous>, transform_indices = @transform_4, window_bounds = array<i64: 32, 128>}, {pipeline_mode = #tpu.pipeline_mode<synchronous>, transform_indices = @transform_5, window_bounds = array<i64: 4, 64>}, {pipeline_mode = #tpu.pipeline_mode<synchronous>, transform_indices = @transform_6, window_bounds = array<i64: 1, 64>}, {pipeline_mode = #tpu.pipeline_mode<synchronous>, transform_indices = @transform_7, window_bounds = array<i64: 64, 96>}, {pipeline_mode = #tpu.pipeline_mode<synchronous>, transform_indices = @transform_8, window_bounds = array<i64: 1, 64>}, {pipeline_mode = #tpu.pipeline_mode<synchronous>, transform_indices = @transform_9, window_bounds = array<i64: 1, 1024>}, {pipeline_mode = #tpu.pipeline_mode<synchronous>, transform_indices = @transform_10, window_bounds = array<i64: 16, 1024>}, {pipeline_mode = #tpu.pipeline_mode<synchronous>, transform_indices = @transform_11, window_bounds = array<i64: 64, 1024>}, {pipeline_mode = #tpu.pipeline_mode<synchronous>, transform_indices = @transform_12, window_bounds = array<i64: 1, 64>}, {pipeline_mode = #tpu.pipeline_mode<synchronous>, transform_indices = @transform_13, window_bounds = array<i64: 32, 64>}, {transform_indices = @transform_14, window_bounds = array<i64: 32, 128>}]} {
    %c0 = arith.constant 0 : index
    %c0_0 = arith.constant 0 : index
    %0 = vector.load %arg1[%c0, %c0_0] : memref<128x32xf32, #tpu.memory_space<vmem>>, vector<128x32xf32>
    %c0_1 = arith.constant 0 : index
    %c0_2 = arith.constant 0 : index
    %1 = vector.load %arg2[%c0_1, %c0_2] : memref<128x1xi32, #tpu.memory_space<vmem>>, vector<128x1xi32>
    %cst = arith.constant dense<0.000000e+00> : vector<128xf32>
    %2 = vector.multi_reduction <add>, %0, %cst [1] : vector<128x32xf32> to vector<128xf32>
    %3 = vector.shape_cast %2 : vector<128xf32> to vector<128x1xf32>
    %cst_3 = arith.constant 3.200000e+01 : f32
    %4 = vector.broadcast %cst_3 : f32 to vector<128x1xf32>
    %5 = arith.divf %3, %4 : vector<128x1xf32>
    %6 = vector.broadcast %5 : vector<128x1xf32> to vector<128x32xf32>
    %7 = arith.subf %0, %6 : vector<128x32xf32>
    %8 = arith.mulf %7, %7 : vector<128x32xf32>
    %cst_4 = arith.constant dense<0.000000e+00> : vector<128xf32>
    %9 = vector.multi_reduction <add>, %8, %cst_4 [1] : vector<128x32xf32> to vector<128xf32>
    %10 = vector.shape_cast %9 : vector<128xf32> to vector<128x1xf32>
    %cst_5 = arith.constant 3.200000e+01 : f32
    %11 = vector.broadcast %cst_5 : f32 to vector<128x1xf32>
    %12 = arith.divf %10, %11 : vector<128x1xf32>
    %cst_6 = arith.constant 9.99999974E-6 : f32
    %13 = vector.broadcast %cst_6 : f32 to vector<128x1xf32>
    %14 = arith.addf %12, %13 : vector<128x1xf32>
    %15 = math.rsqrt %14 : vector<128x1xf32>
    %16 = vector.broadcast %15 : vector<128x1xf32> to vector<128x32xf32>
    %17 = arith.mulf %7, %16 : vector<128x32xf32>
    %c0_7 = arith.constant 0 : index
    %c0_8 = arith.constant 0 : index
    %18 = vector.load %arg3[%c0_7, %c0_8] : memref<1x32xf32, #tpu.memory_space<vmem>>, vector<1x32xf32>
    %19 = vector.broadcast %18 : vector<1x32xf32> to vector<128x32xf32>
    %20 = arith.mulf %17, %19 : vector<128x32xf32>
    %c0_9 = arith.constant 0 : index
    %c0_10 = arith.constant 0 : index
    %21 = vector.load %arg4[%c0_9, %c0_10] : memref<1x32xf32, #tpu.memory_space<vmem>>, vector<1x32xf32>
    %22 = vector.broadcast %21 : vector<1x32xf32> to vector<128x32xf32>
    %23 = arith.addf %20, %22 : vector<128x32xf32>
    %24 = arith.truncf %23 : vector<128x32xf32> to vector<128x32xbf16>
    %c0_11 = arith.constant 0 : index
    %c0_12 = arith.constant 0 : index
    %25 = vector.load %arg5[%c0_11, %c0_12] : memref<32x128xbf16, #tpu.memory_space<vmem>>, vector<32x128xbf16>
    %cst_13 = arith.constant dense<0.000000e+00> : vector<128x128xf32>
    %26 = tpu.matmul %24, %25, %cst_13 {dimension_numbers = #tpu.dot_dimension_numbers<[1], [0], [0], [1], [0, 0, 1, 1], [], []>} : vector<128x32xbf16>, vector<32x128xbf16>, vector<128x128xf32> -> vector<128x128xf32>
    %27 = vector.extract_strided_slice %26 {offsets = [0, 0], sizes = [128, 64], strides = [1, 1]} : vector<128x128xf32> to vector<128x64xf32>
    %28 = vector.extract_strided_slice %26 {offsets = [0, 64], sizes = [128, 64], strides = [1, 1]} : vector<128x128xf32> to vector<128x64xf32>
    %29 = arith.negf %28 : vector<128x64xf32>
    %30 = math.exp %29 : vector<128x64xf32>
    %cst_14 = arith.constant 1.000000e+00 : f32
    %31 = vector.broadcast %cst_14 : f32 to vector<128x64xf32>
    %32 = arith.addf %31, %30 : vector<128x64xf32>
    %33 = arith.divf %31, %32 : vector<128x64xf32>
    %34 = arith.mulf %28, %33 : vector<128x64xf32>
    %c0_15 = arith.constant 0 : index
    %c0_16 = arith.constant 0 : index
    %35 = vector.load %arg21[%c0_15, %c0_16] : memref<128x64xf32, #tpu.memory_space<vmem>>, vector<128x64xf32>
    tpu.vector_store %arg21[%c0_15, %c0_16], %34 {strides = array<i32>} : memref<128x64xf32, #tpu.memory_space<vmem>>, vector<128x64xf32>,
    %c0_17 = arith.constant 0 : index
    %c0_18 = arith.constant 0 : index
    %36 = vector.load %arg7[%c0_17, %c0_18] : memref<1x64xf32, #tpu.memory_space<vmem>>, vector<1x64xf32>
    %37 = vector.shape_cast %36 : vector<1x64xf32> to vector<1x64xf32>
    %38 = vector.broadcast %37 : vector<1x64xf32> to vector<128x64xf32>
    %c3 = arith.constant 3 : index
    %c0_19 = arith.constant 0 : index
    %39 = vector.load %arg6[%c3, %c0_19] : memref<4x64xf32, #tpu.memory_space<vmem>>, vector<1x64xf32>
    %40 = vector.broadcast %39 : vector<1x64xf32> to vector<128x64xf32>
    %41 = arith.mulf %40, %27 : vector<128x64xf32>
    %42 = arith.addf %38, %41 : vector<128x64xf32>
    %c1_i32 = arith.constant 1 : i32
    %43 = vector.broadcast %c1_i32 : i32 to vector<128x1xi32>
    %44 = arith.cmpi sge, %1, %43 : vector<128x1xi32>
    %45 = arith.extui %44 : vector<128x1xi1> to vector<128x1xi32>
    %46 = arith.sitofp %45 : vector<128x1xi32> to vector<128x1xf32>
    %c1_i32_20 = arith.constant 1 : i32
    %47 = tpu.dynamic_rotate %27 by %c1_i32_20 dim 0 : vector<128x64xf32>, i32 -> vector<128x64xf32>
    %48 = vector.broadcast %46 : vector<128x1xf32> to vector<128x64xf32>
    %49 = arith.mulf %47, %48 : vector<128x64xf32>
    %c2 = arith.constant 2 : index
    %c0_21 = arith.constant 0 : index
    %50 = vector.load %arg6[%c2, %c0_21] : memref<4x64xf32, #tpu.memory_space<vmem>>, vector<1x64xf32>
    %51 = vector.broadcast %50 : vector<1x64xf32> to vector<128x64xf32>
    %52 = arith.mulf %51, %49 : vector<128x64xf32>
    %53 = arith.addf %42, %52 : vector<128x64xf32>
    %c2_i32 = arith.constant 2 : i32
    %54 = vector.broadcast %c2_i32 : i32 to vector<128x1xi32>
    %55 = arith.cmpi sge, %1, %54 : vector<128x1xi32>
    %56 = arith.extui %55 : vector<128x1xi1> to vector<128x1xi32>
    %57 = arith.sitofp %56 : vector<128x1xi32> to vector<128x1xf32>
    %c2_i32_22 = arith.constant 2 : i32
    %58 = tpu.dynamic_rotate %27 by %c2_i32_22 dim 0 : vector<128x64xf32>, i32 -> vector<128x64xf32>
    %59 = vector.broadcast %57 : vector<128x1xf32> to vector<128x64xf32>
    %60 = arith.mulf %58, %59 : vector<128x64xf32>
    %c1 = arith.constant 1 : index
    %c0_23 = arith.constant 0 : index
    %61 = vector.load %arg6[%c1, %c0_23] : memref<4x64xf32, #tpu.memory_space<vmem>>, vector<1x64xf32>
    %62 = vector.broadcast %61 : vector<1x64xf32> to vector<128x64xf32>
    %63 = arith.mulf %62, %60 : vector<128x64xf32>
    %64 = arith.addf %53, %63 : vector<128x64xf32>
    %c3_i32 = arith.constant 3 : i32
    %65 = vector.broadcast %c3_i32 : i32 to vector<128x1xi32>
    %66 = arith.cmpi sge, %1, %65 : vector<128x1xi32>
    %67 = arith.extui %66 : vector<128x1xi1> to vector<128x1xi32>
    %68 = arith.sitofp %67 : vector<128x1xi32> to vector<128x1xf32>
    %c3_i32_24 = arith.constant 3 : i32
    %69 = tpu.dynamic_rotate %27 by %c3_i32_24 dim 0 : vector<128x64xf32>, i32 -> vector<128x64xf32>
    %70 = vector.broadcast %68 : vector<128x1xf32> to vector<128x64xf32>
    %71 = arith.mulf %69, %70 : vector<128x64xf32>
    %c0_25 = arith.constant 0 : index
    %c0_26 = arith.constant 0 : index
    %72 = vector.load %arg6[%c0_25, %c0_26] : memref<4x64xf32, #tpu.memory_space<vmem>>, vector<1x64xf32>
    %73 = vector.broadcast %72 : vector<1x64xf32> to vector<128x64xf32>
    %74 = arith.mulf %73, %71 : vector<128x64xf32>
    %75 = arith.addf %64, %74 : vector<128x64xf32>
    %76 = arith.negf %75 : vector<128x64xf32>
    %77 = math.exp %76 : vector<128x64xf32>
    %cst_27 = arith.constant 1.000000e+00 : f32
    %78 = vector.broadcast %cst_27 : f32 to vector<128x64xf32>
    %79 = arith.addf %78, %77 : vector<128x64xf32>
    %80 = arith.divf %78, %79 : vector<128x64xf32>
    %81 = arith.mulf %75, %80 : vector<128x64xf32>
    %82 = arith.truncf %81 : vector<128x64xf32> to vector<128x64xbf16>
    %c0_28 = arith.constant 0 : index
    %c0_29 = arith.constant 0 : index
    %83 = vector.load %arg8[%c0_28, %c0_29] : memref<64x96xbf16, #tpu.memory_space<vmem>>, vector<64x96xbf16>
    %cst_30 = arith.constant dense<0.000000e+00> : vector<128x96xf32>
    %84 = tpu.matmul %82, %83, %cst_30 {dimension_numbers = #tpu.dot_dimension_numbers<[1], [0], [0], [1], [0, 0, 1, 1], [], []>} : vector<128x64xbf16>, vector<64x96xbf16>, vector<128x96xf32> -> vector<128x96xf32>
    %85 = vector.extract_strided_slice %84 {offsets = [0, 0], sizes = [128, 64], strides = [1, 1]} : vector<128x96xf32> to vector<128x64xf32>
    %c0_31 = arith.constant 0 : index
    %c0_32 = arith.constant 0 : index
    %86 = vector.load %arg9[%c0_31, %c0_32] : memref<1x64xf32, #tpu.memory_space<vmem>>, vector<1x64xf32>
    %87 = vector.broadcast %86 : vector<1x64xf32> to vector<128x64xf32>
    %88 = arith.addf %85, %87 : vector<128x64xf32>
    %cst_33 = arith.constant 0.000000e+00 : f32
    %89 = vector.broadcast %cst_33 : f32 to vector<128x64xf32>
    %90 = arith.maximumf %88, %89 : vector<128x64xf32>
    %91 = vector.broadcast %cst_33 : f32 to vector<128x64xf32>
    %92 = arith.subf %88, %91 : vector<128x64xf32>
    %93 = arith.cmpf one, %92, %92 : vector<128x64xf32>
    %94 = vector.broadcast %cst_33 : f32 to vector<128x64xf32>
    %95 = arith.addf %88, %94 : vector<128x64xf32>
    %96 = math.absf %92 : vector<128x64xf32>
    %cst_34 = arith.constant 0.000000e+00 : f32
    %97 = vector.broadcast %cst_34 : f32 to vector<128x64xf32>
    %98 = arith.subf %97, %96 : vector<128x64xf32>
    %99 = math.exp %98 : vector<128x64xf32>
    %100 = math.log1p %99 : vector<128x64xf32>
    %101 = arith.addf %90, %100 : vector<128x64xf32>
    %102 = arith.select %93, %95, %101 : vector<128x64xi1>, vector<128x64xf32>
    %c0_35 = arith.constant 0 : index
    %c0_36 = arith.constant 0 : index
    %103 = vector.load %arg16[%c0_35, %c0_36] : memref<128x64xf32, #tpu.memory_space<vmem>>, vector<128x64xf32>
    tpu.vector_store %arg16[%c0_35, %c0_36], %102 {strides = array<i32>} : memref<128x64xf32, #tpu.memory_space<vmem>>, vector<128x64xf32>,
    %104 = arith.mulf %102, %81 : vector<128x64xf32>
    %c0_37 = arith.constant 0 : index
    %c0_38 = arith.constant 0 : index
    %105 = vector.load %arg17[%c0_37, %c0_38] : memref<128x64xf32, #tpu.memory_space<vmem>>, vector<128x64xf32>
    tpu.vector_store %arg17[%c0_37, %c0_38], %104 {strides = array<i32>} : memref<128x64xf32, #tpu.memory_space<vmem>>, vector<128x64xf32>,
    %106 = vector.extract_strided_slice %84 {offsets = [0, 64], sizes = [128, 16], strides = [1, 1]} : vector<128x96xf32> to vector<128x16xf32>
    %c0_39 = arith.constant 0 : index
    %c0_40 = arith.constant 0 : index
    %107 = vector.load %arg18[%c0_39, %c0_40] : memref<128x16xf32, #tpu.memory_space<vmem>>, vector<128x16xf32>
    tpu.vector_store %arg18[%c0_39, %c0_40], %106 {strides = array<i32>} : memref<128x16xf32, #tpu.memory_space<vmem>>, vector<128x16xf32>,
    %108 = vector.extract_strided_slice %84 {offsets = [0, 80], sizes = [128, 16], strides = [1, 1]} : vector<128x96xf32> to vector<128x16xf32>
    %c0_41 = arith.constant 0 : index
    %c0_42 = arith.constant 0 : index
    %109 = vector.load %arg19[%c0_41, %c0_42] : memref<128x16xf32, #tpu.memory_space<vmem>>, vector<128x16xf32>
    tpu.vector_store %arg19[%c0_41, %c0_42], %108 {strides = array<i32>} : memref<128x16xf32, #tpu.memory_space<vmem>>, vector<128x16xf32>,
    %c0_43 = arith.constant 0 : index
    %c0_44 = arith.constant 0 : index
    %110 = vector.load %arg13[%c0_43, %c0_44] : memref<1x64xf32, #tpu.memory_space<vmem>>, vector<1x64xf32>
    %111 = vector.broadcast %110 : vector<1x64xf32> to vector<128x64xf32>
    %112 = arith.mulf %81, %111 : vector<128x64xf32>
    %c0_45 = arith.constant 0 : index
    %c0_46 = arith.constant 0 : index
    %113 = vector.load %arg20[%c0_45, %c0_46] : memref<128x64xf32, #tpu.memory_space<vmem>>, vector<128x64xf32>
    tpu.vector_store %arg20[%c0_45, %c0_46], %112 {strides = array<i32>} : memref<128x64xf32, #tpu.memory_space<vmem>>, vector<128x64xf32>,
    %114 = tpu.iota {dimensions = array<i32: 0>} : vector<8x1xi32>
    %cst_47 = arith.constant 0.000000e+00 : f32
    %115 = vector.broadcast %cst_47 : f32 to vector<1x1024xf32>
    %c0_i32 = arith.constant 0 : i32
    %c16_i32 = arith.constant 16 : i32
    %116 = arith.addi %c0_i32, %c16_i32 : i32
    %c1_i32_48 = arith.constant 1 : i32
    %117 = scf.for %arg22 = %c0_i32 to %116 step %c1_i32_48 iter_args(%arg23 = %115) -> (vector<1x1024xf32>)  : i32 {
      %c8_i32 = arith.constant 8 : i32
      %125 = arith.muli %arg22, %c8_i32 : i32
      %126 = tpu.assume_multiple %125, 8 : i32
      %127 = arith.index_cast %126 : i32 to index
      %c0_59 = arith.constant 0 : index
      %128 = vector.load %arg16[%127, %c0_59] : memref<128x64xf32, #tpu.memory_space<vmem>>, vector<8x64xf32>
      %129 = arith.truncf %128 : vector<8x64xf32> to vector<8x64xbf16>
      %130 = arith.index_cast %126 : i32 to index
      %c0_60 = arith.constant 0 : index
      %131 = vector.load %arg17[%130, %c0_60] : memref<128x64xf32, #tpu.memory_space<vmem>>, vector<8x64xf32>
      %132 = arith.truncf %131 : vector<8x64xf32> to vector<8x64xbf16>
      %133 = arith.index_cast %126 : i32 to index
      %c0_61 = arith.constant 0 : index
      %134 = vector.load %arg18[%133, %c0_61] : memref<128x16xf32, #tpu.memory_space<vmem>>, vector<8x16xf32>
      %135 = arith.truncf %134 : vector<8x16xf32> to vector<8x16xbf16>
      %c0_62 = arith.constant 0 : index
      %c0_63 = arith.constant 0 : index
      %136 = vector.load %arg12[%c0_62, %c0_63] : memref<64x1024xbf16, #tpu.memory_space<vmem>>, vector<64x1024xbf16>
      %cst_64 = arith.constant dense<0.000000e+00> : vector<8x1024xf32>
      %137 = tpu.matmul %129, %136, %cst_64 {dimension_numbers = #tpu.dot_dimension_numbers<[1], [0], [0], [1], [0, 0, 1, 1], [], []>} : vector<8x64xbf16>, vector<64x1024xbf16>, vector<8x1024xf32> -> vector<8x1024xf32>
      %c0_65 = arith.constant 0 : index
      %c0_66 = arith.constant 0 : index
      %138 = vector.load %arg12[%c0_65, %c0_66] : memref<64x1024xbf16, #tpu.memory_space<vmem>>, vector<64x1024xbf16>
      %cst_67 = arith.constant dense<0.000000e+00> : vector<8x1024xf32>
      %139 = tpu.matmul %132, %138, %cst_67 {dimension_numbers = #tpu.dot_dimension_numbers<[1], [0], [0], [1], [0, 0, 1, 1], [], []>} : vector<8x64xbf16>, vector<64x1024xbf16>, vector<8x1024xf32> -> vector<8x1024xf32>
      %c0_68 = arith.constant 0 : index
      %c0_69 = arith.constant 0 : index
      %140 = vector.load %arg11[%c0_68, %c0_69] : memref<16x1024xbf16, #tpu.memory_space<vmem>>, vector<16x1024xbf16>
      %cst_70 = arith.constant dense<0.000000e+00> : vector<8x1024xf32>
      %141 = tpu.matmul %135, %140, %cst_70 {dimension_numbers = #tpu.dot_dimension_numbers<[1], [0], [0], [1], [0, 0, 1, 1], [], []>} : vector<8x16xbf16>, vector<16x1024xbf16>, vector<8x1024xf32> -> vector<8x1024xf32>
      %c0_71 = arith.constant 0 : index
      %c0_72 = arith.constant 0 : index
      %142 = vector.load %arg10[%c0_71, %c0_72] : memref<1x1024xf32, #tpu.memory_space<vmem>>, vector<1x1024xf32>
      %143 = vector.broadcast %142 : vector<1x1024xf32> to vector<8x1024xf32>
      %144 = arith.mulf %137, %143 : vector<8x1024xf32>
      %145 = math.exp %144 : vector<8x1024xf32>
      %146 = arith.mulf %139, %141 : vector<8x1024xf32>
      %c1_i32_73 = arith.constant 1 : i32
      %147 = vector.broadcast %c1_i32_73 : i32 to vector<8x1xi32>
      %148 = arith.cmpi sge, %114, %147 : vector<8x1xi32>
      %149 = arith.extui %148 : vector<8x1xi1> to vector<8x1xi32>
      %150 = arith.sitofp %149 : vector<8x1xi32> to vector<8x1xf32>
      %c1_i32_74 = arith.constant 1 : i32
      %151 = tpu.dynamic_rotate %145 by %c1_i32_74 dim 0 : vector<8x1024xf32>, i32 -> vector<8x1024xf32>
      %c1_i32_75 = arith.constant 1 : i32
      %152 = tpu.dynamic_rotate %146 by %c1_i32_75 dim 0 : vector<8x1024xf32>, i32 -> vector<8x1024xf32>
      %153 = arith.mulf %145, %152 : vector<8x1024xf32>
      %154 = vector.broadcast %150 : vector<8x1xf32> to vector<8x1024xf32>
      %155 = arith.mulf %154, %153 : vector<8x1024xf32>
      %156 = arith.addf %146, %155 : vector<8x1024xf32>
      %157 = vector.broadcast %150 : vector<8x1xf32> to vector<8x1024xf32>
      %158 = arith.mulf %151, %157 : vector<8x1024xf32>
      %cst_76 = arith.constant 1.000000e+00 : f32
      %159 = vector.broadcast %cst_76 : f32 to vector<8x1xf32>
      %160 = arith.subf %159, %150 : vector<8x1xf32>
      %161 = vector.broadcast %160 : vector<8x1xf32> to vector<8x1024xf32>
      %162 = arith.addf %158, %161 : vector<8x1024xf32>
      %163 = arith.mulf %145, %162 : vector<8x1024xf32>
      %c2_i32_77 = arith.constant 2 : i32
      %164 = vector.broadcast %c2_i32_77 : i32 to vector<8x1xi32>
      %165 = arith.cmpi sge, %114, %164 : vector<8x1xi32>
      %166 = arith.extui %165 : vector<8x1xi1> to vector<8x1xi32>
      %167 = arith.sitofp %166 : vector<8x1xi32> to vector<8x1xf32>
      %c2_i32_78 = arith.constant 2 : i32
      %168 = tpu.dynamic_rotate %163 by %c2_i32_78 dim 0 : vector<8x1024xf32>, i32 -> vector<8x1024xf32>
      %c2_i32_79 = arith.constant 2 : i32
      %169 = tpu.dynamic_rotate %156 by %c2_i32_79 dim 0 : vector<8x1024xf32>, i32 -> vector<8x1024xf32>
      %170 = arith.mulf %163, %169 : vector<8x1024xf32>
      %171 = vector.broadcast %167 : vector<8x1xf32> to vector<8x1024xf32>
      %172 = arith.mulf %171, %170 : vector<8x1024xf32>
      %173 = arith.addf %156, %172 : vector<8x1024xf32>
      %174 = vector.broadcast %167 : vector<8x1xf32> to vector<8x1024xf32>
      %175 = arith.mulf %168, %174 : vector<8x1024xf32>
      %cst_80 = arith.constant 1.000000e+00 : f32
      %176 = vector.broadcast %cst_80 : f32 to vector<8x1xf32>
      %177 = arith.subf %176, %167 : vector<8x1xf32>
      %178 = vector.broadcast %177 : vector<8x1xf32> to vector<8x1024xf32>
      %179 = arith.addf %175, %178 : vector<8x1024xf32>
      %180 = arith.mulf %163, %179 : vector<8x1024xf32>
      %c4_i32 = arith.constant 4 : i32
      %181 = vector.broadcast %c4_i32 : i32 to vector<8x1xi32>
      %182 = arith.cmpi sge, %114, %181 : vector<8x1xi32>
      %183 = arith.extui %182 : vector<8x1xi1> to vector<8x1xi32>
      %184 = arith.sitofp %183 : vector<8x1xi32> to vector<8x1xf32>
      %c4_i32_81 = arith.constant 4 : i32
      %185 = tpu.dynamic_rotate %180 by %c4_i32_81 dim 0 : vector<8x1024xf32>, i32 -> vector<8x1024xf32>
      %c4_i32_82 = arith.constant 4 : i32
      %186 = tpu.dynamic_rotate %173 by %c4_i32_82 dim 0 : vector<8x1024xf32>, i32 -> vector<8x1024xf32>
      %187 = arith.mulf %180, %186 : vector<8x1024xf32>
      %188 = vector.broadcast %184 : vector<8x1xf32> to vector<8x1024xf32>
      %189 = arith.mulf %188, %187 : vector<8x1024xf32>
      %190 = arith.addf %173, %189 : vector<8x1024xf32>
      %191 = vector.broadcast %184 : vector<8x1xf32> to vector<8x1024xf32>
      %192 = arith.mulf %185, %191 : vector<8x1024xf32>
      %cst_83 = arith.constant 1.000000e+00 : f32
      %193 = vector.broadcast %cst_83 : f32 to vector<8x1xf32>
      %194 = arith.subf %193, %184 : vector<8x1xf32>
      %195 = vector.broadcast %194 : vector<8x1xf32> to vector<8x1024xf32>
      %196 = arith.addf %192, %195 : vector<8x1024xf32>
      %197 = arith.mulf %180, %196 : vector<8x1024xf32>
      %c8_i32_84 = arith.constant 8 : i32
      %c0_i32_85 = arith.constant 0 : i32
      %198 = arith.cmpi eq, %c8_i32_84, %c0_i32_85 : i32
      %c1_i32_86 = arith.constant 1 : i32
      %199 = arith.select %198, %c1_i32_86, %c8_i32_84 : i32
      %200 = arith.remsi %arg22, %199 : i32
      %c0_i32_87 = arith.constant 0 : i32
      %201 = arith.cmpi ne, %200, %c0_i32_87 : i32
      %c0_i32_88 = arith.constant 0 : i32
      %202 = arith.cmpi slt, %200, %c0_i32_88 : i32
      %c0_i32_89 = arith.constant 0 : i32
      %203 = arith.cmpi slt, %199, %c0_i32_89 : i32
      %204 = arith.xori %202, %203 : i1
      %205 = arith.andi %204, %201 : i1
      %206 = arith.addi %200, %199 : i32
      %207 = arith.select %205, %206, %200 : i32
      %c0_i32_90 = arith.constant 0 : i32
      %208 = arith.cmpi ne, %207, %c0_i32_90 : i32
      %209 = arith.extui %208 : i1 to i32
      %210 = arith.sitofp %209 : i32 to f32
      %211 = vector.broadcast %210 : f32 to vector<1x1024xf32>
      %212 = arith.mulf %arg23, %211 : vector<1x1024xf32>
      %213 = vector.broadcast %212 : vector<1x1024xf32> to vector<8x1024xf32>
      %214 = arith.mulf %197, %213 : vector<8x1024xf32>
      %215 = arith.addf %214, %190 : vector<8x1024xf32>
      %216 = arith.index_cast %126 : i32 to index
      %c0_91 = arith.constant 0 : index
      %217 = vector.load %arg19[%216, %c0_91] : memref<128x16xf32, #tpu.memory_space<vmem>>, vector<8x16xf32>
      %218 = arith.truncf %217 : vector<8x16xf32> to vector<8x16xbf16>
      %c0_92 = arith.constant 0 : index
      %c0_93 = arith.constant 0 : index
      %219 = vector.load %arg11[%c0_92, %c0_93] : memref<16x1024xbf16, #tpu.memory_space<vmem>>, vector<16x1024xbf16>
      %cst_94 = arith.constant dense<0.000000e+00> : vector<8x1024xf32>
      %220 = tpu.matmul %218, %219, %cst_94 {dimension_numbers = #tpu.dot_dimension_numbers<[1], [0], [0], [1], [0, 0, 1, 1], [], []>} : vector<8x16xbf16>, vector<16x1024xbf16>, vector<8x1024xf32> -> vector<8x1024xf32>
      %221 = arith.mulf %220, %215 : vector<8x1024xf32>
      %222 = arith.truncf %221 : vector<8x1024xf32> to vector<8x1024xbf16>
      %c0_95 = arith.constant 0 : index
      %c0_96 = arith.constant 0 : index
      %223 = vector.load %arg12[%c0_95, %c0_96] : memref<64x1024xbf16, #tpu.memory_space<vmem>>, vector<64x1024xbf16>
      %cst_97 = arith.constant dense<0.000000e+00> : vector<8x64xf32>
      %224 = tpu.matmul %222, %223, %cst_97 {dimension_numbers = #tpu.dot_dimension_numbers<[1], [1], [0], [0], [0, 0, 1, 0], [], []>} : vector<8x1024xbf16>, vector<64x1024xbf16>, vector<8x64xf32> -> vector<8x64xf32>
      %225 = arith.index_cast %126 : i32 to index
      %c0_98 = arith.constant 0 : index
      %226 = vector.load %arg20[%225, %c0_98] : memref<128x64xf32, #tpu.memory_space<vmem>>, vector<8x64xf32>
      %227 = arith.addf %226, %224 : vector<8x64xf32>
      %228 = arith.index_cast %126 : i32 to index
      %c0_99 = arith.constant 0 : index
      %229 = vector.load %arg20[%228, %c0_99] : memref<128x64xf32, #tpu.memory_space<vmem>>, vector<8x64xf32>
      tpu.vector_store %arg20[%228, %c0_99], %227 {strides = array<i32>} : memref<128x64xf32, #tpu.memory_space<vmem>>, vector<8x64xf32>,
      %230 = vector.extract_strided_slice %215 {offsets = [7, 0], sizes = [1, 1024], strides = [1, 1]} : vector<8x1024xf32> to vector<1x1024xf32>
      scf.yield %230 : vector<1x1024xf32>
    }
    %c16_i32_49 = arith.constant 16 : i32
    %c0_50 = arith.constant 0 : index
    %c0_51 = arith.constant 0 : index
    %118 = vector.load %arg20[%c0_50, %c0_51] : memref<128x64xf32, #tpu.memory_space<vmem>>, vector<128x64xf32>
    %c0_52 = arith.constant 0 : index
    %c0_53 = arith.constant 0 : index
    %119 = vector.load %arg21[%c0_52, %c0_53] : memref<128x64xf32, #tpu.memory_space<vmem>>, vector<128x64xf32>
    %120 = arith.mulf %118, %119 : vector<128x64xf32>
    %121 = arith.truncf %120 : vector<128x64xf32> to vector<128x64xbf16>
    %c0_54 = arith.constant 0 : index
    %c0_55 = arith.constant 0 : index
    %122 = vector.load %arg14[%c0_54, %c0_55] : memref<32x64xbf16, #tpu.memory_space<vmem>>, vector<32x64xbf16>
    %cst_56 = arith.constant dense<0.000000e+00> : vector<32x128xf32>
    %123 = tpu.matmul %122, %121, %cst_56 {dimension_numbers = #tpu.dot_dimension_numbers<[1], [1], [0], [0], [0, 0, 1, 0], [], []>} : vector<32x64xbf16>, vector<128x64xbf16>, vector<32x128xf32> -> vector<32x128xf32>
    %c0_57 = arith.constant 0 : index
    %c0_58 = arith.constant 0 : index
    %124 = vector.load %arg15[%c0_57, %c0_58] : memref<32x128xf32, #tpu.memory_space<vmem>>, vector<32x128xf32>
    tpu.vector_store %arg15[%c0_57, %c0_58], %123 {strides = array<i32>} : memref<32x128xf32, #tpu.memory_space<vmem>>, vector<32x128xf32>,
    return
  }
  func.func @transform_0(%arg0: i32) -> (i32, i32) {
    %c0_i32 = arith.constant 0 : i32
    %c0_i32_0 = arith.constant 0 : i32
    return %arg0, %c0_i32 : i32, i32
  }
  func.func @transform_1(%arg0: i32) -> (i32, i32) {
    %c0_i32 = arith.constant 0 : i32
    %c0_i32_0 = arith.constant 0 : i32
    %c0_i32_1 = arith.constant 0 : i32
    return %c0_i32, %c0_i32_0 : i32, i32
  }
  func.func @transform_2(%arg0: i32) -> (i32, i32) {
    %c0_i32 = arith.constant 0 : i32
    %c0_i32_0 = arith.constant 0 : i32
    %c0_i32_1 = arith.constant 0 : i32
    return %c0_i32, %c0_i32_0 : i32, i32
  }
  func.func @transform_3(%arg0: i32) -> (i32, i32) {
    %c0_i32 = arith.constant 0 : i32
    %c0_i32_0 = arith.constant 0 : i32
    %c0_i32_1 = arith.constant 0 : i32
    return %c0_i32, %c0_i32_0 : i32, i32
  }
  func.func @transform_4(%arg0: i32) -> (i32, i32) {
    %c0_i32 = arith.constant 0 : i32
    %c0_i32_0 = arith.constant 0 : i32
    %c0_i32_1 = arith.constant 0 : i32
    return %c0_i32, %c0_i32_0 : i32, i32
  }
  func.func @transform_5(%arg0: i32) -> (i32, i32) {
    %c0_i32 = arith.constant 0 : i32
    %c0_i32_0 = arith.constant 0 : i32
    %c0_i32_1 = arith.constant 0 : i32
    return %c0_i32, %c0_i32_0 : i32, i32
  }
  func.func @transform_6(%arg0: i32) -> (i32, i32) {
    %c0_i32 = arith.constant 0 : i32
    %c0_i32_0 = arith.constant 0 : i32
    %c0_i32_1 = arith.constant 0 : i32
    return %c0_i32, %c0_i32_0 : i32, i32
  }
  func.func @transform_7(%arg0: i32) -> (i32, i32) {
    %c0_i32 = arith.constant 0 : i32
    %c0_i32_0 = arith.constant 0 : i32
    %c0_i32_1 = arith.constant 0 : i32
    return %c0_i32, %c0_i32_0 : i32, i32
  }
  func.func @transform_8(%arg0: i32) -> (i32, i32) {
    %c0_i32 = arith.constant 0 : i32
    %c0_i32_0 = arith.constant 0 : i32
    %c0_i32_1 = arith.constant 0 : i32
    return %c0_i32, %c0_i32_0 : i32, i32
  }
  func.func @transform_9(%arg0: i32) -> (i32, i32) {
    %c0_i32 = arith.constant 0 : i32
    %c0_i32_0 = arith.constant 0 : i32
    %c0_i32_1 = arith.constant 0 : i32
    return %c0_i32, %c0_i32_0 : i32, i32
  }
  func.func @transform_10(%arg0: i32) -> (i32, i32) {
    %c0_i32 = arith.constant 0 : i32
    %c0_i32_0 = arith.constant 0 : i32
    %c0_i32_1 = arith.constant 0 : i32
    return %c0_i32, %c0_i32_0 : i32, i32
  }
  func.func @transform_11(%arg0: i32) -> (i32, i32) {
    %c0_i32 = arith.constant 0 : i32
    %c0_i32_0 = arith.constant 0 : i32
    %c0_i32_1 = arith.constant 0 : i32
    return %c0_i32, %c0_i32_0 : i32, i32
  }
  func.func @transform_12(%arg0: i32) -> (i32, i32) {
    %c0_i32 = arith.constant 0 : i32
    %c0_i32_0 = arith.constant 0 : i32
    %c0_i32_1 = arith.constant 0 : i32
    return %c0_i32, %c0_i32_0 : i32, i32
  }
  func.func @transform_13(%arg0: i32) -> (i32, i32) {
    %c0_i32 = arith.constant 0 : i32
    %c0_i32_0 = arith.constant 0 : i32
    %c0_i32_1 = arith.constant 0 : i32
    return %c0_i32, %c0_i32_0 : i32, i32
  }
  func.func @transform_14(%arg0: i32) -> (i32, i32) {
    %c0_i32 = arith.constant 0 : i32
    %c0_i32_0 = arith.constant 0 : i32
    return %c0_i32, %arg0 : i32, i32
  }
}

</mosaic_0001>

<llo_original>
// kernel: tile.0
$region0: #{tile.0}
  %s0 = inlined_call_operand.vmem [shape: s32[2,64], index: 0, kind: input, shape index: {}]
  %s1 = inlined_call_operand.vmem [shape: s32[128,1], index: 1, kind: output, shape index: {}]
  $region1: #{tile.0} parent=0
    #allocation0 [shape = 'u8[4096]{0}', space=vmem, size = 0x1000, scoped, tag = 'scoped mem for input reshape']
    %s3 = sshll.u32 1, 2
    %s4 = ssub.s32 %s3, 1
    %v5 = vld [vmem:[%s0] sm:%s4]
    %6 = vst [vmem:[#allocation0] sm:%s4] %v5
    %v7 = vld [vmem:[#allocation0] sm:$0x3]
    %vm8 = vcmask 7168
    %9 = vst.msk [vmem:[%s1] sm:$0x1] %vm8, %v7
    %s10 = scalar_lea.vmem %s1, 63
    %11 = vst.msk [vmem:[%s10] sm:$0x2] %vm8, %v7
    %v12 = vld [vmem:[#allocation0] sm:$0x3]
    %13 = vrot.lane.b32.xlu0 %v12, 127
    %v14 = vpop.permute.xlu0 %13
    %vm15 = vcmask 7168
    %s16 = scalar_lea.vmem %s1, 1
    %17 = vst.msk [vmem:[%s16] sm:$0x1] %vm15, %v14
    %s18 = scalar_lea.vmem %s1, 64
    %19 = vst.msk [vmem:[%s18] sm:$0x2] %vm15, %v14
    %v20 = vld [vmem:[#allocation0] sm:$0x3]
    %21 = vrot.lane.b32.xlu0 %v20, 126
    %v22 = vpop.permute.xlu0 %21
    %vm23 = vcmask 7168
    %s24 = scalar_lea.vmem %s1, 2
    %25 = vst.msk [vmem:[%s24] sm:$0x1] %vm23, %v22
    %s26 = scalar_lea.vmem %s1, 65
    %27 = vst.msk [vmem:[%s26] sm:$0x2] %vm23, %v22
    %v28 = vld [vmem:[#allocation0] sm:$0x3]
    %29 = vrot.lane.b32.xlu0 %v28, 125
    %v30 = vpop.permute.xlu0 %29
    %vm31 = vcmask 7168
    %s32 = scalar_lea.vmem %s1, 3
    %33 = vst.msk [vmem:[%s32] sm:$0x1] %vm31, %v30
    %s34 = scalar_lea.vmem %s1, 66
    %35 = vst.msk [vmem:[%s34] sm:$0x2] %vm31, %v30
    %v36 = vld [vmem:[#allocation0] sm:$0x3]
    %37 = vrot.lane.b32.xlu0 %v36, 124
    %v38 = vpop.permute.xlu0 %37
    %vm39 = vcmask 7168
    %s40 = scalar_lea.vmem %s1, 4
    %41 = vst.msk [vmem:[%s40] sm:$0x1] %vm39, %v38
    %s42 = scalar_lea.vmem %s1, 67
    %43 = vst.msk [vmem:[%s42] sm:$0x2] %vm39, %v38
    %v44 = vld [vmem:[#allocation0] sm:$0x3]
    %45 = vrot.lane.b32.xlu0 %v44, 123
    %v46 = vpop.permute.xlu0 %45
    %vm47 = vcmask 7168
    %s48 = scalar_lea.vmem %s1, 5
    %49 = vst.msk [vmem:[%s48] sm:$0x1] %vm47, %v46
    %s50 = scalar_lea.vmem %s1, 68
    %51 = vst.msk [vmem:[%s50] sm:$0x2] %vm47, %v46
    %v52 = vld [vmem:[#allocation0] sm:$0x3]
    %53 = vrot.lane.b32.xlu0 %v52, 122
    %v54 = vpop.permute.xlu0 %53
    %vm55 = vcmask 7168
    %s56 = scalar_lea.vmem %s1, 6
    %57 = vst.msk [vmem:[%s56] sm:$0x1] %vm55, %v54
    %s58 = scalar_lea.vmem %s1, 69
    %59 = vst.msk [vmem:[%s58] sm:$0x2] %vm55, %v54
    %v60 = vld [vmem:[#allocation0] sm:$0x3]
    %61 = vrot.lane.b32.xlu0 %v60, 121
    %v62 = vpop.permute.xlu0 %61
    %vm63 = vcmask 7168
    %s64 = scalar_lea.vmem %s1, 7
    %65 = vst.msk [vmem:[%s64] sm:$0x1] %vm63, %v62
    %s66 = scalar_lea.vmem %s1, 70
    %67 = vst.msk [vmem:[%s66] sm:$0x2] %vm63, %v62
    %v68 = vld [vmem:[#allocation0] sm:$0x3]
    %69 = vrot.lane.b32.xlu0 %v68, 120
    %v70 = vpop.permute.xlu0 %69
    %vm71 = vcmask 7168
    %s72 = scalar_lea.vmem %s1, 8
    %73 = vst.msk [vmem:[%s72] sm:$0x1] %vm71, %v70
    %s74 = scalar_lea.vmem %s1, 71
    %75 = vst.msk [vmem:[%s74] sm:$0x2] %vm71, %v70
    %v76 = vld [vmem:[#allocation0] sm:$0x3]
    %77 = vrot.lane.b32.xlu0 %v76, 119
    %v78 = vpop.permute.xlu0 %77
    %vm79 = vcmask 7168
    %s80 = scalar_lea.vmem %s1, 9
    %81 = vst.msk [vmem:[%s80] sm:$0x1] %vm79, %v78
    %s82 = scalar_lea.vmem %s1, 72
    %83 = vst.msk [vmem:[%s82] sm:$0x2] %vm79, %v78
    %v84 = vld [vmem:[#allocation0] sm:$0x3]
    %85 = vrot.lane.b32.xlu0 %v84, 118
    %v86 = vpop.permute.xlu0 %85
    %vm87 = vcmask 7168
    %s88 = scalar_lea.vmem %s1, 10
    %89 = vst.msk [vmem:[%s88] sm:$0x1] %vm87, %v86
    %s90 = scalar_lea.vmem %s1, 73
    %91 = vst.msk [vmem:[%s90] sm:$0x2] %vm87, %v86
    %v92 = vld [vmem:[#allocation0] sm:$0x3]
    %93 = vrot.lane.b32.xlu0 %v92, 117
    %v94 = vpop.permute.xlu0 %93
    %vm95 = vcmask 7168
    %s96 = scalar_lea.vmem %s1, 11
    %97 = vst.msk [vmem:[%s96] sm:$0x1] %vm95, %v94
    %s98 = scalar_lea.vmem %s1, 74
    %99 = vst.msk [vmem:[%s98] sm:$0x2] %vm95, %v94
    %v100 = vld [vmem:[#allocation0] sm:$0x3]
    %101 = vrot.lane.b32.xlu0 %v100, 116
    %v102 = vpop.permute.xlu0 %101
    %vm103 = vcmask 7168
    %s104 = scalar_lea.vmem %s1, 12
    %105 = vst.msk [vmem:[%s104] sm:$0x1] %vm103, %v102
    %s106 = scalar_lea.vmem %s1, 75
    %107 = vst.msk [vmem:[%s106] sm:$0x2] %vm103, %v102
    %v108 = vld [vmem:[#allocation0] sm:$0x3]
    %109 = vrot.lane.b32.xlu0 %v108, 115
    %v110 = vpop.permute.xlu0 %109
    %vm111 = vcmask 7168
    %s112 = scalar_lea.vmem %s1, 13
    %113 = vst.msk [vmem:[%s112] sm:$0x1] %vm111, %v110
    %s114 = scalar_lea.vmem %s1, 76
    %115 = vst.msk [vmem:[%s114] sm:$0x2] %vm111, %v110
    %v116 = vld [vmem:[#allocation0] sm:$0x3]
    %117 = vrot.lane.b32.xlu0 %v116, 114
    %v118 = vpop.permute.xlu0 %117
    %vm119 = vcmask 7168
    %s120 = scalar_lea.vmem %s1, 14
    %121 = vst.msk [vmem:[%s120] sm:$0x1] %vm119, %v118
    %s122 = scalar_lea.vmem %s1, 77
    %123 = vst.msk [vmem:[%s122] sm:$0x2] %vm119, %v118
    %v124 = vld [vmem:[#allocation0] sm:$0x3]
    %125 = vrot.lane.b32.xlu0 %v124, 113
    %v126 = vpop.permute.xlu0 %125
    %vm127 = vcmask 7168
    %s128 = scalar_lea.vmem %s1, 15
    %129 = vst.msk [vmem:[%s128] sm:$0x1] %vm127, %v126
    %s130 = scalar_lea.vmem %s1, 78
    %131 = vst.msk [vmem:[%s130] sm:$0x2] %vm127, %v126
    %v132 = vld [vmem:[#allocation0] sm:$0x3]
    %133 = vrot.lane.b32.xlu0 %v132, 112
    %v134 = vpop.permute.xlu0 %133
    %vm135 = vcmask 7168
    %s136 = scalar_lea.vmem %s1, 16
    %137 = vst.msk [vmem:[%s136] sm:$0x1] %vm135, %v134
    %s138 = scalar_lea.vmem %s1, 79
    %139 = vst.msk [vmem:[%s138] sm:$0x2] %vm135, %v134
    %v140 = vld [vmem:[#allocation0] sm:$0x3]
    %141 = vrot.lane.b32.xlu0 %v140, 111
    %v142 = vpop.permute.xlu0 %141
    %vm143 = vcmask 7168
    %s144 = scalar_lea.vmem %s1, 17
    %145 = vst.msk [vmem:[%s144] sm:$0x1] %vm143, %v142
    %s146 = scalar_lea.vmem %s1, 80
    %147 = vst.msk [vmem:[%s146] sm:$0x2] %vm143, %v142
    %v148 = vld [vmem:[#allocation0] sm:$0x3]
    %149 = vrot.lane.b32.xlu0 %v148, 110
    %v150 = vpop.permute.xlu0 %149
    %vm151 = vcmask 7168
    %s152 = scalar_lea.vmem %s1, 18
    %153 = vst.msk [vmem:[%s152] sm:$0x1] %vm151, %v150
    %s154 = scalar_lea.vmem %s1, 81
    %155 = vst.msk [vmem:[%s154] sm:$0x2] %vm151, %v150
    %v156 = vld [vmem:[#allocation0] sm:$0x3]
    %157 = vrot.lane.b32.xlu0 %v156, 109
    %v158 = vpop.permute.xlu0 %157
    %vm159 = vcmask 7168
    %s160 = scalar_lea.vmem %s1, 19
    %161 = vst.msk [vmem:[%s160] sm:$0x1] %vm159, %v158
    %s162 = scalar_lea.vmem %s1, 82
    %163 = vst.msk [vmem:[%s162] sm:$0x2] %vm159, %v158
    %v164 = vld [vmem:[#allocation0] sm:$0x3]
    %165 = vrot.lane.b32.xlu0 %v164, 108
    %v166 = vpop.permute.xlu0 %165
    %vm167 = vcmask 7168
    %s168 = scalar_lea.vmem %s1, 20
    %169 = vst.msk [vmem:[%s168] sm:$0x1] %vm167, %v166
    %s170 = scalar_lea.vmem %s1, 83
    %171 = vst.msk [vmem:[%s170] sm:$0x2] %vm167, %v166
    %v172 = vld [vmem:[#allocation0] sm:$0x3]
    %173 = vrot.lane.b32.xlu0 %v172, 107
    %v174 = vpop.permute.xlu0 %173
    %vm175 = vcmask 7168
    %s176 = scalar_lea.vmem %s1, 21
    %177 = vst.msk [vmem:[%s176] sm:$0x1] %vm175, %v174
    %s178 = scalar_lea.vmem %s1, 84
    %179 = vst.msk [vmem:[%s178] sm:$0x2] %vm175, %v174
    %v180 = vld [vmem:[#allocation0] sm:$0x3]
    %181 = vrot.lane.b32.xlu0 %v180, 106
    %v182 = vpop.permute.xlu0 %181
    %vm183 = vcmask 7168
    %s184 = scalar_lea.vmem %s1, 22
    %185 = vst.msk [vmem:[%s184] sm:$0x1] %vm183, %v182
    %s186 = scalar_lea.vmem %s1, 85
    %187 = vst.msk [vmem:[%s186] sm:$0x2] %vm183, %v182
    %v188 = vld [vmem:[#allocation0] sm:$0x3]
    %189 = vrot.lane.b32.xlu0 %v188, 105
    %v190 = vpop.permute.xlu0 %189
    %vm191 = vcmask 7168
    %s192 = scalar_lea.vmem %s1, 23
    %193 = vst.msk [vmem:[%s192] sm:$0x1] %vm191, %v190
    %s194 = scalar_lea.vmem %s1, 86
    %195 = vst.msk [vmem:[%s194] sm:$0x2] %vm191, %v190
    %v196 = vld [vmem:[#allocation0] sm:$0x3]
    %197 = vrot.lane.b32.xlu0 %v196, 104
    %v198 = vpop.permute.xlu0 %197
    %vm199 = vcmask 7168
    %s200 = scalar_lea.vmem %s1, 24
    %201 = vst.msk [vmem:[%s200] sm:$0x1] %vm199, %v198
    %s202 = scalar_lea.vmem %s1, 87
    %203 = vst.msk [vmem:[%s202] sm:$0x2] %vm199, %v198
    %v204 = vld [vmem:[#allocation0] sm:$0x3]
    %205 = vrot.lane.b32.xlu0 %v204, 103
    %v206 = vpop.permute.xlu0 %205
    %vm207 = vcmask 7168
    %s208 = scalar_lea.vmem %s1, 25
    %209 = vst.msk [vmem:[%s208] sm:$0x1] %vm207, %v206
    %s210 = scalar_lea.vmem %s1, 88
    %211 = vst.msk [vmem:[%s210] sm:$0x2] %vm207, %v206
    %v212 = vld [vmem:[#allocation0] sm:$0x3]
    %213 = vrot.lane.b32.xlu0 %v212, 102
    %v214 = vpop.permute.xlu0 %213
    %vm215 = vcmask 7168
    %s216 = scalar_lea.vmem %s1, 26
    %217 = vst.msk [vmem:[%s216] sm:$0x1] %vm215, %v214
    %s218 = scalar_lea.vmem %s1, 89
    %219 = vst.msk [vmem:[%s218] sm:$0x2] %vm215, %v214
    %v220 = vld [vmem:[#allocation0] sm:$0x3]
    %221 = vrot.lane.b32.xlu0 %v220, 101
    %v222 = vpop.permute.xlu0 %221
    %vm223 = vcmask 7168
    %s224 = scalar_lea.vmem %s1, 27
    %225 = vst.msk [vmem:[%s224] sm:$0x1] %vm223, %v222
    %s226 = scalar_lea.vmem %s1, 90
    %227 = vst.msk [vmem:[%s226] sm:$0x2] %vm223, %v222
    %v228 = vld [vmem:[#allocation0] sm:$0x3]
    %229 = vrot.lane.b32.xlu0 %v228, 100
    %v230 = vpop.permute.xlu0 %229
    %vm231 = vcmask 7168
    %s232 = scalar_lea.vmem %s1, 28
    %233 = vst.msk [vmem:[%s232] sm:$0x1] %vm231, %v230
    %s234 = scalar_lea.vmem %s1, 91
    %235 = vst.msk [vmem:[%s234] sm:$0x2] %vm231, %v230
    %v236 = vld [vmem:[#allocation0] sm:$0x3]
    %237 = vrot.lane.b32.xlu0 %v236, 99
    %v238 = vpop.permute.xlu0 %237
    %vm239 = vcmask 7168
    %s240 = scalar_lea.vmem %s1, 29
    %241 = vst.msk [vmem:[%s240] sm:$0x1] %vm239, %v238
    %s242 = scalar_lea.vmem %s1, 92
    %243 = vst.msk [vmem:[%s242] sm:$0x2] %vm239, %v238
    %v244 = vld [vmem:[#allocation0] sm:$0x3]
    %245 = vrot.lane.b32.xlu0 %v244, 98
    %v246 = vpop.permute.xlu0 %245
    %vm247 = vcmask 7168
    %s248 = scalar_lea.vmem %s1, 30
    %249 = vst.msk [vmem:[%s248] sm:$0x1] %vm247, %v246
    %s250 = scalar_lea.vmem %s1, 93
    %251 = vst.msk [vmem:[%s250] sm:$0x2] %vm247, %v246
    %v252 = vld [vmem:[#allocation0] sm:$0x3]
    %253 = vrot.lane.b32.xlu0 %v252, 97
    %v254 = vpop.permute.xlu0 %253
    %vm255 = vcmask 7168
    %s256 = scalar_lea.vmem %s1, 31
    %257 = vst.msk [vmem:[%s256] sm:$0x1] %vm255, %v254
    %s258 = scalar_lea.vmem %s1, 94
    %259 = vst.msk [vmem:[%s258] sm:$0x2] %vm255, %v254
    %v260 = vld [vmem:[#allocation0] sm:$0x3]
    %261 = vrot.lane.b32.xlu0 %v260, 96
    %v262 = vpop.permute.xlu0 %261
    %vm263 = vcmask 7168
    %s264 = scalar_lea.vmem %s1, 32
    %265 = vst.msk [vmem:[%s264] sm:$0x1] %vm263, %v262
    %s266 = scalar_lea.vmem %s1, 95
    %267 = vst.msk [vmem:[%s266] sm:$0x2] %vm263, %v262
    %v268 = vld [vmem:[#allocation0] sm:$0x3]
    %269 = vrot.lane.b32.xlu0 %v268, 95
    %v270 = vpop.permute.xlu0 %269
    %vm271 = vcmask 7168
    %s272 = scalar_lea.vmem %s1, 33
    %273 = vst.msk [vmem:[%s272] sm:$0x1] %vm271, %v270
    %s274 = scalar_lea.vmem %s1, 96
    %275 = vst.msk [vmem:[%s274] sm:$0x2] %vm271, %v270
    %v276 = vld [vmem:[#allocation0] sm:$0x3]
    %277 = vrot.lane.b32.xlu0 %v276, 94
    %v278 = vpop.permute.xlu0 %277
    %vm279 = vcmask 7168
    %s280 = scalar_lea.vmem %s1, 34
    %281 = vst.msk [vmem:[%s280] sm:$0x1] %vm279, %v278
    %s282 = scalar_lea.vmem %s1, 97
    %283 = vst.msk [vmem:[%s282] sm:$0x2] %vm279, %v278
    %v284 = vld [vmem:[#allocation0] sm:$0x3]
    %285 = vrot.lane.b32.xlu0 %v284, 93
    %v286 = vpop.permute.xlu0 %285
    %vm287 = vcmask 7168
    %s288 = scalar_lea.vmem %s1, 35
    %289 = vst.msk [vmem:[%s288] sm:$0x1] %vm287, %v286
    %s290 = scalar_lea.vmem %s1, 98
    %291 = vst.msk [vmem:[%s290] sm:$0x2] %vm287, %v286
    %v292 = vld [vmem:[#allocation0] sm:$0x3]
    %293 = vrot.lane.b32.xlu0 %v292, 92
    %v294 = vpop.permute.xlu0 %293
    %vm295 = vcmask 7168
    %s296 = scalar_lea.vmem %s1, 36
    %297 = vst.msk [vmem:[%s296] sm:$0x1] %vm295, %v294
    %s298 = scalar_lea.vmem %s1, 99
    %299 = vst.msk [vmem:[%s298] sm:$0x2] %vm295, %v294
    %v300 = vld [vmem:[#allocation0] sm:$0x3]
    %301 = vrot.lane.b32.xlu0 %v300, 91
    %v302 = vpop.permute.xlu0 %301
    %vm303 = vcmask 7168
    %s304 = scalar_lea.vmem %s1, 37
    %305 = vst.msk [vmem:[%s304] sm:$0x1] %vm303, %v302
    %s306 = scalar_lea.vmem %s1, 100
    %307 = vst.msk [vmem:[%s306] sm:$0x2] %vm303, %v302
    %v308 = vld [vmem:[#allocation0] sm:$0x3]
    %309 = vrot.lane.b32.xlu0 %v308, 90
    %v310 = vpop.permute.xlu0 %309
    %vm311 = vcmask 7168
    %s312 = scalar_lea.vmem %s1, 38
    %313 = vst.msk [vmem:[%s312] sm:$0x1] %vm311, %v310
    %s314 = scalar_lea.vmem %s1, 101
    %315 = vst.msk [vmem:[%s314] sm:$0x2] %vm311, %v310
    %v316 = vld [vmem:[#allocation0] sm:$0x3]
    %317 = vrot.lane.b32.xlu0 %v316, 89
    %v318 = vpop.permute.xlu0 %317
    %vm319 = vcmask 7168
    %s320 = scalar_lea.vmem %s1, 39
    %321 = vst.msk [vmem:[%s320] sm:$0x1] %vm319, %v318
    %s322 = scalar_lea.vmem %s1, 102
    %323 = vst.msk [vmem:[%s322] sm:$0x2] %vm319, %v318
    %v324 = vld [vmem:[#allocation0] sm:$0x3]
    %325 = vrot.lane.b32.xlu0 %v324, 88
    %v326 = vpop.permute.xlu0 %325
    %vm327 = vcmask 7168
    %s328 = scalar_lea.vmem %s1, 40
    %329 = vst.msk [vmem:[%s328] sm:$0x1] %vm327, %v326
    %s330 = scalar_lea.vmem %s1, 103
    %331 = vst.msk [vmem:[%s330] sm:$0x2] %vm327, %v326
    %v332 = vld [vmem:[#allocation0] sm:$0x3]
    %333 = vrot.lane.b32.xlu0 %v332, 87
    %v334 = vpop.permute.xlu0 %333
    %vm335 = vcmask 7168
    %s336 = scalar_lea.vmem %s1, 41
    %337 = vst.msk [vmem:[%s336] sm:$0x1] %vm335, %v334
    %s338 = scalar_lea.vmem %s1, 104
    %339 = vst.msk [vmem:[%s338] sm:$0x2] %vm335, %v334
    %v340 = vld [vmem:[#allocation0] sm:$0x3]
    %341 = vrot.lane.b32.xlu0 %v340, 86
    %v342 = vpop.permute.xlu0 %341
    %vm343 = vcmask 7168
    %s344 = scalar_lea.vmem %s1, 42
    %345 = vst.msk [vmem:[%s344] sm:$0x1] %vm343, %v342
    %s346 = scalar_lea.vmem %s1, 105
    %347 = vst.msk [vmem:[%s346] sm:$0x2] %vm343, %v342
    %v348 = vld [vmem:[#allocation0] sm:$0x3]
    %349 = vrot.lane.b32.xlu0 %v348, 85
    %v350 = vpop.permute.xlu0 %349
    %vm351 = vcmask 7168
    %s352 = scalar_lea.vmem %s1, 43
    %353 = vst.msk [vmem:[%s352] sm:$0x1] %vm351, %v350
    %s354 = scalar_lea.vmem %s1, 106
    %355 = vst.msk [vmem:[%s354] sm:$0x2] %vm351, %v350
    %v356 = vld [vmem:[#allocation0] sm:$0x3]
    %357 = vrot.lane.b32.xlu0 %v356, 84
    %v358 = vpop.permute.xlu0 %357
    %vm359 = vcmask 7168
    %s360 = scalar_lea.vmem %s1, 44
    %361 = vst.msk [vmem:[%s360] sm:$0x1] %vm359, %v358
    %s362 = scalar_lea.vmem %s1, 107
    %363 = vst.msk [vmem:[%s362] sm:$0x2] %vm359, %v358
    %v364 = vld [vmem:[#allocation0] sm:$0x3]
    %365 = vrot.lane.b32.xlu0 %v364, 83
    %v366 = vpop.permute.xlu0 %365
    %vm367 = vcmask 7168
    %s368 = scalar_lea.vmem %s1, 45
    %369 = vst.msk [vmem:[%s368] sm:$0x1] %vm367, %v366
    %s370 = scalar_lea.vmem %s1, 108
    %371 = vst.msk [vmem:[%s370] sm:$0x2] %vm367, %v366
    %v372 = vld [vmem:[#allocation0] sm:$0x3]
    %373 = vrot.lane.b32.xlu0 %v372, 82
    %v374 = vpop.permute.xlu0 %373
    %vm375 = vcmask 7168
    %s376 = scalar_lea.vmem %s1, 46
    %377 = vst.msk [vmem:[%s376] sm:$0x1] %vm375, %v374
    %s378 = scalar_lea.vmem %s1, 109
    %379 = vst.msk [vmem:[%s378] sm:$0x2] %vm375, %v374
    %v380 = vld [vmem:[#allocation0] sm:$0x3]
    %381 = vrot.lane.b32.xlu0 %v380, 81
    %v382 = vpop.permute.xlu0 %381
    %vm383 = vcmask 7168
    %s384 = scalar_lea.vmem %s1, 47
    %385 = vst.msk [vmem:[%s384] sm:$0x1] %vm383, %v382
    %s386 = scalar_lea.vmem %s1, 110
    %387 = vst.msk [vmem:[%s386] sm:$0x2] %vm383, %v382
    %v388 = vld [vmem:[#allocation0] sm:$0x3]
    %389 = vrot.lane.b32.xlu0 %v388, 80
    %v390 = vpop.permute.xlu0 %389
    %vm391 = vcmask 7168
    %s392 = scalar_lea.vmem %s1, 48
    %393 = vst.msk [vmem:[%s392] sm:$0x1] %vm391, %v390
    %s394 = scalar_lea.vmem %s1, 111
    %395 = vst.msk [vmem:[%s394] sm:$0x2] %vm391, %v390
    %v396 = vld [vmem:[#allocation0] sm:$0x3]
    %397 = vrot.lane.b32.xlu0 %v396, 79
    %v398 = vpop.permute.xlu0 %397
    %vm399 = vcmask 7168
    %s400 = scalar_lea.vmem %s1, 49
    %401 = vst.msk [vmem:[%s400] sm:$0x1] %vm399, %v398
    %s402 = scalar_lea.vmem %s1, 112
    %403 = vst.msk [vmem:[%s402] sm:$0x2] %vm399, %v398
    %v404 = vld [vmem:[#allocation0] sm:$0x3]
    %405 = vrot.lane.b32.xlu0 %v404, 78
    %v406 = vpop.permute.xlu0 %405
    %vm407 = vcmask 7168
    %s408 = scalar_lea.vmem %s1, 50
    %409 = vst.msk [vmem:[%s408] sm:$0x1] %vm407, %v406
    %s410 = scalar_lea.vmem %s1, 113
    %411 = vst.msk [vmem:[%s410] sm:$0x2] %vm407, %v406
    %v412 = vld [vmem:[#allocation0] sm:$0x3]
    %413 = vrot.lane.b32.xlu0 %v412, 77
    %v414 = vpop.permute.xlu0 %413
    %vm415 = vcmask 7168
    %s416 = scalar_lea.vmem %s1, 51
    %417 = vst.msk [vmem:[%s416] sm:$0x1] %vm415, %v414
    %s418 = scalar_lea.vmem %s1, 114
    %419 = vst.msk [vmem:[%s418] sm:$0x2] %vm415, %v414
    %v420 = vld [vmem:[#allocation0] sm:$0x3]
    %421 = vrot.lane.b32.xlu0 %v420, 76
    %v422 = vpop.permute.xlu0 %421
    %vm423 = vcmask 7168
    %s424 = scalar_lea.vmem %s1, 52
    %425 = vst.msk [vmem:[%s424] sm:$0x1] %vm423, %v422
    %s426 = scalar_lea.vmem %s1, 115
    %427 = vst.msk [vmem:[%s426] sm:$0x2] %vm423, %v422
    %v428 = vld [vmem:[#allocation0] sm:$0x3]
    %429 = vrot.lane.b32.xlu0 %v428, 75
    %v430 = vpop.permute.xlu0 %429
    %vm431 = vcmask 7168
    %s432 = scalar_lea.vmem %s1, 53
    %433 = vst.msk [vmem:[%s432] sm:$0x1] %vm431, %v430
    %s434 = scalar_lea.vmem %s1, 116
    %435 = vst.msk [vmem:[%s434] sm:$0x2] %vm431, %v430
    %v436 = vld [vmem:[#allocation0] sm:$0x3]
    %437 = vrot.lane.b32.xlu0 %v436, 74
    %v438 = vpop.permute.xlu0 %437
    %vm439 = vcmask 7168
    %s440 = scalar_lea.vmem %s1, 54
    %441 = vst.msk [vmem:[%s440] sm:$0x1] %vm439, %v438
    %s442 = scalar_lea.vmem %s1, 117
    %443 = vst.msk [vmem:[%s442] sm:$0x2] %vm439, %v438
    %v444 = vld [vmem:[#allocation0] sm:$0x3]
    %445 = vrot.lane.b32.xlu0 %v444, 73
    %v446 = vpop.permute.xlu0 %445
    %vm447 = vcmask 7168
    %s448 = scalar_lea.vmem %s1, 55
    %449 = vst.msk [vmem:[%s448] sm:$0x1] %vm447, %v446
    %s450 = scalar_lea.vmem %s1, 118
    %451 = vst.msk [vmem:[%s450] sm:$0x2] %vm447, %v446
    %v452 = vld [vmem:[#allocation0] sm:$0x3]
    %453 = vrot.lane.b32.xlu0 %v452, 72
    %v454 = vpop.permute.xlu0 %453
    %vm455 = vcmask 7168
    %s456 = scalar_lea.vmem %s1, 56
    %457 = vst.msk [vmem:[%s456] sm:$0x1] %vm455, %v454
    %s458 = scalar_lea.vmem %s1, 119
    %459 = vst.msk [vmem:[%s458] sm:$0x2] %vm455, %v454
    %v460 = vld [vmem:[#allocation0] sm:$0x3]
    %461 = vrot.lane.b32.xlu0 %v460, 71
    %v462 = vpop.permute.xlu0 %461
    %vm463 = vcmask 7168
    %s464 = scalar_lea.vmem %s1, 57
    %465 = vst.msk [vmem:[%s464] sm:$0x1] %vm463, %v462
    %s466 = scalar_lea.vmem %s1, 120
    %467 = vst.msk [vmem:[%s466] sm:$0x2] %vm463, %v462
    %v468 = vld [vmem:[#allocation0] sm:$0x3]
    %469 = vrot.lane.b32.xlu0 %v468, 70
    %v470 = vpop.permute.xlu0 %469
    %vm471 = vcmask 7168
    %s472 = scalar_lea.vmem %s1, 58
    %473 = vst.msk [vmem:[%s472] sm:$0x1] %vm471, %v470
    %s474 = scalar_lea.vmem %s1, 121
    %475 = vst.msk [vmem:[%s474] sm:$0x2] %vm471, %v470
    %v476 = vld [vmem:[#allocation0] sm:$0x3]
    %477 = vrot.lane.b32.xlu0 %v476, 69
    %v478 = vpop.permute.xlu0 %477
    %vm479 = vcmask 7168
    %s480 = scalar_lea.vmem %s1, 59
    %481 = vst.msk [vmem:[%s480] sm:$0x1] %vm479, %v478
    %s482 = scalar_lea.vmem %s1, 122
    %483 = vst.msk [vmem:[%s482] sm:$0x2] %vm479, %v478
    %v484 = vld [vmem:[#allocation0] sm:$0x3]
    %485 = vrot.lane.b32.xlu0 %v484, 68
    %v486 = vpop.permute.xlu0 %485
    %vm487 = vcmask 7168
    %s488 = scalar_lea.vmem %s1, 60
    %489 = vst.msk [vmem:[%s488] sm:$0x1] %vm487, %v486
    %s490 = scalar_lea.vmem %s1, 123
    %491 = vst.msk [vmem:[%s490] sm:$0x2] %vm487, %v486
    %v492 = vld [vmem:[#allocation0] sm:$0x3]
    %493 = vrot.lane.b32.xlu0 %v492, 67
    %v494 = vpop.permute.xlu0 %493
    %vm495 = vcmask 7168
    %s496 = scalar_lea.vmem %s1, 61
    %497 = vst.msk [vmem:[%s496] sm:$0x1] %vm495, %v494
    %s498 = scalar_lea.vmem %s1, 124
    %499 = vst.msk [vmem:[%s498] sm:$0x2] %vm495, %v494
    %v500 = vld [vmem:[#allocation0] sm:$0x3]
    %501 = vrot.lane.b32.xlu0 %v500, 66
    %v502 = vpop.permute.xlu0 %501
    %vm503 = vcmask 7168
    %s504 = scalar_lea.vmem %s1, 62
    %505 = vst.msk [vmem:[%s504] sm:$0x1] %vm503, %v502
    %s506 = scalar_lea.vmem %s1, 125
    %507 = vst.msk [vmem:[%s506] sm:$0x2] %vm503, %v502
    %v508 = vld [vmem:[#allocation0] sm:$0x3]
    %509 = vrot.lane.b32.xlu0 %v508, 65
    %v510 = vpop.permute.xlu0 %509
    %vm511 = vcmask 7168
    %s512 = scalar_lea.vmem %s1, 63
    %513 = vst.msk [vmem:[%s512] sm:$0x1] %vm511, %v510
    %s514 = scalar_lea.vmem %s1, 126
    %515 = vst.msk [vmem:[%s514] sm:$0x2] %vm511, %v510

// kernel: mamba_layer_forward.1
$region0: #{mamba_layer_forward.1}
  #allocation0 [shape = 'u32[]', space=smem, size = 0x4, offset = 0x4, fixed_abs, tag = 'smem constant byte address 0x4 - core index']
  #allocation1 [shape = 'u32[144,128]{1,0:T(1,128)}', space=vmem, size = 0x12000, scoped, tag = 'internal scratch']
  #allocation2 [shape = 'f32[128,64]{1,0:T(8,128)}', space=vmem, size = 0x10000, scoped, tag = 'scratch operand']
  #allocation3 [shape = 'f32[128,64]{1,0:T(8,128)}', space=vmem, size = 0x10000, scoped, tag = 'scratch operand']
  #allocation4 [shape = 'f32[128,16]{1,0:T(8,128)}', space=vmem, size = 0x10000, scoped, tag = 'scratch operand']
  #allocation5 [shape = 'f32[128,16]{1,0:T(8,128)}', space=vmem, size = 0x10000, scoped, tag = 'scratch operand']
  #allocation6 [shape = 'f32[128,64]{1,0:T(8,128)}', space=vmem, size = 0x10000, scoped, tag = 'scratch operand']
  #allocation7 [shape = 'f32[128,64]{1,0:T(8,128)}', space=vmem, size = 0x10000, scoped, tag = 'scratch operand']
  %s0 = inlined_call_operand.vmem [shape: f32[128,32], index: 0, kind: input, shape index: {}]
  %s1 = inlined_call_operand.vmem [shape: s32[128,1], index: 1, kind: input, shape index: {}]
  %s2 = inlined_call_operand.vmem [shape: f32[1,32], index: 2, kind: input, shape index: {}]
  %s3 = inlined_call_operand.vmem [shape: f32[1,32], index: 3, kind: input, shape index: {}]
  %s4 = inlined_call_operand.vmem [shape: bf16[32,128], index: 4, kind: input, shape index: {}]
  %s5 = inlined_call_operand.hbm [shape: f32[4,64], index: 5, kind: input, shape index: {}]
  %s6 = inlined_call_operand.hbm [shape: f32[1,64], index: 6, kind: input, shape index: {}]
  %s7 = inlined_call_operand.hbm [shape: bf16[64,96], index: 7, kind: input, shape index: {}]
  %s8 = inlined_call_operand.hbm [shape: f32[1,64], index: 8, kind: input, shape index: {}]
  %s9 = inlined_call_operand.hbm [shape: f32[1,1024], index: 9, kind: input, shape index: {}]
  %s10 = inlined_call_operand.hbm [shape: bf16[16,1024], index: 10, kind: input, shape index: {}]
  %s11 = inlined_call_operand.hbm [shape: bf16[64,1024], index: 11, kind: input, shape index: {}]
  %s12 = inlined_call_operand.hbm [shape: f32[1,64], index: 12, kind: input, shape index: {}]
  %s13 = inlined_call_operand.hbm [shape: bf16[32,64], index: 13, kind: input, shape index: {}]
  %s14 = inlined_call_operand.vmem [shape: f32[32,128], index: 14, kind: output, shape index: {}]
  %s15 = sld [smem:[#allocation0]]
  $region109: #{mamba_layer_forward.1} parent=0
    _
  %s17 = ssub.s32 1, %s15
  %s18 = scalar_select 0, %s17, %s15
  $region1: #{mamba_layer_forward.1} parent=0
    #allocation8 [shape = 'u8[2048]{0}', space=vmem, size = 0x800, scoped, tag = 'input window, operand 5, single buffered']
    #allocation9 [shape = 's32[1]{0}', space=sflag, size = 0x4, scoped, tag = 'scoped memory for mamba_layer_forward.1']
    #allocation10 [shape = 'u8[512]{0}', space=vmem, size = 0x400, scoped, tag = 'input window, operand 6, single buffered']
    #allocation11 [shape = 's32[1]{0}', space=sflag, size = 0x4, scoped, tag = 'scoped memory for mamba_layer_forward.1']
    #allocation12 [shape = 'u8[16384]{0}', space=vmem, size = 0x4000, scoped, tag = 'input window, operand 7, single buffered']
    #allocation13 [shape = 'u8[512]{0}', space=vmem, size = 0x400, scoped, tag = 'input window, operand 8, single buffered']
    #allocation14 [shape = 's32[1]{0}', space=sflag, size = 0x4, scoped, tag = 'scoped memory for mamba_layer_forward.1']
    #allocation15 [shape = 'u8[4096]{0}', space=vmem, size = 0x1000, scoped, tag = 'input window, operand 9, single buffered']
    #allocation16 [shape = 'u8[32768]{0}', space=vmem, size = 0x8000, scoped, tag = 'input window, operand 10, single buffered']
    #allocation17 [shape = 's32[1]{0}', space=sflag, size = 0x4, scoped, tag = 'scoped memory for mamba_layer_forward.1']
    #allocation18 [shape = 'u8[131072]{0}', space=vmem, size = 0x20000, scoped, tag = 'input window, operand 11, single buffered']
    #allocation19 [shape = 'u8[512]{0}', space=vmem, size = 0x400, scoped, tag = 'input window, operand 12, single buffered']
    #allocation20 [shape = 's32[1]{0}', space=sflag, size = 0x4, scoped, tag = 'scoped memory for mamba_layer_forward.1']
    #allocation21 [shape = 'u8[8192]{0}', space=vmem, size = 0x2000, scoped, tag = 'input window, operand 13, single buffered']
    %19 = vsyncpa [#allocation9], 0
    %20 = vsyncpa [#allocation11], 0
    %21 = vsyncpa [#allocation14], 0
    %22 = vsyncpa [#allocation17], 0
    %23 = vsyncpa [#allocation20], 0
    // Predicated region
    $region2: #{mamba_layer_forward.1} parent=1 // pred_check
      _
    $region3: #{mamba_layer_forward.1} parent=1 // pred_check_branch
      %25 = sbr.rel (0) target = $region5
    $region4: #{mamba_layer_forward.1} parent=1 // pred_region
      _
    $region5: #{mamba_layer_forward.1} parent=1 // pred_fallthru
      _
    // Predicated region
    $region6: #{mamba_layer_forward.1} parent=1 // pred_check
      _
    $region7: #{mamba_layer_forward.1} parent=1 // pred_check_branch
      %27 = sbr.rel (0) target = $region9
    $region8: #{mamba_layer_forward.1} parent=1 // pred_region
      _
    $region9: #{mamba_layer_forward.1} parent=1 // pred_fallthru
      _
    // Predicated region
    $region10: #{mamba_layer_forward.1} parent=1 // pred_check
      _
    $region11: #{mamba_layer_forward.1} parent=1 // pred_check_branch
      %29 = sbr.rel (0) target = $region13
    $region12: #{mamba_layer_forward.1} parent=1 // pred_region
      _
    $region13: #{mamba_layer_forward.1} parent=1 // pred_fallthru
      _
    // Predicated region
    $region14: #{mamba_layer_forward.1} parent=1 // pred_check
      _
    $region15: #{mamba_layer_forward.1} parent=1 // pred_check_branch
      %31 = sbr.rel (0) target = $region17
    $region16: #{mamba_layer_forward.1} parent=1 // pred_region
      _
    $region17: #{mamba_layer_forward.1} parent=1 // pred_fallthru
      _
    // Predicated region
    $region18: #{mamba_layer_forward.1} parent=1 // pred_check
      _
    $region19: #{mamba_layer_forward.1} parent=1 // pred_check_branch
      %33 = sbr.rel (0) target = $region21
    $region20: #{mamba_layer_forward.1} parent=1 // pred_region
      _
    $region21: #{mamba_layer_forward.1} parent=1 // pred_fallthru
      _
    // Predicated region
    $region22: #{mamba_layer_forward.1} parent=1 // pred_check
      _
    $region23: #{mamba_layer_forward.1} parent=1 // pred_check_branch
      %35 = sbr.rel (0) target = $region25
    $region24: #{mamba_layer_forward.1} parent=1 // pred_region
      %s37 = ssub.s32 64, 64
      %38 = vsyncadd [#allocation9], %s37
      %s40 = sshll.u32 [#allocation8], 4
      %s41 = int_to_ptr.vmem [resolvable:$true] %s40
      %43 = dma.hbm_to_vmem [thread:$0]  %s5, 64, %s41, [#allocation9]
    $region25: #{mamba_layer_forward.1} parent=1 // pred_fallthru
      _
    // Predicated region
    $region26: #{mamba_layer_forward.1} parent=1 // pred_check
      _
    $region27: #{mamba_layer_forward.1} parent=1 // pred_check_branch
      %45 = sbr.rel (0) target = $region29
    $region28: #{mamba_layer_forward.1} parent=1 // pred_region
      %s47 = ssub.s32 16, 16
      %48 = vsyncadd [#allocation11], %s47
      %s50 = sshll.u32 [#allocation10], 4
      %s51 = int_to_ptr.vmem [resolvable:$true] %s50
      %53 = dma.hbm_to_vmem [thread:$0]  %s6, 16, %s51, [#allocation11]
    $region29: #{mamba_layer_forward.1} parent=1 // pred_fallthru
      _
    // Predicated region
    $region30: #{mamba_layer_forward.1} parent=1 // pred_check
      _
    $region31: #{mamba_layer_forward.1} parent=1 // pred_check_branch
      %55 = sbr.rel (0) target = $region33
    $region32: #{mamba_layer_forward.1} parent=1 // pred_region
      %s57 = ssub.s32 512, 512
      %58 = vsyncadd [#allocation11], %s57
      %s59 = sshll.u32 [#allocation12], 4
      %s60 = int_to_ptr.vmem [resolvable:$true] %s59
      %65 = dma.hbm_to_vmem [thread:$0]  %s7, 512, %s60, [#allocation11], 64, 64, 4
    $region33: #{mamba_layer_forward.1} parent=1 // pred_fallthru
      _
    // Predicated region
    $region34: #{mamba_layer_forward.1} parent=1 // pred_check
      _
    $region35: #{mamba_layer_forward.1} parent=1 // pred_check_branch
      %67 = sbr.rel (0) target = $region37
    $region36: #{mamba_layer_forward.1} parent=1 // pred_region
      %s69 = ssub.s32 16, 16
      %70 = vsyncadd [#allocation14], %s69
      %s72 = sshll.u32 [#allocation13], 4
      %s73 = int_to_ptr.vmem [resolvable:$true] %s72
      %75 = dma.hbm_to_vmem [thread:$0]  %s8, 16, %s73, [#allocation14]
    $region37: #{mamba_layer_forward.1} parent=1 // pred_fallthru
      _
    // Predicated region
    $region38: #{mamba_layer_forward.1} parent=1 // pred_check
      _
    $region39: #{mamba_layer_forward.1} parent=1 // pred_check_branch
      %77 = sbr.rel (0) target = $region41
    $region40: #{mamba_layer_forward.1} parent=1 // pred_region
      %s79 = ssub.s32 128, 128
      %80 = vsyncadd [#allocation14], %s79
      %s82 = sshll.u32 [#allocation15], 4
      %s83 = int_to_ptr.vmem [resolvable:$true] %s82
      %85 = dma.hbm_to_vmem [thread:$0]  %s9, 128, %s83, [#allocation14]
    $region41: #{mamba_layer_forward.1} parent=1 // pred_fallthru
      _
    // Predicated region
    $region42: #{mamba_layer_forward.1} parent=1 // pred_check
      _
    $region43: #{mamba_layer_forward.1} parent=1 // pred_check_branch
      %87 = sbr.rel (0) target = $region45
    $region44: #{mamba_layer_forward.1} parent=1 // pred_region
      %s89 = ssub.s32 1024, 1024
      %90 = vsyncadd [#allocation17], %s89
      %s91 = sshll.u32 [#allocation16], 4
      %s92 = int_to_ptr.vmem [resolvable:$true] %s91
      %97 = dma.hbm_to_vmem [thread:$0]  %s10, 1024, %s92, [#allocation17], 512, 512, 32
    $region45: #{mamba_layer_forward.1} parent=1 // pred_fallthru
      _
    // Predicated region
    $region46: #{mamba_layer_forward.1} parent=1 // pred_check
      _
    $region47: #{mamba_layer_forward.1} parent=1 // pred_check_branch
      %99 = sbr.rel (0) target = $region49
    $region48: #{mamba_layer_forward.1} parent=1 // pred_region
      %s101 = ssub.s32 4096, 4096
      %102 = vsyncadd [#allocation17], %s101
      %s103 = sshll.u32 [#allocation18], 4
      %s104 = int_to_ptr.vmem [resolvable:$true] %s103
      %109 = dma.hbm_to_vmem [thread:$0]  %s11, 4096, %s104, [#allocation17], 512, 512, 32
    $region49: #{mamba_layer_forward.1} parent=1 // pred_fallthru
      _
    // Predicated region
    $region50: #{mamba_layer_forward.1} parent=1 // pred_check
      _
    $region51: #{mamba_layer_forward.1} parent=1 // pred_check_branch
      %111 = sbr.rel (0) target = $region53
    $region52: #{mamba_layer_forward.1} parent=1 // pred_region
      %s113 = ssub.s32 16, 16
      %114 = vsyncadd [#allocation20], %s113
      %s116 = sshll.u32 [#allocation19], 4
      %s117 = int_to_ptr.vmem [resolvable:$true] %s116
      %119 = dma.hbm_to_vmem [thread:$0]  %s12, 16, %s117, [#allocation20]
    $region53: #{mamba_layer_forward.1} parent=1 // pred_fallthru
      _
    // Predicated region
    $region54: #{mamba_layer_forward.1} parent=1 // pred_check
      _
    $region55: #{mamba_layer_forward.1} parent=1 // pred_check_branch
      %121 = sbr.rel (0) target = $region57
    $region56: #{mamba_layer_forward.1} parent=1 // pred_region
      %s123 = ssub.s32 256, 256
      %124 = vsyncadd [#allocation20], %s123
      %s125 = sshll.u32 [#allocation21], 4
      %s126 = int_to_ptr.vmem [resolvable:$true] %s125
      %131 = dma.hbm_to_vmem [thread:$0]  %s13, 256, %s126, [#allocation20], 64, 64, 4
    $region57: #{mamba_layer_forward.1} parent=1 // pred_fallthru
      _
    // Predicated region
    $region58: #{mamba_layer_forward.1} parent=1 // pred_check
      _
    $region59: #{mamba_layer_forward.1} parent=1 // pred_check_branch
      %133 = sbr.rel (0) target = $region61
    $region60: #{mamba_layer_forward.1} parent=1 // pred_region
      %134 = dma.done [#allocation9], 64
    $region61: #{mamba_layer_forward.1} parent=1 // pred_fallthru
      _
    // Predicated region
    $region62: #{mamba_layer_forward.1} parent=1 // pred_check
      _
    $region63: #{mamba_layer_forward.1} parent=1 // pred_check_branch
      %136 = sbr.rel (0) target = $region65
    $region64: #{mamba_layer_forward.1} parent=1 // pred_region
      %137 = dma.done [#allocation11], 16
    $region65: #{mamba_layer_forward.1} parent=1 // pred_fallthru
      _
    // Predicated region
    $region66: #{mamba_layer_forward.1} parent=1 // pred_check
      _
    $region67: #{mamba_layer_forward.1} parent=1 // pred_check_branch
      %139 = sbr.rel (0) target = $region69
    $region68: #{mamba_layer_forward.1} parent=1 // pred_region
      %140 = dma.done [#allocation11], 512
    $region69: #{mamba_layer_forward.1} parent=1 // pred_fallthru
      _
    // Predicated region
    $region70: #{mamba_layer_forward.1} parent=1 // pred_check
      _
    $region71: #{mamba_layer_forward.1} parent=1 // pred_check_branch
      %142 = sbr.rel (0) target = $region73
    $region72: #{mamba_layer_forward.1} parent=1 // pred_region
      %143 = dma.done [#allocation14], 16
    $region73: #{mamba_layer_forward.1} parent=1 // pred_fallthru
      _
    // Predicated region
    $region74: #{mamba_layer_forward.1} parent=1 // pred_check
      _
    $region75: #{mamba_layer_forward.1} parent=1 // pred_check_branch
      %145 = sbr.rel (0) target = $region77
    $region76: #{mamba_layer_forward.1} parent=1 // pred_region
      %146 = dma.done [#allocation14], 128
    $region77: #{mamba_layer_forward.1} parent=1 // pred_fallthru
      _
    // Predicated region
    $region78: #{mamba_layer_forward.1} parent=1 // pred_check
      _
    $region79: #{mamba_layer_forward.1} parent=1 // pred_check_branch
      %148 = sbr.rel (0) target = $region81
    $region80: #{mamba_layer_forward.1} parent=1 // pred_region
      %149 = dma.done [#allocation17], 1024
    $region81: #{mamba_layer_forward.1} parent=1 // pred_fallthru
      _
    // Predicated region
    $region82: #{mamba_layer_forward.1} parent=1 // pred_check
      _
    $region83: #{mamba_layer_forward.1} parent=1 // pred_check_branch
      %151 = sbr.rel (0) target = $region85
    $region84: #{mamba_layer_forward.1} parent=1 // pred_region
      %152 = dma.done [#allocation17], 4096
    $region85: #{mamba_layer_forward.1} parent=1 // pred_fallthru
      _
    // Predicated region
    $region86: #{mamba_layer_forward.1} parent=1 // pred_check
      _
    $region87: #{mamba_layer_forward.1} parent=1 // pred_check_branch
      %154 = sbr.rel (0) target = $region89
    $region88: #{mamba_layer_forward.1} parent=1 // pred_region
      %155 = dma.done [#allocation20], 16
    $region89: #{mamba_layer_forward.1} parent=1 // pred_fallthru
      _
    // Predicated region
    $region90: #{mamba_layer_forward.1} parent=1 // pred_check
      _
    $region91: #{mamba_layer_forward.1} parent=1 // pred_check_branch
      %157 = sbr.rel (0) target = $region93
    $region92: #{mamba_layer_forward.1} parent=1 // pred_region
      %158 = dma.done [#allocation20], 256
    $region93: #{mamba_layer_forward.1} parent=1 // pred_fallthru
      _
    %v160 = vld [vmem:[%s0] sm:$0xff]
    %v161 = vld [vmem:[%s0 + $0x8] sm:$0xff]
    %v162 = vld [vmem:[%s0 + $0x10] sm:$0xff]
    %v163 = vld [vmem:[%s0 + $0x18] sm:$0xff]
    %v164 = vld [vmem:[%s0 + $0x20] sm:$0xff]
    %v165 = vld [vmem:[%s0 + $0x28] sm:$0xff]
    %v166 = vld [vmem:[%s0 + $0x30] sm:$0xff]
    %v167 = vld [vmem:[%s0 + $0x38] sm:$0xff]
    %v168 = vld [vmem:[%s0 + $0x40] sm:$0xff]
    %v169 = vld [vmem:[%s0 + $0x48] sm:$0xff]
    %v170 = vld [vmem:[%s0 + $0x50] sm:$0xff]
    %v171 = vld [vmem:[%s0 + $0x58] sm:$0xff]
    %v172 = vld [vmem:[%s0 + $0x60] sm:$0xff]
    %v173 = vld [vmem:[%s0 + $0x68] sm:$0xff]
    %v174 = vld [vmem:[%s0 + $0x70] sm:$0xff]
    %v175 = vld [vmem:[%s0 + $0x78] sm:$0xff]
    %v176 = vld [vmem:[%s1] sm:$0xff]
    %v177 = vld [vmem:[%s1 + $0x8] sm:$0xff]
    %v178 = vld [vmem:[%s1 + $0x10] sm:$0xff]
    %v179 = vld [vmem:[%s1 + $0x18] sm:$0xff]
    %v180 = vld [vmem:[%s1 + $0x20] sm:$0xff]
    %v181 = vld [vmem:[%s1 + $0x28] sm:$0xff]
    %v182 = vld [vmem:[%s1 + $0x30] sm:$0xff]
    %v183 = vld [vmem:[%s1 + $0x38] sm:$0xff]
    %v184 = vld [vmem:[%s1 + $0x40] sm:$0xff]
    %v185 = vld [vmem:[%s1 + $0x48] sm:$0xff]
    %v186 = vld [vmem:[%s1 + $0x50] sm:$0xff]
    %v187 = vld [vmem:[%s1 + $0x58] sm:$0xff]
    %v188 = vld [vmem:[%s1 + $0x60] sm:$0xff]
    %v189 = vld [vmem:[%s1 + $0x68] sm:$0xff]
    %v190 = vld [vmem:[%s1 + $0x70] sm:$0xff]
    %v191 = vld [vmem:[%s1 + $0x78] sm:$0xff]
    %vm192 = vcmask 261120
    %v193 = vsel %vm192, %v160, 0.0
    %194 = vadd.xlane.f32.xlu0 %v193
    %v195 = vpop.xlane.xlu0 %194
    %v196 = vsel %vm192, %v161, 0.0
    %197 = vadd.xlane.f32.xlu0 %v196
    %v198 = vpop.xlane.xlu0 %197
    %v199 = vsel %vm192, %v162, 0.0
    %200 = vadd.xlane.f32.xlu0 %v199
    %v201 = vpop.xlane.xlu0 %200
    %v202 = vsel %vm192, %v163, 0.0
    %203 = vadd.xlane.f32.xlu0 %v202
    %v204 = vpop.xlane.xlu0 %203
    %v205 = vsel %vm192, %v164, 0.0
    %206 = vadd.xlane.f32.xlu0 %v205
    %v207 = vpop.xlane.xlu0 %206
    %v208 = vsel %vm192, %v165, 0.0
    %209 = vadd.xlane.f32.xlu0 %v208
    %v210 = vpop.xlane.xlu0 %209
    %v211 = vsel %vm192, %v166, 0.0
    %212 = vadd.xlane.f32.xlu0 %v211
    %v213 = vpop.xlane.xlu0 %212
    %v214 = vsel %vm192, %v167, 0.0
    %215 = vadd.xlane.f32.xlu0 %v214
    %v216 = vpop.xlane.xlu0 %215
    %v217 = vsel %vm192, %v168, 0.0
    %218 = vadd.xlane.f32.xlu0 %v217
    %v219 = vpop.xlane.xlu0 %218
    %v220 = vsel %vm192, %v169, 0.0
    %221 = vadd.xlane.f32.xlu0 %v220
    %v222 = vpop.xlane.xlu0 %221
    %v223 = vsel %vm192, %v170, 0.0
    %224 = vadd.xlane.f32.xlu0 %v223
    %v225 = vpop.xlane.xlu0 %224
    %v226 = vsel %vm192, %v171, 0.0
    %227 = vadd.xlane.f32.xlu0 %v226
    %v228 = vpop.xlane.xlu0 %227
    %v229 = vsel %vm192, %v172, 0.0
    %230 = vadd.xlane.f32.xlu0 %v229
    %v231 = vpop.xlane.xlu0 %230
    %v232 = vsel %vm192, %v173, 0.0
    %233 = vadd.xlane.f32.xlu0 %v232
    %v234 = vpop.xlane.xlu0 %233
    %v235 = vsel %vm192, %v174, 0.0
    %236 = vadd.xlane.f32.xlu0 %v235
    %v237 = vpop.xlane.xlu0 %236
    %v238 = vsel %vm192, %v175, 0.0
    %239 = vadd.xlane.f32.xlu0 %v238
    %v240 = vpop.xlane.xlu0 %239
    %v241 = vrcp.pop 32.0
    %v242 = vmul.f32 %v195, %v241
    %v243 = vmul.f32 %v198, %v241
    %v244 = vmul.f32 %v201, %v241
    %v245 = vmul.f32 %v204, %v241
    %v246 = vmul.f32 %v207, %v241
    %v247 = vmul.f32 %v210, %v241
    %v248 = vmul.f32 %v213, %v241
    %v249 = vmul.f32 %v216, %v241
    %v250 = vmul.f32 %v219, %v241
    %v251 = vmul.f32 %v222, %v241
    %v252 = vmul.f32 %v225, %v241
    %v253 = vmul.f32 %v228, %v241
    %v254 = vmul.f32 %v231, %v241
    %v255 = vmul.f32 %v234, %v241
    %v256 = vmul.f32 %v237, %v241
    %v257 = vmul.f32 %v240, %v241
    %v258 = vsub.f32 %v160, %v242
    %v259 = vsub.f32 %v161, %v243
    %v260 = vsub.f32 %v162, %v244
    %v261 = vsub.f32 %v163, %v245
    %v262 = vsub.f32 %v164, %v246
    %v263 = vsub.f32 %v165, %v247
    %v264 = vsub.f32 %v166, %v248
    %v265 = vsub.f32 %v167, %v249
    %v266 = vsub.f32 %v168, %v250
    %v267 = vsub.f32 %v169, %v251
    %v268 = vsub.f32 %v170, %v252
    %v269 = vsub.f32 %v171, %v253
    %v270 = vsub.f32 %v172, %v254
    %v271 = vsub.f32 %v173, %v255
    %v272 = vsub.f32 %v174, %v256
    %v273 = vsub.f32 %v175, %v257
    %v274 = vmul.f32 %v258, %v258
    %v275 = vmul.f32 %v259, %v259
    %v276 = vmul.f32 %v260, %v260
    %v277 = vmul.f32 %v261, %v261
    %v278 = vmul.f32 %v262, %v262
    %v279 = vmul.f32 %v263, %v263
    %v280 = vmul.f32 %v264, %v264
    %v281 = vmul.f32 %v265, %v265
    %v282 = vmul.f32 %v266, %v266
    %v283 = vmul.f32 %v267, %v267
    %v284 = vmul.f32 %v268, %v268
    %v285 = vmul.f32 %v269, %v269
    %v286 = vmul.f32 %v270, %v270
    %v287 = vmul.f32 %v271, %v271
    %v288 = vmul.f32 %v272, %v272
    %v289 = vmul.f32 %v273, %v273
    %v290 = vsel %vm192, %v274, 0.0
    %291 = vadd.xlane.f32.xlu0 %v290
    %v292 = vpop.xlane.xlu0 %291
    %v293 = vsel %vm192, %v275, 0.0
    %294 = vadd.xlane.f32.xlu0 %v293
    %v295 = vpop.xlane.xlu0 %294
    %v296 = vsel %vm192, %v276, 0.0
    %297 = vadd.xlane.f32.xlu0 %v296
    %v298 = vpop.xlane.xlu0 %297
    %v299 = vsel %vm192, %v277, 0.0
    %300 = vadd.xlane.f32.xlu0 %v299
    %v301 = vpop.xlane.xlu0 %300
    %v302 = vsel %vm192, %v278, 0.0
    %303 = vadd.xlane.f32.xlu0 %v302
    %v304 = vpop.xlane.xlu0 %303
    %v305 = vsel %vm192, %v279, 0.0
    %306 = vadd.xlane.f32.xlu0 %v305
    %v307 = vpop.xlane.xlu0 %306
    %v308 = vsel %vm192, %v280, 0.0
    %309 = vadd.xlane.f32.xlu0 %v308
    %v310 = vpop.xlane.xlu0 %309
    %v311 = vsel %vm192, %v281, 0.0
    %312 = vadd.xlane.f32.xlu0 %v311
    %v313 = vpop.xlane.xlu0 %312
    %v314 = vsel %vm192, %v282, 0.0
    %315 = vadd.xlane.f32.xlu0 %v314
    %v316 = vpop.xlane.xlu0 %315
    %v317 = vsel %vm192, %v283, 0.0
    %318 = vadd.xlane.f32.xlu0 %v317
    %v319 = vpop.xlane.xlu0 %318
    %v320 = vsel %vm192, %v284, 0.0
    %321 = vadd.xlane.f32.xlu0 %v320
    %v322 = vpop.xlane.xlu0 %321
    %v323 = vsel %vm192, %v285, 0.0
    %324 = vadd.xlane.f32.xlu0 %v323
    %v325 = vpop.xlane.xlu0 %324
    %v326 = vsel %vm192, %v286, 0.0
    %327 = vadd.xlane.f32.xlu0 %v326
    %v328 = vpop.xlane.xlu0 %327
    %v329 = vsel %vm192, %v287, 0.0
    %330 = vadd.xlane.f32.xlu0 %v329
    %v331 = vpop.xlane.xlu0 %330
    %v332 = vsel %vm192, %v288, 0.0
    %333 = vadd.xlane.f32.xlu0 %v332
    %v334 = vpop.xlane.xlu0 %333
    %v335 = vsel %vm192, %v289, 0.0
    %336 = vadd.xlane.f32.xlu0 %v335
    %v337 = vpop.xlane.xlu0 %336
    %v338 = vmul.f32 %v292, %v241
    %v339 = vmul.f32 %v295, %v241
    %v340 = vmul.f32 %v298, %v241
    %v341 = vmul.f32 %v301, %v241
    %v342 = vmul.f32 %v304, %v241
    %v343 = vmul.f32 %v307, %v241
    %v344 = vmul.f32 %v310, %v241
    %v345 = vmul.f32 %v313, %v241
    %v346 = vmul.f32 %v316, %v241
    %v347 = vmul.f32 %v319, %v241
    %v348 = vmul.f32 %v322, %v241
    %v349 = vmul.f32 %v325, %v241
    %v350 = vmul.f32 %v328, %v241
    %v351 = vmul.f32 %v331, %v241
    %v352 = vmul.f32 %v334, %v241
    %v353 = vmul.f32 %v337, %v241
    %v354 = vadd.f32 %v338, 1e-05
    %v355 = vadd.f32 %v339, 1e-05
    %v356 = vadd.f32 %v340, 1e-05
    %v357 = vadd.f32 %v341, 1e-05
    %v358 = vadd.f32 %v342, 1e-05
    %v359 = vadd.f32 %v343, 1e-05
    %v360 = vadd.f32 %v344, 1e-05
    %v361 = vadd.f32 %v345, 1e-05
    %v362 = vadd.f32 %v346, 1e-05
    %v363 = vadd.f32 %v347, 1e-05
    %v364 = vadd.f32 %v348, 1e-05
    %v365 = vadd.f32 %v349, 1e-05
    %v366 = vadd.f32 %v350, 1e-05
    %v367 = vadd.f32 %v351, 1e-05
    %v368 = vadd.f32 %v352, 1e-05
    %v369 = vadd.f32 %v353, 1e-05
    %v370 = vrsqrt.pop %v354
    %v371 = vrsqrt.pop %v355
    %v372 = vrsqrt.pop %v356
    %v373 = vrsqrt.pop %v357
    %v374 = vrsqrt.pop %v358
    %v375 = vrsqrt.pop %v359
    %v376 = vrsqrt.pop %v360
    %v377 = vrsqrt.pop %v361
    %v378 = vrsqrt.pop %v362
    %v379 = vrsqrt.pop %v363
    %v380 = vrsqrt.pop %v364
    %v381 = vrsqrt.pop %v365
    %v382 = vrsqrt.pop %v366
    %v383 = vrsqrt.pop %v367
    %v384 = vrsqrt.pop %v368
    %v385 = vrsqrt.pop %v369
    %v386 = vmul.f32 %v258, %v370
    %v387 = vmul.f32 %v259, %v371
    %v388 = vmul.f32 %v260, %v372
    %v389 = vmul.f32 %v261, %v373
    %v390 = vmul.f32 %v262, %v374
    %v391 = vmul.f32 %v263, %v375
    %v392 = vmul.f32 %v264, %v376
    %v393 = vmul.f32 %v265, %v377
    %v394 = vmul.f32 %v266, %v378
    %v395 = vmul.f32 %v267, %v379
    %v396 = vmul.f32 %v268, %v380
    %v397 = vmul.f32 %v269, %v381
    %v398 = vmul.f32 %v270, %v382
    %v399 = vmul.f32 %v271, %v383
    %v400 = vmul.f32 %v272, %v384
    %v401 = vmul.f32 %v273, %v385
    %v402 = vld [vmem:[%s2] sm:$0x1]
    %v404 = vlaneseq
    %v405 = vshrl.u32 %v404, 7
    %v406 = vsub.s32 0, %v405
    %v407 = vrot.slane %v402, %v406
    %v409 = vmul.f32 %v386, %v407
    %v410 = vmul.f32 %v387, %v407
    %v411 = vmul.f32 %v388, %v407
    %v412 = vmul.f32 %v389, %v407
    %v413 = vmul.f32 %v390, %v407
    %v414 = vmul.f32 %v391, %v407
    %v415 = vmul.f32 %v392, %v407
    %v416 = vmul.f32 %v393, %v407
    %v417 = vmul.f32 %v394, %v407
    %v418 = vmul.f32 %v395, %v407
    %v419 = vmul.f32 %v396, %v407
    %v420 = vmul.f32 %v397, %v407
    %v421 = vmul.f32 %v398, %v407
    %v422 = vmul.f32 %v399, %v407
    %v423 = vmul.f32 %v400, %v407
    %v424 = vmul.f32 %v401, %v407
    %v425 = vld [vmem:[%s3] sm:$0x1]
    %v427 = vlaneseq
    %v428 = vshrl.u32 %v427, 7
    %v429 = vsub.s32 0, %v428
    %v430 = vrot.slane %v425, %v429
    %v432 = vadd.f32 %v409, %v430
    %v433 = vadd.f32 %v410, %v430
    %v434 = vadd.f32 %v411, %v430
    %v435 = vadd.f32 %v412, %v430
    %v436 = vadd.f32 %v413, %v430
    %v437 = vadd.f32 %v414, %v430
    %v438 = vadd.f32 %v415, %v430
    %v439 = vadd.f32 %v416, %v430
    %v440 = vadd.f32 %v417, %v430
    %v441 = vadd.f32 %v418, %v430
    %v442 = vadd.f32 %v419, %v430
    %v443 = vadd.f32 %v420, %v430
    %v444 = vadd.f32 %v421, %v430
    %v445 = vadd.f32 %v422, %v430
    %v446 = vadd.f32 %v423, %v430
    %v447 = vadd.f32 %v424, %v430
    %v448 = vpack.c.bf16 %v433, %v432
    %v449 = vpack.c.bf16 %v435, %v434
    %v450 = vpack.c.bf16 %v437, %v436
    %v451 = vpack.c.bf16 %v439, %v438
    %v452 = vpack.c.bf16 %v441, %v440
    %v453 = vpack.c.bf16 %v443, %v442
    %v454 = vpack.c.bf16 %v445, %v444
    %v455 = vpack.c.bf16 %v447, %v446
    %v456 = vld [vmem:[%s4] sm:$0xf]
    %v457 = vld [vmem:[%s4 + $0x4] sm:$0xf]
    %v458 = vld [vmem:[%s4 + $0x8] sm:$0xf]
    %v459 = vld [vmem:[%s4 + $0xc] sm:$0xf]
    %v464 = vunpack.c.l.b16 %v456
    %v465 = vunpack.c.l.b16 %v457
    %v466 = vunpack.c.l.b16 %v458
    %v467 = vunpack.c.l.b16 %v459
    %v468 = vpack.c.b16 %v465, %v464
    %v469 = vpack.c.b16 %v467, %v466
    %v473 = vsel %vm192, %v448, 0
    %v476 = vsel %vm192, %v449, 0
    %v479 = vsel %vm192, %v450, 0
    %v482 = vsel %vm192, %v451, 0
    %v485 = vsel %vm192, %v452, 0
    %v488 = vsel %vm192, %v453, 0
    %v491 = vsel %vm192, %v454, 0
    %v494 = vsel %vm192, %v455, 0
    %496 = vmatprep.subr.bf16.mxu0 0
    %497 = vmatpush1.bf16.msra.mxu0 0
    %498 = vmatprep.subr.bf16.mxu0 0
    %499 = vmatpush1.bf16.msra.mxu0 0
    %500 = vmatprep.subr.bf16.mxu0 0
    %501 = vmatpush1.bf16.msra.mxu0 0
    %502 = vmatprep.subr.bf16.mxu0 0
    %503 = vmatpush1.bf16.msra.mxu0 0
    %504 = vmatprep.subr.bf16.mxu0 0
    %505 = vmatpush1.bf16.msra.mxu0 0
    %506 = vmatprep.subr.bf16.mxu0 0
    %507 = vmatpush1.bf16.msra.mxu0 0
    %508 = vmatprep.subr.bf16.mxu0 0
    %509 = vmatpush1.bf16.msra.mxu0 %v469
    %510 = vmatprep.subr.bf16.mxu0 0
    %511 = vmatpush1.bf16.msra.mxu0 %v468
    %512 = vmatprep.subr.bf16.mxu0 0
    %513 = vmatpush2.bf16.msra.mxu0 0
    %514 = vmatprep.subr.bf16.mxu0 0
    %515 = vmatpush2.bf16.msra.mxu0 0
    %516 = vmatprep.subr.bf16.mxu0 0
    %517 = vmatpush2.bf16.msra.mxu0 0
    %518 = vmatprep.subr.bf16.mxu0 0
    %519 = vmatpush2.bf16.msra.mxu0 0
    %520 = vmatprep.subr.bf16.mxu0 0
    %521 = vmatpush2.bf16.msra.mxu0 0
    %522 = vmatprep.subr.bf16.mxu0 0
    %523 = vmatpush2.bf16.msra.mxu0 0
    %524 = vmatprep.subr.bf16.mxu0 0
    %525 = vmatpush2.bf16.msra.mxu0 0
    %526 = vmatprep.subr.bf16.mxu0 0
    %527 = vmatpush2.bf16.msra.mxu0 0
    %528 = vmatprep.mubr.bf16.mxu0 0
    %529 = vmatmul.mubr.bf16.gmra.mxu0 %v473
    %v530 = vpop.f32.mrf.mxu0
    %v531 = vadd.f32 0.0, %v530
    %v532 = vpop.f32.mrf.mxu0
    %v533 = vpop.f32.mrf.mxu0
    %v534 = vadd.f32 0.0, %v533
    %v535 = vpop.f32.mrf.mxu0
    %536 = vmatprep.mubr.bf16.mxu0 0
    %537 = vmatmul.mubr.bf16.gmra.mxu0 %v476
    %v538 = vpop.f32.mrf.mxu0
    %v539 = vadd.f32 0.0, %v538
    %v540 = vpop.f32.mrf.mxu0
    %v541 = vpop.f32.mrf.mxu0
    %v542 = vadd.f32 0.0, %v541
    %v543 = vpop.f32.mrf.mxu0
    %544 = vmatprep.mubr.bf16.mxu0 0
    %545 = vmatmul.mubr.bf16.gmra.mxu0 %v479
    %v546 = vpop.f32.mrf.mxu0
    %v547 = vadd.f32 0.0, %v546
    %v548 = vpop.f32.mrf.mxu0
    %v549 = vpop.f32.mrf.mxu0
    %v550 = vadd.f32 0.0, %v549
    %v551 = vpop.f32.mrf.mxu0
    %552 = vmatprep.mubr.bf16.mxu0 0
    %553 = vmatmul.mubr.bf16.gmra.mxu0 %v482
    %v554 = vpop.f32.mrf.mxu0
    %v555 = vadd.f32 0.0, %v554
    %v556 = vpop.f32.mrf.mxu0
    %v557 = vpop.f32.mrf.mxu0
    %v558 = vadd.f32 0.0, %v557
    %v559 = vpop.f32.mrf.mxu0
    %560 = vmatprep.mubr.bf16.mxu0 0
    %561 = vmatmul.mubr.bf16.gmra.mxu0 %v485
    %v562 = vpop.f32.mrf.mxu0
    %v563 = vadd.f32 0.0, %v562
    %v564 = vpop.f32.mrf.mxu0
    %v565 = vpop.f32.mrf.mxu0
    %v566 = vadd.f32 0.0, %v565
    %v567 = vpop.f32.mrf.mxu0
    %568 = vmatprep.mubr.bf16.mxu0 0
    %569 = vmatmul.mubr.bf16.gmra.mxu0 %v488
    %v570 = vpop.f32.mrf.mxu0
    %v571 = vadd.f32 0.0, %v570
    %v572 = vpop.f32.mrf.mxu0
    %v573 = vpop.f32.mrf.mxu0
    %v574 = vadd.f32 0.0, %v573
    %v575 = vpop.f32.mrf.mxu0
    %576 = vmatprep.mubr.bf16.mxu0 0
    %577 = vmatmul.mubr.bf16.gmra.mxu0 %v491
    %v578 = vpop.f32.mrf.mxu0
    %v579 = vadd.f32 0.0, %v578
    %v580 = vpop.f32.mrf.mxu0
    %v581 = vpop.f32.mrf.mxu0
    %v582 = vadd.f32 0.0, %v581
    %v583 = vpop.f32.mrf.mxu0
    %584 = vmatprep.mubr.bf16.mxu0 0
    %585 = vmatmul.mubr.bf16.gmra.mxu0 %v494
    %v586 = vpop.f32.mrf.mxu0
    %v587 = vadd.f32 0.0, %v586
    %v588 = vpop.f32.mrf.mxu0
    %v589 = vpop.f32.mrf.mxu0
    %v590 = vadd.f32 0.0, %v589
    %v591 = vpop.f32.mrf.mxu0
    %592 = vdwg.mxu0
    %v593 = vxor.u32 %v531, 2147483648
    %v594 = vxor.u32 %v534, 2147483648
    %v595 = vxor.u32 %v539, 2147483648
    %v596 = vxor.u32 %v542, 2147483648
    %v597 = vxor.u32 %v547, 2147483648
    %v598 = vxor.u32 %v550, 2147483648
    %v599 = vxor.u32 %v555, 2147483648
    %v600 = vxor.u32 %v558, 2147483648
    %v601 = vxor.u32 %v563, 2147483648
    %v602 = vxor.u32 %v566, 2147483648
    %v603 = vxor.u32 %v571, 2147483648
    %v604 = vxor.u32 %v574, 2147483648
    %v605 = vxor.u32 %v579, 2147483648
    %v606 = vxor.u32 %v582, 2147483648
    %v607 = vxor.u32 %v587, 2147483648
    %v608 = vxor.u32 %v590, 2147483648
    %v609 = vmul.f32 %v593, 1.442695
    %v610 = vpow.pop %v609
    %v611 = vmul.f32 %v594, 1.442695
    %v612 = vpow.pop %v611
    %v613 = vmul.f32 %v595, 1.442695
    %v614 = vpow.pop %v613
    %v615 = vmul.f32 %v596, 1.442695
    %v616 = vpow.pop %v615
    %v617 = vmul.f32 %v597, 1.442695
    %v618 = vpow.pop %v617
    %v619 = vmul.f32 %v598, 1.442695
    %v620 = vpow.pop %v619
    %v621 = vmul.f32 %v599, 1.442695
    %v622 = vpow.pop %v621
    %v623 = vmul.f32 %v600, 1.442695
    %v624 = vpow.pop %v623
    %v625 = vmul.f32 %v601, 1.442695
    %v626 = vpow.pop %v625
    %v627 = vmul.f32 %v602, 1.442695
    %v628 = vpow.pop %v627
    %v629 = vmul.f32 %v603, 1.442695
    %v630 = vpow.pop %v629
    %v631 = vmul.f32 %v604, 1.442695
    %v632 = vpow.pop %v631
    %v633 = vmul.f32 %v605, 1.442695
    %v634 = vpow.pop %v633
    %v635 = vmul.f32 %v606, 1.442695
    %v636 = vpow.pop %v635
    %v637 = vmul.f32 %v607, 1.442695
    %v638 = vpow.pop %v637
    %v639 = vmul.f32 %v608, 1.442695
    %v640 = vpow.pop %v639
    %v641 = vadd.f32 %v610, 1.0
    %v642 = vadd.f32 %v612, 1.0
    %v643 = vadd.f32 %v614, 1.0
    %v644 = vadd.f32 %v616, 1.0
    %v645 = vadd.f32 %v618, 1.0
    %v646 = vadd.f32 %v620, 1.0
    %v647 = vadd.f32 %v622, 1.0
    %v648 = vadd.f32 %v624, 1.0
    %v649 = vadd.f32 %v626, 1.0
    %v650 = vadd.f32 %v628, 1.0
    %v651 = vadd.f32 %v630, 1.0
    %v652 = vadd.f32 %v632, 1.0
    %v653 = vadd.f32 %v634, 1.0
    %v654 = vadd.f32 %v636, 1.0
    %v655 = vadd.f32 %v638, 1.0
    %v656 = vadd.f32 %v640, 1.0
    %v657 = vrcp.pop %v641
    %v658 = vmul.f32 1.0, %v657
    %v659 = vrcp.pop %v642
    %v660 = vmul.f32 1.0, %v659
    %v661 = vrcp.pop %v643
    %v662 = vmul.f32 1.0, %v661
    %v663 = vrcp.pop %v644
    %v664 = vmul.f32 1.0, %v663
    %v665 = vrcp.pop %v645
    %v666 = vmul.f32 1.0, %v665
    %v667 = vrcp.pop %v646
    %v668 = vmul.f32 1.0, %v667
    %v669 = vrcp.pop %v647
    %v670 = vmul.f32 1.0, %v669
    %v671 = vrcp.pop %v648
    %v672 = vmul.f32 1.0, %v671
    %v673 = vrcp.pop %v649
    %v674 = vmul.f32 1.0, %v673
    %v675 = vrcp.pop %v650
    %v676 = vmul.f32 1.0, %v675
    %v677 = vrcp.pop %v651
    %v678 = vmul.f32 1.0, %v677
    %v679 = vrcp.pop %v652
    %v680 = vmul.f32 1.0, %v679
    %v681 = vrcp.pop %v653
    %v682 = vmul.f32 1.0, %v681
    %v683 = vrcp.pop %v654
    %v684 = vmul.f32 1.0, %v683
    %v685 = vrcp.pop %v655
    %v686 = vmul.f32 1.0, %v685
    %v687 = vrcp.pop %v656
    %v688 = vmul.f32 1.0, %v687
    %v689 = vmul.f32 %v531, %v658
    %v690 = vmul.f32 %v534, %v660
    %v691 = vmul.f32 %v539, %v662
    %v692 = vmul.f32 %v542, %v664
    %v693 = vmul.f32 %v547, %v666
    %v694 = vmul.f32 %v550, %v668
    %v695 = vmul.f32 %v555, %v670
    %v696 = vmul.f32 %v558, %v672
    %v697 = vmul.f32 %v563, %v674
    %v698 = vmul.f32 %v566, %v676
    %v699 = vmul.f32 %v571, %v678
    %v700 = vmul.f32 %v574, %v680
    %v701 = vmul.f32 %v579, %v682
    %v702 = vmul.f32 %v582, %v684
    %v703 = vmul.f32 %v587, %v686
    %v704 = vmul.f32 %v590, %v688
    %721 = vrot.lane.b32.xlu0 %v689, 64
    %v722 = vpop.permute.xlu0 %721
    %723 = vrot.lane.b32.xlu0 %v690, 64
    %v724 = vpop.permute.xlu0 %723
    %725 = vrot.lane.b32.xlu0 %v691, 64
    %v726 = vpop.permute.xlu0 %725
    %727 = vrot.lane.b32.xlu0 %v692, 64
    %v728 = vpop.permute.xlu0 %727
    %729 = vrot.lane.b32.xlu0 %v693, 64
    %v730 = vpop.permute.xlu0 %729
    %731 = vrot.lane.b32.xlu0 %v694, 64
    %v732 = vpop.permute.xlu0 %731
    %733 = vrot.lane.b32.xlu0 %v695, 64
    %v734 = vpop.permute.xlu0 %733
    %735 = vrot.lane.b32.xlu0 %v696, 64
    %v736 = vpop.permute.xlu0 %735
    %737 = vrot.lane.b32.xlu0 %v697, 64
    %v738 = vpop.permute.xlu0 %737
    %739 = vrot.lane.b32.xlu0 %v698, 64
    %v740 = vpop.permute.xlu0 %739
    %741 = vrot.lane.b32.xlu0 %v699, 64
    %v742 = vpop.permute.xlu0 %741
    %743 = vrot.lane.b32.xlu0 %v700, 64
    %v744 = vpop.permute.xlu0 %743
    %745 = vrot.lane.b32.xlu0 %v701, 64
    %v746 = vpop.permute.xlu0 %745
    %747 = vrot.lane.b32.xlu0 %v702, 64
    %v748 = vpop.permute.xlu0 %747
    %749 = vrot.lane.b32.xlu0 %v703, 64
    %v750 = vpop.permute.xlu0 %749
    %751 = vrot.lane.b32.xlu0 %v704, 64
    %v752 = vpop.permute.xlu0 %751
    %vm769 = vcmask 523264
    %770 = vst.msk [vmem:[#allocation7] sm:$0xff] %vm769, %v722
    %771 = vst.msk [vmem:[#allocation7 + $0x8] sm:$0xff] %vm769, %v724
    %772 = vst.msk [vmem:[#allocation7 + $0x10] sm:$0xff] %vm769, %v726
    %773 = vst.msk [vmem:[#allocation7 + $0x18] sm:$0xff] %vm769, %v728
    %774 = vst.msk [vmem:[#allocation7 + $0x20] sm:$0xff] %vm769, %v730
    %775 = vst.msk [vmem:[#allocation7 + $0x28] sm:$0xff] %vm769, %v732
    %776 = vst.msk [vmem:[#allocation7 + $0x30] sm:$0xff] %vm769, %v734
    %777 = vst.msk [vmem:[#allocation7 + $0x38] sm:$0xff] %vm769, %v736
    %778 = vst.msk [vmem:[#allocation7 + $0x40] sm:$0xff] %vm769, %v738
    %779 = vst.msk [vmem:[#allocation7 + $0x48] sm:$0xff] %vm769, %v740
    %780 = vst.msk [vmem:[#allocation7 + $0x50] sm:$0xff] %vm769, %v742
    %781 = vst.msk [vmem:[#allocation7 + $0x58] sm:$0xff] %vm769, %v744
    %782 = vst.msk [vmem:[#allocation7 + $0x60] sm:$0xff] %vm769, %v746
    %783 = vst.msk [vmem:[#allocation7 + $0x68] sm:$0xff] %vm769, %v748
    %784 = vst.msk [vmem:[#allocation7 + $0x70] sm:$0xff] %vm769, %v750
    %785 = vst.msk [vmem:[#allocation7 + $0x78] sm:$0xff] %vm769, %v752
    %v786 = vld [vmem:[#allocation10] sm:$0x1]
    %v788 = vlaneseq
    %v789 = vshrl.u32 %v788, 7
    %v790 = vsub.s32 0, %v789
    %v791 = vrot.slane %v786, %v790
    %v793 = vld [vmem:[#allocation8 + $0x3] sm:$0x1]
    %v794 = vlaneseq
    %v795 = vshrl.u32 %v794, 7
    %v796 = vsub.s32 0, %v795
    %v797 = vrot.slane %v793, %v796
    %v798 = vmul.f32 %v797, %v531
    %v799 = vmul.f32 %v797, %v534
    %v800 = vmul.f32 %v797, %v539
    %v801 = vmul.f32 %v797, %v542
    %v802 = vmul.f32 %v797, %v547
    %v803 = vmul.f32 %v797, %v550
    %v804 = vmul.f32 %v797, %v555
    %v805 = vmul.f32 %v797, %v558
    %v806 = vmul.f32 %v797, %v563
    %v807 = vmul.f32 %v797, %v566
    %v808 = vmul.f32 %v797, %v571
    %v809 = vmul.f32 %v797, %v574
    %v810 = vmul.f32 %v797, %v579
    %v811 = vmul.f32 %v797, %v582
    %v812 = vmul.f32 %v797, %v587
    %v813 = vmul.f32 %v797, %v590
    %v814 = vadd.f32 %v791, %v798
    %v815 = vadd.f32 %v791, %v799
    %v816 = vadd.f32 %v791, %v800
    %v817 = vadd.f32 %v791, %v801
    %v818 = vadd.f32 %v791, %v802
    %v819 = vadd.f32 %v791, %v803
    %v820 = vadd.f32 %v791, %v804
    %v821 = vadd.f32 %v791, %v805
    %v822 = vadd.f32 %v791, %v806
    %v823 = vadd.f32 %v791, %v807
    %v824 = vadd.f32 %v791, %v808
    %v825 = vadd.f32 %v791, %v809
    %v826 = vadd.f32 %v791, %v810
    %v827 = vadd.f32 %v791, %v811
    %v828 = vadd.f32 %v791, %v812
    %v829 = vadd.f32 %v791, %v813
    %vm830 = vcmp.ge.s32.totalorder %v176, 1
    %vm831 = vcmp.ge.s32.totalorder %v177, 1
    %vm832 = vcmp.ge.s32.totalorder %v178, 1
    %vm833 = vcmp.ge.s32.totalorder %v179, 1
    %vm834 = vcmp.ge.s32.totalorder %v180, 1
    %vm835 = vcmp.ge.s32.totalorder %v181, 1
    %vm836 = vcmp.ge.s32.totalorder %v182, 1
    %vm837 = vcmp.ge.s32.totalorder %v183, 1
    %vm838 = vcmp.ge.s32.totalorder %v184, 1
    %vm839 = vcmp.ge.s32.totalorder %v185, 1
    %vm840 = vcmp.ge.s32.totalorder %v186, 1
    %vm841 = vcmp.ge.s32.totalorder %v187, 1
    %vm842 = vcmp.ge.s32.totalorder %v188, 1
    %vm843 = vcmp.ge.s32.totalorder %v189, 1
    %vm844 = vcmp.ge.s32.totalorder %v190, 1
    %vm845 = vcmp.ge.s32.totalorder %v191, 1
    %v846 = vsel %vm830, 1, 0
    %v847 = vsel %vm831, 1, 0
    %v848 = vsel %vm832, 1, 0
    %v849 = vsel %vm833, 1, 0
    %v850 = vsel %vm834, 1, 0
    %v851 = vsel %vm835, 1, 0
    %v852 = vsel %vm836, 1, 0
    %v853 = vsel %vm837, 1, 0
    %v854 = vsel %vm838, 1, 0
    %v855 = vsel %vm839, 1, 0
    %v856 = vsel %vm840, 1, 0
    %v857 = vsel %vm841, 1, 0
    %v858 = vsel %vm842, 1, 0
    %v859 = vsel %vm843, 1, 0
    %v860 = vsel %vm844, 1, 0
    %v861 = vsel %vm845, 1, 0
    %v862 = vcvt.s32.f32 %v846
    %v863 = vcvt.s32.f32 %v847
    %v864 = vcvt.s32.f32 %v848
    %v865 = vcvt.s32.f32 %v849
    %v866 = vcvt.s32.f32 %v850
    %v867 = vcvt.s32.f32 %v851
    %v868 = vcvt.s32.f32 %v852
    %v869 = vcvt.s32.f32 %v853
    %v870 = vcvt.s32.f32 %v854
    %v871 = vcvt.s32.f32 %v855
    %v872 = vcvt.s32.f32 %v856
    %v873 = vcvt.s32.f32 %v857
    %v874 = vcvt.s32.f32 %v858
    %v875 = vcvt.s32.f32 %v859
    %v876 = vcvt.s32.f32 %v860
    %v877 = vcvt.s32.f32 %v861
    %v878 = vrot.slane %v531, 7
    %v879 = vrot.slane %v534, 7
    %v880 = vrot.slane %v539, 7
    %v881 = vrot.slane %v542, 7
    %v882 = vrot.slane %v547, 7
    %v883 = vrot.slane %v550, 7
    %v884 = vrot.slane %v555, 7
    %v885 = vrot.slane %v558, 7
    %v886 = vrot.slane %v563, 7
    %v887 = vrot.slane %v566, 7
    %v888 = vrot.slane %v571, 7
    %v889 = vrot.slane %v574, 7
    %v890 = vrot.slane %v579, 7
    %v891 = vrot.slane %v582, 7
    %v892 = vrot.slane %v587, 7
    %v893 = vrot.slane %v590, 7
    %v894 = vlaneseq
    %v895 = vshrl.u32 %v894, 7
    %vm896 = vcmp.lt.s32.totalorder %v895, 1
    %v897 = vsel %vm896, %v892, %v893
    %v898 = vsel %vm896, %v891, %v892
    %v899 = vsel %vm896, %v890, %v891
    %v900 = vsel %vm896, %v889, %v890
    %v901 = vsel %vm896, %v888, %v889
    %v902 = vsel %vm896, %v887, %v888
    %v903 = vsel %vm896, %v886, %v887
    %v904 = vsel %vm896, %v885, %v886
    %v905 = vsel %vm896, %v884, %v885
    %v906 = vsel %vm896, %v883, %v884
    %v907 = vsel %vm896, %v882, %v883
    %v908 = vsel %vm896, %v881, %v882
    %v909 = vsel %vm896, %v880, %v881
    %v910 = vsel %vm896, %v879, %v880
    %v911 = vsel %vm896, %v878, %v879
    %v912 = vsel %vm896, %v893, %v878
    %914 = vset.pattern.permute.xlu0 0
    %915 = vperm.xlu0 %914, %v862
    %v916 = vpop.permute.xlu0 %915
    %919 = vset.pattern.permute.xlu0 0
    %920 = vperm.xlu0 %919, %v863
    %v921 = vpop.permute.xlu0 %920
    %924 = vset.pattern.permute.xlu0 0
    %925 = vperm.xlu0 %924, %v864
    %v926 = vpop.permute.xlu0 %925
    %929 = vset.pattern.permute.xlu0 0
    %930 = vperm.xlu0 %929, %v865
    %v931 = vpop.permute.xlu0 %930
    %934 = vset.pattern.permute.xlu0 0
    %935 = vperm.xlu0 %934, %v866
    %v936 = vpop.permute.xlu0 %935
    %939 = vset.pattern.permute.xlu0 0
    %940 = vperm.xlu0 %939, %v867
    %v941 = vpop.permute.xlu0 %940
    %944 = vset.pattern.permute.xlu0 0
    %945 = vperm.xlu0 %944, %v868
    %v946 = vpop.permute.xlu0 %945
    %949 = vset.pattern.permute.xlu0 0
    %950 = vperm.xlu0 %949, %v869
    %v951 = vpop.permute.xlu0 %950
    %954 = vset.pattern.permute.xlu0 0
    %955 = vperm.xlu0 %954, %v870
    %v956 = vpop.permute.xlu0 %955
    %959 = vset.pattern.permute.xlu0 0
    %960 = vperm.xlu0 %959, %v871
    %v961 = vpop.permute.xlu0 %960
    %964 = vset.pattern.permute.xlu0 0
    %965 = vperm.xlu0 %964, %v872
    %v966 = vpop.permute.xlu0 %965
    %969 = vset.pattern.permute.xlu0 0
    %970 = vperm.xlu0 %969, %v873
    %v971 = vpop.permute.xlu0 %970
    %974 = vset.pattern.permute.xlu0 0
    %975 = vperm.xlu0 %974, %v874
    %v976 = vpop.permute.xlu0 %975
    %979 = vset.pattern.permute.xlu0 0
    %980 = vperm.xlu0 %979, %v875
    %v981 = vpop.permute.xlu0 %980
    %984 = vset.pattern.permute.xlu0 0
    %985 = vperm.xlu0 %984, %v876
    %v986 = vpop.permute.xlu0 %985
    %989 = vset.pattern.permute.xlu0 0
    %990 = vperm.xlu0 %989, %v877
    %v991 = vpop.permute.xlu0 %990
    %v993 = vmul.f32 %v912, %v916
    %v994 = vmul.f32 %v911, %v921
    %v995 = vmul.f32 %v910, %v926
    %v996 = vmul.f32 %v909, %v931
    %v997 = vmul.f32 %v908, %v936
    %v998 = vmul.f32 %v907, %v941
    %v999 = vmul.f32 %v906, %v946
    %v1000 = vmul.f32 %v905, %v951
    %v1001 = vmul.f32 %v904, %v956
    %v1002 = vmul.f32 %v903, %v961
    %v1003 = vmul.f32 %v902, %v966
    %v1004 = vmul.f32 %v901, %v971
    %v1005 = vmul.f32 %v900, %v976
    %v1006 = vmul.f32 %v899, %v981
    %v1007 = vmul.f32 %v898, %v986
    %v1008 = vmul.f32 %v897, %v991
    %v1009 = vld [vmem:[#allocation8 + $0x2] sm:$0x1]
    %v1010 = vlaneseq
    %v1011 = vshrl.u32 %v1010, 7
    %v1012 = vsub.s32 0, %v1011
    %v1013 = vrot.slane %v1009, %v1012
    %v1014 = vmul.f32 %v1013, %v993
    %v1015 = vmul.f32 %v1013, %v994
    %v1016 = vmul.f32 %v1013, %v995
    %v1017 = vmul.f32 %v1013, %v996
    %v1018 = vmul.f32 %v1013, %v997
    %v1019 = vmul.f32 %v1013, %v998
    %v1020 = vmul.f32 %v1013, %v999
    %v1021 = vmul.f32 %v1013, %v1000
    %v1022 = vmul.f32 %v1013, %v1001
    %v1023 = vmul.f32 %v1013, %v1002
    %v1024 = vmul.f32 %v1013, %v1003
    %v1025 = vmul.f32 %v1013, %v1004
    %v1026 = vmul.f32 %v1013, %v1005
    %v1027 = vmul.f32 %v1013, %v1006
    %v1028 = vmul.f32 %v1013, %v1007
    %v1029 = vmul.f32 %v1013, %v1008
    %v1030 = vadd.f32 %v814, %v1014
    %v1031 = vadd.f32 %v815, %v1015
    %v1032 = vadd.f32 %v816, %v1016
    %v1033 = vadd.f32 %v817, %v1017
    %v1034 = vadd.f32 %v818, %v1018
    %v1035 = vadd.f32 %v819, %v1019
    %v1036 = vadd.f32 %v820, %v1020
    %v1037 = vadd.f32 %v821, %v1021
    %v1038 = vadd.f32 %v822, %v1022
    %v1039 = vadd.f32 %v823, %v1023
    %v1040 = vadd.f32 %v824, %v1024
    %v1041 = vadd.f32 %v825, %v1025
    %v1042 = vadd.f32 %v826, %v1026
    %v1043 = vadd.f32 %v827, %v1027
    %v1044 = vadd.f32 %v828, %v1028
    %v1045 = vadd.f32 %v829, %v1029
    %vm1046 = vcmp.ge.s32.totalorder %v176, 2
    %vm1047 = vcmp.ge.s32.totalorder %v177, 2
    %vm1048 = vcmp.ge.s32.totalorder %v178, 2
    %vm1049 = vcmp.ge.s32.totalorder %v179, 2
    %vm1050 = vcmp.ge.s32.totalorder %v180, 2
    %vm1051 = vcmp.ge.s32.totalorder %v181, 2
    %vm1052 = vcmp.ge.s32.totalorder %v182, 2
    %vm1053 = vcmp.ge.s32.totalorder %v183, 2
    %vm1054 = vcmp.ge.s32.totalorder %v184, 2
    %vm1055 = vcmp.ge.s32.totalorder %v185, 2
    %vm1056 = vcmp.ge.s32.totalorder %v186, 2
    %vm1057 = vcmp.ge.s32.totalorder %v187, 2
    %vm1058 = vcmp.ge.s32.totalorder %v188, 2
    %vm1059 = vcmp.ge.s32.totalorder %v189, 2
    %vm1060 = vcmp.ge.s32.totalorder %v190, 2
    %vm1061 = vcmp.ge.s32.totalorder %v191, 2
    %v1062 = vsel %vm1046, 1, 0
    %v1063 = vsel %vm1047, 1, 0
    %v1064 = vsel %vm1048, 1, 0
    %v1065 = vsel %vm1049, 1, 0
    %v1066 = vsel %vm1050, 1, 0
    %v1067 = vsel %vm1051, 1, 0
    %v1068 = vsel %vm1052, 1, 0
    %v1069 = vsel %vm1053, 1, 0
    %v1070 = vsel %vm1054, 1, 0
    %v1071 = vsel %vm1055, 1, 0
    %v1072 = vsel %vm1056, 1, 0
    %v1073 = vsel %vm1057, 1, 0
    %v1074 = vsel %vm1058, 1, 0
    %v1075 = vsel %vm1059, 1, 0
    %v1076 = vsel %vm1060, 1, 0
    %v1077 = vsel %vm1061, 1, 0
    %v1078 = vcvt.s32.f32 %v1062
    %v1079 = vcvt.s32.f32 %v1063
    %v1080 = vcvt.s32.f32 %v1064
    %v1081 = vcvt.s32.f32 %v1065
    %v1082 = vcvt.s32.f32 %v1066
    %v1083 = vcvt.s32.f32 %v1067
    %v1084 = vcvt.s32.f32 %v1068
    %v1085 = vcvt.s32.f32 %v1069
    %v1086 = vcvt.s32.f32 %v1070
    %v1087 = vcvt.s32.f32 %v1071
    %v1088 = vcvt.s32.f32 %v1072
    %v1089 = vcvt.s32.f32 %v1073
    %v1090 = vcvt.s32.f32 %v1074
    %v1091 = vcvt.s32.f32 %v1075
    %v1092 = vcvt.s32.f32 %v1076
    %v1093 = vcvt.s32.f32 %v1077
    %v1094 = vrot.slane %v531, 6
    %v1095 = vrot.slane %v534, 6
    %v1096 = vrot.slane %v539, 6
    %v1097 = vrot.slane %v542, 6
    %v1098 = vrot.slane %v547, 6
    %v1099 = vrot.slane %v550, 6
    %v1100 = vrot.slane %v555, 6
    %v1101 = vrot.slane %v558, 6
    %v1102 = vrot.slane %v563, 6
    %v1103 = vrot.slane %v566, 6
    %v1104 = vrot.slane %v571, 6
    %v1105 = vrot.slane %v574, 6
    %v1106 = vrot.slane %v579, 6
    %v1107 = vrot.slane %v582, 6
    %v1108 = vrot.slane %v587, 6
    %v1109 = vrot.slane %v590, 6
    %vm1110 = vcmp.lt.s32.totalorder %v895, 2
    %v1111 = vsel %vm1110, %v1108, %v1109
    %v1112 = vsel %vm1110, %v1107, %v1108
    %v1113 = vsel %vm1110, %v1106, %v1107
    %v1114 = vsel %vm1110, %v1105, %v1106
    %v1115 = vsel %vm1110, %v1104, %v1105
    %v1116 = vsel %vm1110, %v1103, %v1104
    %v1117 = vsel %vm1110, %v1102, %v1103
    %v1118 = vsel %vm1110, %v1101, %v1102
    %v1119 = vsel %vm1110, %v1100, %v1101
    %v1120 = vsel %vm1110, %v1099, %v1100
    %v1121 = vsel %vm1110, %v1098, %v1099
    %v1122 = vsel %vm1110, %v1097, %v1098
    %v1123 = vsel %vm1110, %v1096, %v1097
    %v1124 = vsel %vm1110, %v1095, %v1096
    %v1125 = vsel %vm1110, %v1094, %v1095
    %v1126 = vsel %vm1110, %v1109, %v1094
    %1128 = vset.pattern.permute.xlu0 0
    %1129 = vperm.xlu0 %1128, %v1078
    %v1130 = vpop.permute.xlu0 %1129
    %1133 = vset.pattern.permute.xlu0 0
    %1134 = vperm.xlu0 %1133, %v1079
    %v1135 = vpop.permute.xlu0 %1134
    %1138 = vset.pattern.permute.xlu0 0
    %1139 = vperm.xlu0 %1138, %v1080
    %v1140 = vpop.permute.xlu0 %1139
    %1143 = vset.pattern.permute.xlu0 0
    %1144 = vperm.xlu0 %1143, %v1081
    %v1145 = vpop.permute.xlu0 %1144
    %1148 = vset.pattern.permute.xlu0 0
    %1149 = vperm.xlu0 %1148, %v1082
    %v1150 = vpop.permute.xlu0 %1149
    %1153 = vset.pattern.permute.xlu0 0
    %1154 = vperm.xlu0 %1153, %v1083
    %v1155 = vpop.permute.xlu0 %1154
    %1158 = vset.pattern.permute.xlu0 0
    %1159 = vperm.xlu0 %1158, %v1084
    %v1160 = vpop.permute.xlu0 %1159
    %1163 = vset.pattern.permute.xlu0 0
    %1164 = vperm.xlu0 %1163, %v1085
    %v1165 = vpop.permute.xlu0 %1164
    %1168 = vset.pattern.permute.xlu0 0
    %1169 = vperm.xlu0 %1168, %v1086
    %v1170 = vpop.permute.xlu0 %1169
    %1173 = vset.pattern.permute.xlu0 0
    %1174 = vperm.xlu0 %1173, %v1087
    %v1175 = vpop.permute.xlu0 %1174
    %1178 = vset.pattern.permute.xlu0 0
    %1179 = vperm.xlu0 %1178, %v1088
    %v1180 = vpop.permute.xlu0 %1179
    %1183 = vset.pattern.permute.xlu0 0
    %1184 = vperm.xlu0 %1183, %v1089
    %v1185 = vpop.permute.xlu0 %1184
    %1188 = vset.pattern.permute.xlu0 0
    %1189 = vperm.xlu0 %1188, %v1090
    %v1190 = vpop.permute.xlu0 %1189
    %1193 = vset.pattern.permute.xlu0 0
    %1194 = vperm.xlu0 %1193, %v1091
    %v1195 = vpop.permute.xlu0 %1194
    %1198 = vset.pattern.permute.xlu0 0
    %1199 = vperm.xlu0 %1198, %v1092
    %v1200 = vpop.permute.xlu0 %1199
    %1203 = vset.pattern.permute.xlu0 0
    %1204 = vperm.xlu0 %1203, %v1093
    %v1205 = vpop.permute.xlu0 %1204
    %v1207 = vmul.f32 %v1126, %v1130
    %v1208 = vmul.f32 %v1125, %v1135
    %v1209 = vmul.f32 %v1124, %v1140
    %v1210 = vmul.f32 %v1123, %v1145
    %v1211 = vmul.f32 %v1122, %v1150
    %v1212 = vmul.f32 %v1121, %v1155
    %v1213 = vmul.f32 %v1120, %v1160
    %v1214 = vmul.f32 %v1119, %v1165
    %v1215 = vmul.f32 %v1118, %v1170
    %v1216 = vmul.f32 %v1117, %v1175
    %v1217 = vmul.f32 %v1116, %v1180
    %v1218 = vmul.f32 %v1115, %v1185
    %v1219 = vmul.f32 %v1114, %v1190
    %v1220 = vmul.f32 %v1113, %v1195
    %v1221 = vmul.f32 %v1112, %v1200
    %v1222 = vmul.f32 %v1111, %v1205
    %v1223 = vld [vmem:[#allocation8 + $0x1] sm:$0x1]
    %v1224 = vlaneseq
    %v1225 = vshrl.u32 %v1224, 7
    %v1226 = vsub.s32 0, %v1225
    %v1227 = vrot.slane %v1223, %v1226
    %v1228 = vmul.f32 %v1227, %v1207
    %v1229 = vmul.f32 %v1227, %v1208
    %v1230 = vmul.f32 %v1227, %v1209
    %v1231 = vmul.f32 %v1227, %v1210
    %v1232 = vmul.f32 %v1227, %v1211
    %v1233 = vmul.f32 %v1227, %v1212
    %v1234 = vmul.f32 %v1227, %v1213
    %v1235 = vmul.f32 %v1227, %v1214
    %v1236 = vmul.f32 %v1227, %v1215
    %v1237 = vmul.f32 %v1227, %v1216
    %v1238 = vmul.f32 %v1227, %v1217
    %v1239 = vmul.f32 %v1227, %v1218
    %v1240 = vmul.f32 %v1227, %v1219
    %v1241 = vmul.f32 %v1227, %v1220
    %v1242 = vmul.f32 %v1227, %v1221
    %v1243 = vmul.f32 %v1227, %v1222
    %v1244 = vadd.f32 %v1030, %v1228
    %v1245 = vadd.f32 %v1031, %v1229
    %v1246 = vadd.f32 %v1032, %v1230
    %v1247 = vadd.f32 %v1033, %v1231
    %v1248 = vadd.f32 %v1034, %v1232
    %v1249 = vadd.f32 %v1035, %v1233
    %v1250 = vadd.f32 %v1036, %v1234
    %v1251 = vadd.f32 %v1037, %v1235
    %v1252 = vadd.f32 %v1038, %v1236
    %v1253 = vadd.f32 %v1039, %v1237
    %v1254 = vadd.f32 %v1040, %v1238
    %v1255 = vadd.f32 %v1041, %v1239
    %v1256 = vadd.f32 %v1042, %v1240
    %v1257 = vadd.f32 %v1043, %v1241
    %v1258 = vadd.f32 %v1044, %v1242
    %v1259 = vadd.f32 %v1045, %v1243
    %vm1260 = vcmp.ge.s32.totalorder %v176, 3
    %vm1261 = vcmp.ge.s32.totalorder %v177, 3
    %vm1262 = vcmp.ge.s32.totalorder %v178, 3
    %vm1263 = vcmp.ge.s32.totalorder %v179, 3
    %vm1264 = vcmp.ge.s32.totalorder %v180, 3
    %vm1265 = vcmp.ge.s32.totalorder %v181, 3
    %vm1266 = vcmp.ge.s32.totalorder %v182, 3
    %vm1267 = vcmp.ge.s32.totalorder %v183, 3
    %vm1268 = vcmp.ge.s32.totalorder %v184, 3
    %vm1269 = vcmp.ge.s32.totalorder %v185, 3
    %vm1270 = vcmp.ge.s32.totalorder %v186, 3
    %vm1271 = vcmp.ge.s32.totalorder %v187, 3
    %vm1272 = vcmp.ge.s32.totalorder %v188, 3
    %vm1273 = vcmp.ge.s32.totalorder %v189, 3
    %vm1274 = vcmp.ge.s32.totalorder %v190, 3
    %vm1275 = vcmp.ge.s32.totalorder %v191, 3
    %v1276 = vsel %vm1260, 1, 0
    %v1277 = vsel %vm1261, 1, 0
    %v1278 = vsel %vm1262, 1, 0
    %v1279 = vsel %vm1263, 1, 0
    %v1280 = vsel %vm1264, 1, 0
    %v1281 = vsel %vm1265, 1, 0
    %v1282 = vsel %vm1266, 1, 0
    %v1283 = vsel %vm1267, 1, 0
    %v1284 = vsel %vm1268, 1, 0
    %v1285 = vsel %vm1269, 1, 0
    %v1286 = vsel %vm1270, 1, 0
    %v1287 = vsel %vm1271, 1, 0
    %v1288 = vsel %vm1272, 1, 0
    %v1289 = vsel %vm1273, 1, 0
    %v1290 = vsel %vm1274, 1, 0
    %v1291 = vsel %vm1275, 1, 0
    %v1292 = vcvt.s32.f32 %v1276
    %v1293 = vcvt.s32.f32 %v1277
    %v1294 = vcvt.s32.f32 %v1278
    %v1295 = vcvt.s32.f32 %v1279
    %v1296 = vcvt.s32.f32 %v1280
    %v1297 = vcvt.s32.f32 %v1281
    %v1298 = vcvt.s32.f32 %v1282
    %v1299 = vcvt.s32.f32 %v1283
    %v1300 = vcvt.s32.f32 %v1284
    %v1301 = vcvt.s32.f32 %v1285
    %v1302 = vcvt.s32.f32 %v1286
    %v1303 = vcvt.s32.f32 %v1287
    %v1304 = vcvt.s32.f32 %v1288
    %v1305 = vcvt.s32.f32 %v1289
    %v1306 = vcvt.s32.f32 %v1290
    %v1307 = vcvt.s32.f32 %v1291
    %v1308 = vrot.slane %v531, 5
    %v1309 = vrot.slane %v534, 5
    %v1310 = vrot.slane %v539, 5
    %v1311 = vrot.slane %v542, 5
    %v1312 = vrot.slane %v547, 5
    %v1313 = vrot.slane %v550, 5
    %v1314 = vrot.slane %v555, 5
    %v1315 = vrot.slane %v558, 5
    %v1316 = vrot.slane %v563, 5
    %v1317 = vrot.slane %v566, 5
    %v1318 = vrot.slane %v571, 5
    %v1319 = vrot.slane %v574, 5
    %v1320 = vrot.slane %v579, 5
    %v1321 = vrot.slane %v582, 5
    %v1322 = vrot.slane %v587, 5
    %v1323 = vrot.slane %v590, 5
    %vm1324 = vcmp.lt.s32.totalorder %v895, 3
    %v1325 = vsel %vm1324, %v1322, %v1323
    %v1326 = vsel %vm1324, %v1321, %v1322
    %v1327 = vsel %vm1324, %v1320, %v1321
    %v1328 = vsel %vm1324, %v1319, %v1320
    %v1329 = vsel %vm1324, %v1318, %v1319
    %v1330 = vsel %vm1324, %v1317, %v1318
    %v1331 = vsel %vm1324, %v1316, %v1317
    %v1332 = vsel %vm1324, %v1315, %v1316
    %v1333 = vsel %vm1324, %v1314, %v1315
    %v1334 = vsel %vm1324, %v1313, %v1314
    %v1335 = vsel %vm1324, %v1312, %v1313
    %v1336 = vsel %vm1324, %v1311, %v1312
    %v1337 = vsel %vm1324, %v1310, %v1311
    %v1338 = vsel %vm1324, %v1309, %v1310
    %v1339 = vsel %vm1324, %v1308, %v1309
    %v1340 = vsel %vm1324, %v1323, %v1308
    %1342 = vset.pattern.permute.xlu0 0
    %1343 = vperm.xlu0 %1342, %v1292
    %v1344 = vpop.permute.xlu0 %1343
    %1347 = vset.pattern.permute.xlu0 0
    %1348 = vperm.xlu0 %1347, %v1293
    %v1349 = vpop.permute.xlu0 %1348
    %1352 = vset.pattern.permute.xlu0 0
    %1353 = vperm.xlu0 %1352, %v1294
    %v1354 = vpop.permute.xlu0 %1353
    %1357 = vset.pattern.permute.xlu0 0
    %1358 = vperm.xlu0 %1357, %v1295
    %v1359 = vpop.permute.xlu0 %1358
    %1362 = vset.pattern.permute.xlu0 0
    %1363 = vperm.xlu0 %1362, %v1296
    %v1364 = vpop.permute.xlu0 %1363
    %1367 = vset.pattern.permute.xlu0 0
    %1368 = vperm.xlu0 %1367, %v1297
    %v1369 = vpop.permute.xlu0 %1368
    %1372 = vset.pattern.permute.xlu0 0
    %1373 = vperm.xlu0 %1372, %v1298
    %v1374 = vpop.permute.xlu0 %1373
    %1377 = vset.pattern.permute.xlu0 0
    %1378 = vperm.xlu0 %1377, %v1299
    %v1379 = vpop.permute.xlu0 %1378
    %1382 = vset.pattern.permute.xlu0 0
    %1383 = vperm.xlu0 %1382, %v1300
    %v1384 = vpop.permute.xlu0 %1383
    %1387 = vset.pattern.permute.xlu0 0
    %1388 = vperm.xlu0 %1387, %v1301
    %v1389 = vpop.permute.xlu0 %1388
    %1392 = vset.pattern.permute.xlu0 0
    %1393 = vperm.xlu0 %1392, %v1302
    %v1394 = vpop.permute.xlu0 %1393
    %1397 = vset.pattern.permute.xlu0 0
    %1398 = vperm.xlu0 %1397, %v1303
    %v1399 = vpop.permute.xlu0 %1398
    %1402 = vset.pattern.permute.xlu0 0
    %1403 = vperm.xlu0 %1402, %v1304
    %v1404 = vpop.permute.xlu0 %1403
    %1407 = vset.pattern.permute.xlu0 0
    %1408 = vperm.xlu0 %1407, %v1305
    %v1409 = vpop.permute.xlu0 %1408
    %1412 = vset.pattern.permute.xlu0 0
    %1413 = vperm.xlu0 %1412, %v1306
    %v1414 = vpop.permute.xlu0 %1413
    %1417 = vset.pattern.permute.xlu0 0
    %1418 = vperm.xlu0 %1417, %v1307
    %v1419 = vpop.permute.xlu0 %1418
    %v1421 = vmul.f32 %v1340, %v1344
    %v1422 = vmul.f32 %v1339, %v1349
    %v1423 = vmul.f32 %v1338, %v1354
    %v1424 = vmul.f32 %v1337, %v1359
    %v1425 = vmul.f32 %v1336, %v1364
    %v1426 = vmul.f32 %v1335, %v1369
    %v1427 = vmul.f32 %v1334, %v1374
    %v1428 = vmul.f32 %v1333, %v1379
    %v1429 = vmul.f32 %v1332, %v1384
    %v1430 = vmul.f32 %v1331, %v1389
    %v1431 = vmul.f32 %v1330, %v1394
    %v1432 = vmul.f32 %v1329, %v1399
    %v1433 = vmul.f32 %v1328, %v1404
    %v1434 = vmul.f32 %v1327, %v1409
    %v1435 = vmul.f32 %v1326, %v1414
    %v1436 = vmul.f32 %v1325, %v1419
    %v1437 = vld [vmem:[#allocation8] sm:$0x1]
    %v1438 = vlaneseq
    %v1439 = vshrl.u32 %v1438, 7
    %v1440 = vsub.s32 0, %v1439
    %v1441 = vrot.slane %v1437, %v1440
    %v1442 = vmul.f32 %v1441, %v1421
    %v1443 = vmul.f32 %v1441, %v1422
    %v1444 = vmul.f32 %v1441, %v1423
    %v1445 = vmul.f32 %v1441, %v1424
    %v1446 = vmul.f32 %v1441, %v1425
    %v1447 = vmul.f32 %v1441, %v1426
    %v1448 = vmul.f32 %v1441, %v1427
    %v1449 = vmul.f32 %v1441, %v1428
    %v1450 = vmul.f32 %v1441, %v1429
    %v1451 = vmul.f32 %v1441, %v1430
    %v1452 = vmul.f32 %v1441, %v1431
    %v1453 = vmul.f32 %v1441, %v1432
    %v1454 = vmul.f32 %v1441, %v1433
    %v1455 = vmul.f32 %v1441, %v1434
    %v1456 = vmul.f32 %v1441, %v1435
    %v1457 = vmul.f32 %v1441, %v1436
    %v1458 = vadd.f32 %v1244, %v1442
    %v1459 = vadd.f32 %v1245, %v1443
    %v1460 = vadd.f32 %v1246, %v1444
    %v1461 = vadd.f32 %v1247, %v1445
    %v1462 = vadd.f32 %v1248, %v1446
    %v1463 = vadd.f32 %v1249, %v1447
    %v1464 = vadd.f32 %v1250, %v1448
    %v1465 = vadd.f32 %v1251, %v1449
    %v1466 = vadd.f32 %v1252, %v1450
    %v1467 = vadd.f32 %v1253, %v1451
    %v1468 = vadd.f32 %v1254, %v1452
    %v1469 = vadd.f32 %v1255, %v1453
    %v1470 = vadd.f32 %v1256, %v1454
    %v1471 = vadd.f32 %v1257, %v1455
    %v1472 = vadd.f32 %v1258, %v1456
    %v1473 = vadd.f32 %v1259, %v1457
    %v1474 = vxor.u32 %v1458, 2147483648
    %v1475 = vxor.u32 %v1459, 2147483648
    %v1476 = vxor.u32 %v1460, 2147483648
    %v1477 = vxor.u32 %v1461, 2147483648
    %v1478 = vxor.u32 %v1462, 2147483648
    %v1479 = vxor.u32 %v1463, 2147483648
    %v1480 = vxor.u32 %v1464, 2147483648
    %v1481 = vxor.u32 %v1465, 2147483648
    %v1482 = vxor.u32 %v1466, 2147483648
    %v1483 = vxor.u32 %v1467, 2147483648
    %v1484 = vxor.u32 %v1468, 2147483648
    %v1485 = vxor.u32 %v1469, 2147483648
    %v1486 = vxor.u32 %v1470, 2147483648
    %v1487 = vxor.u32 %v1471, 2147483648
    %v1488 = vxor.u32 %v1472, 2147483648
    %v1489 = vxor.u32 %v1473, 2147483648
    %v1490 = vmul.f32 %v1474, 1.442695
    %v1491 = vpow.pop %v1490
    %v1492 = vmul.f32 %v1475, 1.442695
    %v1493 = vpow.pop %v1492
    %v1494 = vmul.f32 %v1476, 1.442695
    %v1495 = vpow.pop %v1494
    %v1496 = vmul.f32 %v1477, 1.442695
    %v1497 = vpow.pop %v1496
    %v1498 = vmul.f32 %v1478, 1.442695
    %v1499 = vpow.pop %v1498
    %v1500 = vmul.f32 %v1479, 1.442695
    %v1501 = vpow.pop %v1500
    %v1502 = vmul.f32 %v1480, 1.442695
    %v1503 = vpow.pop %v1502
    %v1504 = vmul.f32 %v1481, 1.442695
    %v1505 = vpow.pop %v1504
    %v1506 = vmul.f32 %v1482, 1.442695
    %v1507 = vpow.pop %v1506
    %v1508 = vmul.f32 %v1483, 1.442695
    %v1509 = vpow.pop %v1508
    %v1510 = vmul.f32 %v1484, 1.442695
    %v1511 = vpow.pop %v1510
    %v1512 = vmul.f32 %v1485, 1.442695
    %v1513 = vpow.pop %v1512
    %v1514 = vmul.f32 %v1486, 1.442695
    %v1515 = vpow.pop %v1514
    %v1516 = vmul.f32 %v1487, 1.442695
    %v1517 = vpow.pop %v1516
    %v1518 = vmul.f32 %v1488, 1.442695
    %v1519 = vpow.pop %v1518
    %v1520 = vmul.f32 %v1489, 1.442695
    %v1521 = vpow.pop %v1520
    %v1522 = vadd.f32 %v1491, 1.0
    %v1523 = vadd.f32 %v1493, 1.0
    %v1524 = vadd.f32 %v1495, 1.0
    %v1525 = vadd.f32 %v1497, 1.0
    %v1526 = vadd.f32 %v1499, 1.0
    %v1527 = vadd.f32 %v1501, 1.0
    %v1528 = vadd.f32 %v1503, 1.0
    %v1529 = vadd.f32 %v1505, 1.0
    %v1530 = vadd.f32 %v1507, 1.0
    %v1531 = vadd.f32 %v1509, 1.0
    %v1532 = vadd.f32 %v1511, 1.0
    %v1533 = vadd.f32 %v1513, 1.0
    %v1534 = vadd.f32 %v1515, 1.0
    %v1535 = vadd.f32 %v1517, 1.0
    %v1536 = vadd.f32 %v1519, 1.0
    %v1537 = vadd.f32 %v1521, 1.0
    %v1538 = vrcp.pop %v1522
    %v1539 = vmul.f32 1.0, %v1538
    %v1540 = vrcp.pop %v1523
    %v1541 = vmul.f32 1.0, %v1540
    %v1542 = vrcp.pop %v1524
    %v1543 = vmul.f32 1.0, %v1542
    %v1544 = vrcp.pop %v1525
    %v1545 = vmul.f32 1.0, %v1544
    %v1546 = vrcp.pop %v1526
    %v1547 = vmul.f32 1.0, %v1546
    %v1548 = vrcp.pop %v1527
    %v1549 = vmul.f32 1.0, %v1548
    %v1550 = vrcp.pop %v1528
    %v1551 = vmul.f32 1.0, %v1550
    %v1552 = vrcp.pop %v1529
    %v1553 = vmul.f32 1.0, %v1552
    %v1554 = vrcp.pop %v1530
    %v1555 = vmul.f32 1.0, %v1554
    %v1556 = vrcp.pop %v1531
    %v1557 = vmul.f32 1.0, %v1556
    %v1558 = vrcp.pop %v1532
    %v1559 = vmul.f32 1.0, %v1558
    %v1560 = vrcp.pop %v1533
    %v1561 = vmul.f32 1.0, %v1560
    %v1562 = vrcp.pop %v1534
    %v1563 = vmul.f32 1.0, %v1562
    %v1564 = vrcp.pop %v1535
    %v1565 = vmul.f32 1.0, %v1564
    %v1566 = vrcp.pop %v1536
    %v1567 = vmul.f32 1.0, %v1566
    %v1568 = vrcp.pop %v1537
    %v1569 = vmul.f32 1.0, %v1568
    %v1570 = vmul.f32 %v1458, %v1539
    %v1571 = vmul.f32 %v1459, %v1541
    %v1572 = vmul.f32 %v1460, %v1543
    %v1573 = vmul.f32 %v1461, %v1545
    %v1574 = vmul.f32 %v1462, %v1547
    %v1575 = vmul.f32 %v1463, %v1549
    %v1576 = vmul.f32 %v1464, %v1551
    %v1577 = vmul.f32 %v1465, %v1553
    %v1578 = vmul.f32 %v1466, %v1555
    %v1579 = vmul.f32 %v1467, %v1557
    %v1580 = vmul.f32 %v1468, %v1559
    %v1581 = vmul.f32 %v1469, %v1561
    %v1582 = vmul.f32 %v1470, %v1563
    %v1583 = vmul.f32 %v1471, %v1565
    %v1584 = vmul.f32 %v1472, %v1567
    %v1585 = vmul.f32 %v1473, %v1569
    %v1586 = vpack.c.bf16 %v1571, %v1570
    %v1587 = vpack.c.bf16 %v1573, %v1572
    %v1588 = vpack.c.bf16 %v1575, %v1574
    %v1589 = vpack.c.bf16 %v1577, %v1576
    %v1590 = vpack.c.bf16 %v1579, %v1578
    %v1591 = vpack.c.bf16 %v1581, %v1580
    %v1592 = vpack.c.bf16 %v1583, %v1582
    %v1593 = vpack.c.bf16 %v1585, %v1584
    %v1594 = vld [vmem:[#allocation12] sm:$0xf]
    %v1595 = vld [vmem:[#allocation12 + $0x4] sm:$0xf]
    %v1596 = vld [vmem:[#allocation12 + $0x8] sm:$0xf]
    %v1597 = vld [vmem:[#allocation12 + $0xc] sm:$0xf]
    %v1598 = vld [vmem:[#allocation12 + $0x10] sm:$0xf]
    %v1599 = vld [vmem:[#allocation12 + $0x14] sm:$0xf]
    %v1600 = vld [vmem:[#allocation12 + $0x18] sm:$0xf]
    %v1601 = vld [vmem:[#allocation12 + $0x1c] sm:$0xf]
    %v1610 = vunpack.c.l.b16 %v1594
    %v1611 = vunpack.c.l.b16 %v1595
    %v1612 = vunpack.c.l.b16 %v1596
    %v1613 = vunpack.c.l.b16 %v1597
    %v1614 = vunpack.c.l.b16 %v1598
    %v1615 = vunpack.c.l.b16 %v1599
    %v1616 = vunpack.c.l.b16 %v1600
    %v1617 = vunpack.c.l.b16 %v1601
    %v1618 = vpack.c.b16 %v1611, %v1610
    %v1619 = vpack.c.b16 %v1613, %v1612
    %v1620 = vpack.c.b16 %v1615, %v1614
    %v1621 = vpack.c.b16 %v1617, %v1616
    %v1627 = vsel %vm769, %v1586, 0
    %v1630 = vsel %vm769, %v1587, 0
    %v1633 = vsel %vm769, %v1588, 0
    %v1636 = vsel %vm769, %v1589, 0
    %v1639 = vsel %vm769, %v1590, 0
    %v1642 = vsel %vm769, %v1591, 0
    %v1645 = vsel %vm769, %v1592, 0
    %v1648 = vsel %vm769, %v1593, 0
    %1650 = vmatprep.subr.bf16.mxu0 0
    %1651 = vmatpush1.bf16.msra.mxu0 0
    %1652 = vmatprep.subr.bf16.mxu0 0
    %1653 = vmatpush1.bf16.msra.mxu0 0
    %1654 = vmatprep.subr.bf16.mxu0 0
    %1655 = vmatpush1.bf16.msra.mxu0 0
    %1656 = vmatprep.subr.bf16.mxu0 0
    %1657 = vmatpush1.bf16.msra.mxu0 0
    %1658 = vmatprep.subr.bf16.mxu0 0
    %1659 = vmatpush1.bf16.msra.mxu0 %v1621
    %1660 = vmatprep.subr.bf16.mxu0 0
    %1661 = vmatpush1.bf16.msra.mxu0 %v1620
    %1662 = vmatprep.subr.bf16.mxu0 0
    %1663 = vmatpush1.bf16.msra.mxu0 %v1619
    %1664 = vmatprep.subr.bf16.mxu0 0
    %1665 = vmatpush1.bf16.msra.mxu0 %v1618
    %1666 = vmatprep.subr.bf16.mxu0 0
    %1667 = vmatpush2.bf16.msra.mxu0 0
    %1668 = vmatprep.subr.bf16.mxu0 0
    %1669 = vmatpush2.bf16.msra.mxu0 0
    %1670 = vmatprep.subr.bf16.mxu0 0
    %1671 = vmatpush2.bf16.msra.mxu0 0
    %1672 = vmatprep.subr.bf16.mxu0 0
    %1673 = vmatpush2.bf16.msra.mxu0 0
    %1674 = vmatprep.subr.bf16.mxu0 0
    %1675 = vmatpush2.bf16.msra.mxu0 0
    %1676 = vmatprep.subr.bf16.mxu0 0
    %1677 = vmatpush2.bf16.msra.mxu0 0
    %1678 = vmatprep.subr.bf16.mxu0 0
    %1679 = vmatpush2.bf16.msra.mxu0 0
    %1680 = vmatprep.subr.bf16.mxu0 0
    %1681 = vmatpush2.bf16.msra.mxu0 0
    %1682 = vmatprep.mubr.bf16.mxu0 0
    %1683 = vmatmul.mubr.bf16.gmra.mxu0 %v1627
    %v1684 = vpop.f32.mrf.mxu0
    %v1685 = vadd.f32 0.0, %v1684
    %v1686 = vpop.f32.mrf.mxu0
    %v1687 = vpop.f32.mrf.mxu0
    %v1688 = vadd.f32 0.0, %v1687
    %v1689 = vpop.f32.mrf.mxu0
    %1690 = vmatprep.mubr.bf16.mxu0 0
    %1691 = vmatmul.mubr.bf16.gmra.mxu0 %v1630
    %v1692 = vpop.f32.mrf.mxu0
    %v1693 = vadd.f32 0.0, %v1692
    %v1694 = vpop.f32.mrf.mxu0
    %v1695 = vpop.f32.mrf.mxu0
    %v1696 = vadd.f32 0.0, %v1695
    %v1697 = vpop.f32.mrf.mxu0
    %1698 = vmatprep.mubr.bf16.mxu0 0
    %1699 = vmatmul.mubr.bf16.gmra.mxu0 %v1633
    %v1700 = vpop.f32.mrf.mxu0
    %v1701 = vadd.f32 0.0, %v1700
    %v1702 = vpop.f32.mrf.mxu0
    %v1703 = vpop.f32.mrf.mxu0
    %v1704 = vadd.f32 0.0, %v1703
    %v1705 = vpop.f32.mrf.mxu0
    %1706 = vmatprep.mubr.bf16.mxu0 0
    %1707 = vmatmul.mubr.bf16.gmra.mxu0 %v1636
    %v1708 = vpop.f32.mrf.mxu0
    %v1709 = vadd.f32 0.0, %v1708
    %v1710 = vpop.f32.mrf.mxu0
    %v1711 = vpop.f32.mrf.mxu0
    %v1712 = vadd.f32 0.0, %v1711
    %v1713 = vpop.f32.mrf.mxu0
    %1714 = vmatprep.mubr.bf16.mxu0 0
    %1715 = vmatmul.mubr.bf16.gmra.mxu0 %v1639
    %v1716 = vpop.f32.mrf.mxu0
    %v1717 = vadd.f32 0.0, %v1716
    %v1718 = vpop.f32.mrf.mxu0
    %v1719 = vpop.f32.mrf.mxu0
    %v1720 = vadd.f32 0.0, %v1719
    %v1721 = vpop.f32.mrf.mxu0
    %1722 = vmatprep.mubr.bf16.mxu0 0
    %1723 = vmatmul.mubr.bf16.gmra.mxu0 %v1642
    %v1724 = vpop.f32.mrf.mxu0
    %v1725 = vadd.f32 0.0, %v1724
    %v1726 = vpop.f32.mrf.mxu0
    %v1727 = vpop.f32.mrf.mxu0
    %v1728 = vadd.f32 0.0, %v1727
    %v1729 = vpop.f32.mrf.mxu0
    %1730 = vmatprep.mubr.bf16.mxu0 0
    %1731 = vmatmul.mubr.bf16.gmra.mxu0 %v1645
    %v1732 = vpop.f32.mrf.mxu0
    %v1733 = vadd.f32 0.0, %v1732
    %v1734 = vpop.f32.mrf.mxu0
    %v1735 = vpop.f32.mrf.mxu0
    %v1736 = vadd.f32 0.0, %v1735
    %v1737 = vpop.f32.mrf.mxu0
    %1738 = vmatprep.mubr.bf16.mxu0 0
    %1739 = vmatmul.mubr.bf16.gmra.mxu0 %v1648
    %v1740 = vpop.f32.mrf.mxu0
    %v1741 = vadd.f32 0.0, %v1740
    %v1742 = vpop.f32.mrf.mxu0
    %v1743 = vpop.f32.mrf.mxu0
    %v1744 = vadd.f32 0.0, %v1743
    %v1745 = vpop.f32.mrf.mxu0
    %1746 = vdwg.mxu0
    %v1747 = vld [vmem:[#allocation13] sm:$0x1]
    %v1749 = vlaneseq
    %v1750 = vshrl.u32 %v1749, 7
    %v1751 = vsub.s32 0, %v1750
    %v1752 = vrot.slane %v1747, %v1751
    %v1754 = vadd.f32 %v1685, %v1752
    %v1755 = vadd.f32 %v1688, %v1752
    %v1756 = vadd.f32 %v1693, %v1752
    %v1757 = vadd.f32 %v1696, %v1752
    %v1758 = vadd.f32 %v1701, %v1752
    %v1759 = vadd.f32 %v1704, %v1752
    %v1760 = vadd.f32 %v1709, %v1752
    %v1761 = vadd.f32 %v1712, %v1752
    %v1762 = vadd.f32 %v1717, %v1752
    %v1763 = vadd.f32 %v1720, %v1752
    %v1764 = vadd.f32 %v1725, %v1752
    %v1765 = vadd.f32 %v1728, %v1752
    %v1766 = vadd.f32 %v1733, %v1752
    %v1767 = vadd.f32 %v1736, %v1752
    %v1768 = vadd.f32 %v1741, %v1752
    %v1769 = vadd.f32 %v1744, %v1752
    %v1770 = vmax.f32 %v1754, 0.0
    %v1771 = vmax.f32 %v1755, 0.0
    %v1772 = vmax.f32 %v1756, 0.0
    %v1773 = vmax.f32 %v1757, 0.0
    %v1774 = vmax.f32 %v1758, 0.0
    %v1775 = vmax.f32 %v1759, 0.0
    %v1776 = vmax.f32 %v1760, 0.0
    %v1777 = vmax.f32 %v1761, 0.0
    %v1778 = vmax.f32 %v1762, 0.0
    %v1779 = vmax.f32 %v1763, 0.0
    %v1780 = vmax.f32 %v1764, 0.0
    %v1781 = vmax.f32 %v1765, 0.0
    %v1782 = vmax.f32 %v1766, 0.0
    %v1783 = vmax.f32 %v1767, 0.0
    %v1784 = vmax.f32 %v1768, 0.0
    %v1785 = vmax.f32 %v1769, 0.0
    %vm1786 = vcmp.ne.f32.partialorder %v1754, %v1754
    %vm1787 = vcmp.ne.f32.partialorder %v1755, %v1755
    %vm1788 = vcmp.ne.f32.partialorder %v1756, %v1756
    %vm1789 = vcmp.ne.f32.partialorder %v1757, %v1757
    %vm1790 = vcmp.ne.f32.partialorder %v1758, %v1758
    %vm1791 = vcmp.ne.f32.partialorder %v1759, %v1759
    %vm1792 = vcmp.ne.f32.partialorder %v1760, %v1760
    %vm1793 = vcmp.ne.f32.partialorder %v1761, %v1761
    %vm1794 = vcmp.ne.f32.partialorder %v1762, %v1762
    %vm1795 = vcmp.ne.f32.partialorder %v1763, %v1763
    %vm1796 = vcmp.ne.f32.partialorder %v1764, %v1764
    %vm1797 = vcmp.ne.f32.partialorder %v1765, %v1765
    %vm1798 = vcmp.ne.f32.partialorder %v1766, %v1766
    %vm1799 = vcmp.ne.f32.partialorder %v1767, %v1767
    %vm1800 = vcmp.ne.f32.partialorder %v1768, %v1768
    %vm1801 = vcmp.ne.f32.partialorder %v1769, %v1769
    %v1802 = vadd.f32 %v1754, 0.0
    %v1803 = vadd.f32 %v1755, 0.0
    %v1804 = vadd.f32 %v1756, 0.0
    %v1805 = vadd.f32 %v1757, 0.0
    %v1806 = vadd.f32 %v1758, 0.0
    %v1807 = vadd.f32 %v1759, 0.0
    %v1808 = vadd.f32 %v1760, 0.0
    %v1809 = vadd.f32 %v1761, 0.0
    %v1810 = vadd.f32 %v1762, 0.0
    %v1811 = vadd.f32 %v1763, 0.0
    %v1812 = vadd.f32 %v1764, 0.0
    %v1813 = vadd.f32 %v1765, 0.0
    %v1814 = vadd.f32 %v1766, 0.0
    %v1815 = vadd.f32 %v1767, 0.0
    %v1816 = vadd.f32 %v1768, 0.0
    %v1817 = vadd.f32 %v1769, 0.0
    %v1818 = vand.u32 2147483647, %v1754
    %v1819 = vand.u32 2147483647, %v1755
    %v1820 = vand.u32 2147483647, %v1756
    %v1821 = vand.u32 2147483647, %v1757
    %v1822 = vand.u32 2147483647, %v1758
    %v1823 = vand.u32 2147483647, %v1759
    %v1824 = vand.u32 2147483647, %v1760
    %v1825 = vand.u32 2147483647, %v1761
    %v1826 = vand.u32 2147483647, %v1762
    %v1827 = vand.u32 2147483647, %v1763
    %v1828 = vand.u32 2147483647, %v1764
    %v1829 = vand.u32 2147483647, %v1765
    %v1830 = vand.u32 2147483647, %v1766
    %v1831 = vand.u32 2147483647, %v1767
    %v1832 = vand.u32 2147483647, %v1768
    %v1833 = vand.u32 2147483647, %v1769
    %v1834 = vsub.f32 0.0, %v1818
    %v1835 = vsub.f32 0.0, %v1819
    %v1836 = vsub.f32 0.0, %v1820
    %v1837 = vsub.f32 0.0, %v1821
    %v1838 = vsub.f32 0.0, %v1822
    %v1839 = vsub.f32 0.0, %v1823
    %v1840 = vsub.f32 0.0, %v1824
    %v1841 = vsub.f32 0.0, %v1825
    %v1842 = vsub.f32 0.0, %v1826
    %v1843 = vsub.f32 0.0, %v1827
    %v1844 = vsub.f32 0.0, %v1828
    %v1845 = vsub.f32 0.0, %v1829
    %v1846 = vsub.f32 0.0, %v1830
    %v1847 = vsub.f32 0.0, %v1831
    %v1848 = vsub.f32 0.0, %v1832
    %v1849 = vsub.f32 0.0, %v1833
    %v1850 = vmul.f32 %v1834, 1.442695
    %v1851 = vpow.pop %v1850
    %v1852 = vmul.f32 %v1835, 1.442695
    %v1853 = vpow.pop %v1852
    %v1854 = vmul.f32 %v1836, 1.442695
    %v1855 = vpow.pop %v1854
    %v1856 = vmul.f32 %v1837, 1.442695
    %v1857 = vpow.pop %v1856
    %v1858 = vmul.f32 %v1838, 1.442695
    %v1859 = vpow.pop %v1858
    %v1860 = vmul.f32 %v1839, 1.442695
    %v1861 = vpow.pop %v1860
    %v1862 = vmul.f32 %v1840, 1.442695
    %v1863 = vpow.pop %v1862
    %v1864 = vmul.f32 %v1841, 1.442695
    %v1865 = vpow.pop %v1864
    %v1866 = vmul.f32 %v1842, 1.442695
    %v1867 = vpow.pop %v1866
    %v1868 = vmul.f32 %v1843, 1.442695
    %v1869 = vpow.pop %v1868
    %v1870 = vmul.f32 %v1844, 1.442695
    %v1871 = vpow.pop %v1870
    %v1872 = vmul.f32 %v1845, 1.442695
    %v1873 = vpow.pop %v1872
    %v1874 = vmul.f32 %v1846, 1.442695
    %v1875 = vpow.pop %v1874
    %v1876 = vmul.f32 %v1847, 1.442695
    %v1877 = vpow.pop %v1876
    %v1878 = vmul.f32 %v1848, 1.442695
    %v1879 = vpow.pop %v1878
    %v1880 = vmul.f32 %v1849, 1.442695
    %v1881 = vpow.pop %v1880
    %v1882 = vadd.f32 %v1851, 1.0
    %v1883 = vlog2.pop %v1882
    %v1884 = vmul.f32 %v1883, 0.6931472
    %v1885 = vmul.f32 -0.5, %v1851
    %v1886 = vadd.f32 %v1885, 1.0
    %v1887 = vmul.f32 %v1886, %v1851
    %v1888 = vand.u32 2147483647, %v1851
    %vm1889 = vcmp.lt.f32.partialorder %v1888, 0.0004427343
    %v1890 = vsel %vm1889, %v1887, %v1884
    %v1891 = vadd.f32 %v1853, 1.0
    %v1892 = vlog2.pop %v1891
    %v1893 = vmul.f32 %v1892, 0.6931472
    %v1894 = vmul.f32 -0.5, %v1853
    %v1895 = vadd.f32 %v1894, 1.0
    %v1896 = vmul.f32 %v1895, %v1853
    %v1897 = vand.u32 2147483647, %v1853
    %vm1898 = vcmp.lt.f32.partialorder %v1897, 0.0004427343
    %v1899 = vsel %vm1898, %v1896, %v1893
    %v1900 = vadd.f32 %v1855, 1.0
    %v1901 = vlog2.pop %v1900
    %v1902 = vmul.f32 %v1901, 0.6931472
    %v1903 = vmul.f32 -0.5, %v1855
    %v1904 = vadd.f32 %v1903, 1.0
    %v1905 = vmul.f32 %v1904, %v1855
    %v1906 = vand.u32 2147483647, %v1855
    %vm1907 = vcmp.lt.f32.partialorder %v1906, 0.0004427343
    %v1908 = vsel %vm1907, %v1905, %v1902
    %v1909 = vadd.f32 %v1857, 1.0
    %v1910 = vlog2.pop %v1909
    %v1911 = vmul.f32 %v1910, 0.6931472
    %v1912 = vmul.f32 -0.5, %v1857
    %v1913 = vadd.f32 %v1912, 1.0
    %v1914 = vmul.f32 %v1913, %v1857
    %v1915 = vand.u32 2147483647, %v1857
    %vm1916 = vcmp.lt.f32.partialorder %v1915, 0.0004427343
    %v1917 = vsel %vm1916, %v1914, %v1911
    %v1918 = vadd.f32 %v1859, 1.0
    %v1919 = vlog2.pop %v1918
    %v1920 = vmul.f32 %v1919, 0.6931472
    %v1921 = vmul.f32 -0.5, %v1859
    %v1922 = vadd.f32 %v1921, 1.0
    %v1923 = vmul.f32 %v1922, %v1859
    %v1924 = vand.u32 2147483647, %v1859
    %vm1925 = vcmp.lt.f32.partialorder %v1924, 0.0004427343
    %v1926 = vsel %vm1925, %v1923, %v1920
    %v1927 = vadd.f32 %v1861, 1.0
    %v1928 = vlog2.pop %v1927
    %v1929 = vmul.f32 %v1928, 0.6931472
    %v1930 = vmul.f32 -0.5, %v1861
    %v1931 = vadd.f32 %v1930, 1.0
    %v1932 = vmul.f32 %v1931, %v1861
    %v1933 = vand.u32 2147483647, %v1861
    %vm1934 = vcmp.lt.f32.partialorder %v1933, 0.0004427343
    %v1935 = vsel %vm1934, %v1932, %v1929
    %v1936 = vadd.f32 %v1863, 1.0
    %v1937 = vlog2.pop %v1936
    %v1938 = vmul.f32 %v1937, 0.6931472
    %v1939 = vmul.f32 -0.5, %v1863
    %v1940 = vadd.f32 %v1939, 1.0
    %v1941 = vmul.f32 %v1940, %v1863
    %v1942 = vand.u32 2147483647, %v1863
    %vm1943 = vcmp.lt.f32.partialorder %v1942, 0.0004427343
    %v1944 = vsel %vm1943, %v1941, %v1938
    %v1945 = vadd.f32 %v1865, 1.0
    %v1946 = vlog2.pop %v1945
    %v1947 = vmul.f32 %v1946, 0.6931472
    %v1948 = vmul.f32 -0.5, %v1865
    %v1949 = vadd.f32 %v1948, 1.0
    %v1950 = vmul.f32 %v1949, %v1865
    %v1951 = vand.u32 2147483647, %v1865
    %vm1952 = vcmp.lt.f32.partialorder %v1951, 0.0004427343
    %v1953 = vsel %vm1952, %v1950, %v1947
    %v1954 = vadd.f32 %v1867, 1.0
    %v1955 = vlog2.pop %v1954
    %v1956 = vmul.f32 %v1955, 0.6931472
    %v1957 = vmul.f32 -0.5, %v1867
    %v1958 = vadd.f32 %v1957, 1.0
    %v1959 = vmul.f32 %v1958, %v1867
    %v1960 = vand.u32 2147483647, %v1867
    %vm1961 = vcmp.lt.f32.partialorder %v1960, 0.0004427343
    %v1962 = vsel %vm1961, %v1959, %v1956
    %v1963 = vadd.f32 %v1869, 1.0
    %v1964 = vlog2.pop %v1963
    %v1965 = vmul.f32 %v1964, 0.6931472
    %v1966 = vmul.f32 -0.5, %v1869
    %v1967 = vadd.f32 %v1966, 1.0
    %v1968 = vmul.f32 %v1967, %v1869
    %v1969 = vand.u32 2147483647, %v1869
    %vm1970 = vcmp.lt.f32.partialorder %v1969, 0.0004427343
    %v1971 = vsel %vm1970, %v1968, %v1965
    %v1972 = vadd.f32 %v1871, 1.0
    %v1973 = vlog2.pop %v1972
    %v1974 = vmul.f32 %v1973, 0.6931472
    %v1975 = vmul.f32 -0.5, %v1871
    %v1976 = vadd.f32 %v1975, 1.0
    %v1977 = vmul.f32 %v1976, %v1871
    %v1978 = vand.u32 2147483647, %v1871
    %vm1979 = vcmp.lt.f32.partialorder %v1978, 0.0004427343
    %v1980 = vsel %vm1979, %v1977, %v1974
    %v1981 = vadd.f32 %v1873, 1.0
    %v1982 = vlog2.pop %v1981
    %v1983 = vmul.f32 %v1982, 0.6931472
    %v1984 = vmul.f32 -0.5, %v1873
    %v1985 = vadd.f32 %v1984, 1.0
    %v1986 = vmul.f32 %v1985, %v1873
    %v1987 = vand.u32 2147483647, %v1873
    %vm1988 = vcmp.lt.f32.partialorder %v1987, 0.0004427343
    %v1989 = vsel %vm1988, %v1986, %v1983
    %v1990 = vadd.f32 %v1875, 1.0
    %v1991 = vlog2.pop %v1990
    %v1992 = vmul.f32 %v1991, 0.6931472
    %v1993 = vmul.f32 -0.5, %v1875
    %v1994 = vadd.f32 %v1993, 1.0
    %v1995 = vmul.f32 %v1994, %v1875
    %v1996 = vand.u32 2147483647, %v1875
    %vm1997 = vcmp.lt.f32.partialorder %v1996, 0.0004427343
    %v1998 = vsel %vm1997, %v1995, %v1992
    %v1999 = vadd.f32 %v1877, 1.0
    %v2000 = vlog2.pop %v1999
    %v2001 = vmul.f32 %v2000, 0.6931472
    %v2002 = vmul.f32 -0.5, %v1877
    %v2003 = vadd.f32 %v2002, 1.0
    %v2004 = vmul.f32 %v2003, %v1877
    %v2005 = vand.u32 2147483647, %v1877
    %vm2006 = vcmp.lt.f32.partialorder %v2005, 0.0004427343
    %v2007 = vsel %vm2006, %v2004, %v2001
    %v2008 = vadd.f32 %v1879, 1.0
    %v2009 = vlog2.pop %v2008
    %v2010 = vmul.f32 %v2009, 0.6931472
    %v2011 = vmul.f32 -0.5, %v1879
    %v2012 = vadd.f32 %v2011, 1.0
    %v2013 = vmul.f32 %v2012, %v1879
    %v2014 = vand.u32 2147483647, %v1879
    %vm2015 = vcmp.lt.f32.partialorder %v2014, 0.0004427343
    %v2016 = vsel %vm2015, %v2013, %v2010
    %v2017 = vadd.f32 %v1881, 1.0
    %v2018 = vlog2.pop %v2017
    %v2019 = vmul.f32 %v2018, 0.6931472
    %v2020 = vmul.f32 -0.5, %v1881
    %v2021 = vadd.f32 %v2020, 1.0
    %v2022 = vmul.f32 %v2021, %v1881
    %v2023 = vand.u32 2147483647, %v1881
    %vm2024 = vcmp.lt.f32.partialorder %v2023, 0.0004427343
    %v2025 = vsel %vm2024, %v2022, %v2019
    %v2026 = vadd.f32 %v1770, %v1890
    %v2027 = vadd.f32 %v1771, %v1899
    %v2028 = vadd.f32 %v1772, %v1908
    %v2029 = vadd.f32 %v1773, %v1917
    %v2030 = vadd.f32 %v1774, %v1926
    %v2031 = vadd.f32 %v1775, %v1935
    %v2032 = vadd.f32 %v1776, %v1944
    %v2033 = vadd.f32 %v1777, %v1953
    %v2034 = vadd.f32 %v1778, %v1962
    %v2035 = vadd.f32 %v1779, %v1971
    %v2036 = vadd.f32 %v1780, %v1980
    %v2037 = vadd.f32 %v1781, %v1989
    %v2038 = vadd.f32 %v1782, %v1998
    %v2039 = vadd.f32 %v1783, %v2007
    %v2040 = vadd.f32 %v1784, %v2016
    %v2041 = vadd.f32 %v1785, %v2025
    %v2042 = vsel %vm1786, %v1802, %v2026
    %v2043 = vsel %vm1787, %v1803, %v2027
    %v2044 = vsel %vm1788, %v1804, %v2028
    %v2045 = vsel %vm1789, %v1805, %v2029
    %v2046 = vsel %vm1790, %v1806, %v2030
    %v2047 = vsel %vm1791, %v1807, %v2031
    %v2048 = vsel %vm1792, %v1808, %v2032
    %v2049 = vsel %vm1793, %v1809, %v2033
    %v2050 = vsel %vm1794, %v1810, %v2034
    %v2051 = vsel %vm1795, %v1811, %v2035
    %v2052 = vsel %vm1796, %v1812, %v2036
    %v2053 = vsel %vm1797, %v1813, %v2037
    %v2054 = vsel %vm1798, %v1814, %v2038
    %v2055 = vsel %vm1799, %v1815, %v2039
    %v2056 = vsel %vm1800, %v1816, %v2040
    %v2057 = vsel %vm1801, %v1817, %v2041
    %2058 = vst.msk [vmem:[#allocation2] sm:$0xff] %vm769, %v2042
    %2059 = vst.msk [vmem:[#allocation2 + $0x8] sm:$0xff] %vm769, %v2043
    %2060 = vst.msk [vmem:[#allocation2 + $0x10] sm:$0xff] %vm769, %v2044
    %2061 = vst.msk [vmem:[#allocation2 + $0x18] sm:$0xff] %vm769, %v2045
    %2062 = vst.msk [vmem:[#allocation2 + $0x20] sm:$0xff] %vm769, %v2046
    %2063 = vst.msk [vmem:[#allocation2 + $0x28] sm:$0xff] %vm769, %v2047
    %2064 = vst.msk [vmem:[#allocation2 + $0x30] sm:$0xff] %vm769, %v2048
    %2065 = vst.msk [vmem:[#allocation2 + $0x38] sm:$0xff] %vm769, %v2049
    %2066 = vst.msk [vmem:[#allocation2 + $0x40] sm:$0xff] %vm769, %v2050
    %2067 = vst.msk [vmem:[#allocation2 + $0x48] sm:$0xff] %vm769, %v2051
    %2068 = vst.msk [vmem:[#allocation2 + $0x50] sm:$0xff] %vm769, %v2052
    %2069 = vst.msk [vmem:[#allocation2 + $0x58] sm:$0xff] %vm769, %v2053
    %2070 = vst.msk [vmem:[#allocation2 + $0x60] sm:$0xff] %vm769, %v2054
    %2071 = vst.msk [vmem:[#allocation2 + $0x68] sm:$0xff] %vm769, %v2055
    %2072 = vst.msk [vmem:[#allocation2 + $0x70] sm:$0xff] %vm769, %v2056
    %2073 = vst.msk [vmem:[#allocation2 + $0x78] sm:$0xff] %vm769, %v2057
    %v2074 = vmul.f32 %v2042, %v1570
    %v2075 = vmul.f32 %v2043, %v1571
    %v2076 = vmul.f32 %v2044, %v1572
    %v2077 = vmul.f32 %v2045, %v1573
    %v2078 = vmul.f32 %v2046, %v1574
    %v2079 = vmul.f32 %v2047, %v1575
    %v2080 = vmul.f32 %v2048, %v1576
    %v2081 = vmul.f32 %v2049, %v1577
    %v2082 = vmul.f32 %v2050, %v1578
    %v2083 = vmul.f32 %v2051, %v1579
    %v2084 = vmul.f32 %v2052, %v1580
    %v2085 = vmul.f32 %v2053, %v1581
    %v2086 = vmul.f32 %v2054, %v1582
    %v2087 = vmul.f32 %v2055, %v1583
    %v2088 = vmul.f32 %v2056, %v1584
    %v2089 = vmul.f32 %v2057, %v1585
    %2090 = vst.msk [vmem:[#allocation3] sm:$0xff] %vm769, %v2074
    %2091 = vst.msk [vmem:[#allocation3 + $0x8] sm:$0xff] %vm769, %v2075
    %2092 = vst.msk [vmem:[#allocation3 + $0x10] sm:$0xff] %vm769, %v2076
    %2093 = vst.msk [vmem:[#allocation3 + $0x18] sm:$0xff] %vm769, %v2077
    %2094 = vst.msk [vmem:[#allocation3 + $0x20] sm:$0xff] %vm769, %v2078
    %2095 = vst.msk [vmem:[#allocation3 + $0x28] sm:$0xff] %vm769, %v2079
    %2096 = vst.msk [vmem:[#allocation3 + $0x30] sm:$0xff] %vm769, %v2080
    %2097 = vst.msk [vmem:[#allocation3 + $0x38] sm:$0xff] %vm769, %v2081
    %2098 = vst.msk [vmem:[#allocation3 + $0x40] sm:$0xff] %vm769, %v2082
    %2099 = vst.msk [vmem:[#allocation3 + $0x48] sm:$0xff] %vm769, %v2083
    %2100 = vst.msk [vmem:[#allocation3 + $0x50] sm:$0xff] %vm769, %v2084
    %2101 = vst.msk [vmem:[#allocation3 + $0x58] sm:$0xff] %vm769, %v2085
    %2102 = vst.msk [vmem:[#allocation3 + $0x60] sm:$0xff] %vm769, %v2086
    %2103 = vst.msk [vmem:[#allocation3 + $0x68] sm:$0xff] %vm769, %v2087
    %2104 = vst.msk [vmem:[#allocation3 + $0x70] sm:$0xff] %vm769, %v2088
    %2105 = vst.msk [vmem:[#allocation3 + $0x78] sm:$0xff] %vm769, %v2089
    %2122 = vrot.lane.b32.xlu0 %v1685, 64
    %v2123 = vpop.permute.xlu0 %2122
    %2124 = vrot.lane.b32.xlu0 %v1688, 64
    %v2125 = vpop.permute.xlu0 %2124
    %2126 = vrot.lane.b32.xlu0 %v1693, 64
    %v2127 = vpop.permute.xlu0 %2126
    %2128 = vrot.lane.b32.xlu0 %v1696, 64
    %v2129 = vpop.permute.xlu0 %2128
    %2130 = vrot.lane.b32.xlu0 %v1701, 64
    %v2131 = vpop.permute.xlu0 %2130
    %2132 = vrot.lane.b32.xlu0 %v1704, 64
    %v2133 = vpop.permute.xlu0 %2132
    %2134 = vrot.lane.b32.xlu0 %v1709, 64
    %v2135 = vpop.permute.xlu0 %2134
    %2136 = vrot.lane.b32.xlu0 %v1712, 64
    %v2137 = vpop.permute.xlu0 %2136
    %2138 = vrot.lane.b32.xlu0 %v1717, 64
    %v2139 = vpop.permute.xlu0 %2138
    %2140 = vrot.lane.b32.xlu0 %v1720, 64
    %v2141 = vpop.permute.xlu0 %2140
    %2142 = vrot.lane.b32.xlu0 %v1725, 64
    %v2143 = vpop.permute.xlu0 %2142
    %2144 = vrot.lane.b32.xlu0 %v1728, 64
    %v2145 = vpop.permute.xlu0 %2144
    %2146 = vrot.lane.b32.xlu0 %v1733, 64
    %v2147 = vpop.permute.xlu0 %2146
    %2148 = vrot.lane.b32.xlu0 %v1736, 64
    %v2149 = vpop.permute.xlu0 %2148
    %2150 = vrot.lane.b32.xlu0 %v1741, 64
    %v2151 = vpop.permute.xlu0 %2150
    %2152 = vrot.lane.b32.xlu0 %v1744, 64
    %v2153 = vpop.permute.xlu0 %2152
    %vm2170 = vcmask 130048
    %2171 = vst.msk [vmem:[#allocation4] sm:$0xff] %vm2170, %v2123
    %2172 = vst.msk [vmem:[#allocation4 + $0x8] sm:$0xff] %vm2170, %v2125
    %2173 = vst.msk [vmem:[#allocation4 + $0x10] sm:$0xff] %vm2170, %v2127
    %2174 = vst.msk [vmem:[#allocation4 + $0x18] sm:$0xff] %vm2170, %v2129
    %2175 = vst.msk [vmem:[#allocation4 + $0x20] sm:$0xff] %vm2170, %v2131
    %2176 = vst.msk [vmem:[#allocation4 + $0x28] sm:$0xff] %vm2170, %v2133
    %2177 = vst.msk [vmem:[#allocation4 + $0x30] sm:$0xff] %vm2170, %v2135
    %2178 = vst.msk [vmem:[#allocation4 + $0x38] sm:$0xff] %vm2170, %v2137
    %2179 = vst.msk [vmem:[#allocation4 + $0x40] sm:$0xff] %vm2170, %v2139
    %2180 = vst.msk [vmem:[#allocation4 + $0x48] sm:$0xff] %vm2170, %v2141
    %2181 = vst.msk [vmem:[#allocation4 + $0x50] sm:$0xff] %vm2170, %v2143
    %2182 = vst.msk [vmem:[#allocation4 + $0x58] sm:$0xff] %vm2170, %v2145
    %2183 = vst.msk [vmem:[#allocation4 + $0x60] sm:$0xff] %vm2170, %v2147
    %2184 = vst.msk [vmem:[#allocation4 + $0x68] sm:$0xff] %vm2170, %v2149
    %2185 = vst.msk [vmem:[#allocation4 + $0x70] sm:$0xff] %vm2170, %v2151
    %2186 = vst.msk [vmem:[#allocation4 + $0x78] sm:$0xff] %vm2170, %v2153
    %2187 = vrot.lane.b32.xlu0 %v1685, 48
    %v2188 = vpop.permute.xlu0 %2187
    %2189 = vrot.lane.b32.xlu0 %v1688, 48
    %v2190 = vpop.permute.xlu0 %2189
    %2191 = vrot.lane.b32.xlu0 %v1693, 48
    %v2192 = vpop.permute.xlu0 %2191
    %2193 = vrot.lane.b32.xlu0 %v1696, 48
    %v2194 = vpop.permute.xlu0 %2193
    %2195 = vrot.lane.b32.xlu0 %v1701, 48
    %v2196 = vpop.permute.xlu0 %2195
    %2197 = vrot.lane.b32.xlu0 %v1704, 48
    %v2198 = vpop.permute.xlu0 %2197
    %2199 = vrot.lane.b32.xlu0 %v1709, 48
    %v2200 = vpop.permute.xlu0 %2199
    %2201 = vrot.lane.b32.xlu0 %v1712, 48
    %v2202 = vpop.permute.xlu0 %2201
    %2203 = vrot.lane.b32.xlu0 %v1717, 48
    %v2204 = vpop.permute.xlu0 %2203
    %2205 = vrot.lane.b32.xlu0 %v1720, 48
    %v2206 = vpop.permute.xlu0 %2205
    %2207 = vrot.lane.b32.xlu0 %v1725, 48
    %v2208 = vpop.permute.xlu0 %2207
    %2209 = vrot.lane.b32.xlu0 %v1728, 48
    %v2210 = vpop.permute.xlu0 %2209
    %2211 = vrot.lane.b32.xlu0 %v1733, 48
    %v2212 = vpop.permute.xlu0 %2211
    %2213 = vrot.lane.b32.xlu0 %v1736, 48
    %v2214 = vpop.permute.xlu0 %2213
    %2215 = vrot.lane.b32.xlu0 %v1741, 48
    %v2216 = vpop.permute.xlu0 %2215
    %2217 = vrot.lane.b32.xlu0 %v1744, 48
    %v2218 = vpop.permute.xlu0 %2217
    %2235 = vst.msk [vmem:[#allocation5] sm:$0xff] %vm2170, %v2188
    %2236 = vst.msk [vmem:[#allocation5 + $0x8] sm:$0xff] %vm2170, %v2190
    %2237 = vst.msk [vmem:[#allocation5 + $0x10] sm:$0xff] %vm2170, %v2192
    %2238 = vst.msk [vmem:[#allocation5 + $0x18] sm:$0xff] %vm2170, %v2194
    %2239 = vst.msk [vmem:[#allocation5 + $0x20] sm:$0xff] %vm2170, %v2196
    %2240 = vst.msk [vmem:[#allocation5 + $0x28] sm:$0xff] %vm2170, %v2198
    %2241 = vst.msk [vmem:[#allocation5 + $0x30] sm:$0xff] %vm2170, %v2200
    %2242 = vst.msk [vmem:[#allocation5 + $0x38] sm:$0xff] %vm2170, %v2202
    %2243 = vst.msk [vmem:[#allocation5 + $0x40] sm:$0xff] %vm2170, %v2204
    %2244 = vst.msk [vmem:[#allocation5 + $0x48] sm:$0xff] %vm2170, %v2206
    %2245 = vst.msk [vmem:[#allocation5 + $0x50] sm:$0xff] %vm2170, %v2208
    %2246 = vst.msk [vmem:[#allocation5 + $0x58] sm:$0xff] %vm2170, %v2210
    %2247 = vst.msk [vmem:[#allocation5 + $0x60] sm:$0xff] %vm2170, %v2212
    %2248 = vst.msk [vmem:[#allocation5 + $0x68] sm:$0xff] %vm2170, %v2214
    %2249 = vst.msk [vmem:[#allocation5 + $0x70] sm:$0xff] %vm2170, %v2216
    %2250 = vst.msk [vmem:[#allocation5 + $0x78] sm:$0xff] %vm2170, %v2218
    %v2251 = vld [vmem:[#allocation19] sm:$0x1]
    %v2253 = vlaneseq
    %v2254 = vshrl.u32 %v2253, 7
    %v2255 = vsub.s32 0, %v2254
    %v2256 = vrot.slane %v2251, %v2255
    %v2258 = vmul.f32 %v1570, %v2256
    %v2259 = vmul.f32 %v1571, %v2256
    %v2260 = vmul.f32 %v1572, %v2256
    %v2261 = vmul.f32 %v1573, %v2256
    %v2262 = vmul.f32 %v1574, %v2256
    %v2263 = vmul.f32 %v1575, %v2256
    %v2264 = vmul.f32 %v1576, %v2256
    %v2265 = vmul.f32 %v1577, %v2256
    %v2266 = vmul.f32 %v1578, %v2256
    %v2267 = vmul.f32 %v1579, %v2256
    %v2268 = vmul.f32 %v1580, %v2256
    %v2269 = vmul.f32 %v1581, %v2256
    %v2270 = vmul.f32 %v1582, %v2256
    %v2271 = vmul.f32 %v1583, %v2256
    %v2272 = vmul.f32 %v1584, %v2256
    %v2273 = vmul.f32 %v1585, %v2256
    %2274 = vst.msk [vmem:[#allocation6] sm:$0xff] %vm769, %v2258
    %2275 = vst.msk [vmem:[#allocation6 + $0x8] sm:$0xff] %vm769, %v2259
    %2276 = vst.msk [vmem:[#allocation6 + $0x10] sm:$0xff] %vm769, %v2260
    %2277 = vst.msk [vmem:[#allocation6 + $0x18] sm:$0xff] %vm769, %v2261
    %2278 = vst.msk [vmem:[#allocation6 + $0x20] sm:$0xff] %vm769, %v2262
    %2279 = vst.msk [vmem:[#allocation6 + $0x28] sm:$0xff] %vm769, %v2263
    %2280 = vst.msk [vmem:[#allocation6 + $0x30] sm:$0xff] %vm769, %v2264
    %2281 = vst.msk [vmem:[#allocation6 + $0x38] sm:$0xff] %vm769, %v2265
    %2282 = vst.msk [vmem:[#allocation6 + $0x40] sm:$0xff] %vm769, %v2266
    %2283 = vst.msk [vmem:[#allocation6 + $0x48] sm:$0xff] %vm769, %v2267
    %2284 = vst.msk [vmem:[#allocation6 + $0x50] sm:$0xff] %vm769, %v2268
    %2285 = vst.msk [vmem:[#allocation6 + $0x58] sm:$0xff] %vm769, %v2269
    %2286 = vst.msk [vmem:[#allocation6 + $0x60] sm:$0xff] %vm769, %v2270
    %2287 = vst.msk [vmem:[#allocation6 + $0x68] sm:$0xff] %vm769, %v2271
    %2288 = vst.msk [vmem:[#allocation6 + $0x70] sm:$0xff] %vm769, %v2272
    %2289 = vst.msk [vmem:[#allocation6 + $0x78] sm:$0xff] %vm769, %v2273
    loop: start=0, step=1, limit=16
    $region94: #{mamba_layer_forward.1} parent=1 // loop_pre_header
      _
    $region95: #{mamba_layer_forward.1} parent=1 // loop_header
      %s2291 = sphi 0, %s2295
      %p2292 = scmp.ge.s32.totalorder %s2291, 16
      %v2296 = vphi 0.0, %v3397
      %v2297 = vphi 0.0, %v3398
      %v2298 = vphi 0.0, %v3399
      %v2299 = vphi 0.0, %v3400
      %v2300 = vphi 0.0, %v3401
      %v2301 = vphi 0.0, %v3402
      %v2302 = vphi 0.0, %v3403
      %v2303 = vphi 0.0, %v3404
    $region96: #{mamba_layer_forward.1} parent=1 // loop_header_branch
      %2294 = sbr.rel (%p2292) target = $region100
    $region97: #{mamba_layer_forward.1} parent=1 // loop_body
      %s2304 = smul.u32 %s2291, 8
      %s2305 = scalar_lea.vmem [#allocation2], %s2304
      %v2306 = vld [vmem:[%s2305] sm:$0xff]
      %v2307 = vpack.c.bf16 %v2306, %v2306
      %s2308 = scalar_lea.vmem [#allocation3], %s2304
      %v2309 = vld [vmem:[%s2308] sm:$0xff]
      %v2310 = vpack.c.bf16 %v2309, %v2309
      %s2311 = scalar_lea.vmem [#allocation4], %s2304
      %v2312 = vld [vmem:[%s2311] sm:$0xff]
      %v2313 = vpack.c.bf16 %v2312, %v2312
      %v2314 = vld [vmem:[#allocation18] sm:$0xff]
      %v2315 = vld [vmem:[#allocation18 + $0x8] sm:$0xff]
      %v2316 = vld [vmem:[#allocation18 + $0x10] sm:$0xff]
      %v2317 = vld [vmem:[#allocation18 + $0x18] sm:$0xff]
      %v2318 = vld [vmem:[#allocation18 + $0x20] sm:$0xff]
      %v2319 = vld [vmem:[#allocation18 + $0x28] sm:$0xff]
      %v2320 = vld [vmem:[#allocation18 + $0x30] sm:$0xff]
      %v2321 = vld [vmem:[#allocation18 + $0x38] sm:$0xff]
      %v2322 = vld [vmem:[#allocation18 + $0x40] sm:$0xff]
      %v2323 = vld [vmem:[#allocation18 + $0x48] sm:$0xff]
      %v2324 = vld [vmem:[#allocation18 + $0x50] sm:$0xff]
      %v2325 = vld [vmem:[#allocation18 + $0x58] sm:$0xff]
      %v2326 = vld [vmem:[#allocation18 + $0x60] sm:$0xff]
      %v2327 = vld [vmem:[#allocation18 + $0x68] sm:$0xff]
      %v2328 = vld [vmem:[#allocation18 + $0x70] sm:$0xff]
      %v2329 = vld [vmem:[#allocation18 + $0x78] sm:$0xff]
      %v2330 = vld [vmem:[#allocation18 + $0x80] sm:$0xff]
      %v2331 = vld [vmem:[#allocation18 + $0x88] sm:$0xff]
      %v2332 = vld [vmem:[#allocation18 + $0x90] sm:$0xff]
      %v2333 = vld [vmem:[#allocation18 + $0x98] sm:$0xff]
      %v2334 = vld [vmem:[#allocation18 + $0xa0] sm:$0xff]
      %v2335 = vld [vmem:[#allocation18 + $0xa8] sm:$0xff]
      %v2336 = vld [vmem:[#allocation18 + $0xb0] sm:$0xff]
      %v2337 = vld [vmem:[#allocation18 + $0xb8] sm:$0xff]
      %v2338 = vld [vmem:[#allocation18 + $0xc0] sm:$0xff]
      %v2339 = vld [vmem:[#allocation18 + $0xc8] sm:$0xff]
      %v2340 = vld [vmem:[#allocation18 + $0xd0] sm:$0xff]
      %v2341 = vld [vmem:[#allocation18 + $0xd8] sm:$0xff]
      %v2342 = vld [vmem:[#allocation18 + $0xe0] sm:$0xff]
      %v2343 = vld [vmem:[#allocation18 + $0xe8] sm:$0xff]
      %v2344 = vld [vmem:[#allocation18 + $0xf0] sm:$0xff]
      %v2345 = vld [vmem:[#allocation18 + $0xf8] sm:$0xff]
      %v2378 = vunpack.c.l.b16 %v2314
      %v2379 = vunpack.c.h.b16 %v2314
      %v2380 = vunpack.c.l.b16 %v2315
      %v2381 = vunpack.c.h.b16 %v2315
      %v2382 = vunpack.c.l.b16 %v2316
      %v2383 = vunpack.c.h.b16 %v2316
      %v2384 = vunpack.c.l.b16 %v2317
      %v2385 = vunpack.c.h.b16 %v2317
      %v2386 = vunpack.c.l.b16 %v2318
      %v2387 = vunpack.c.h.b16 %v2318
      %v2388 = vunpack.c.l.b16 %v2319
      %v2389 = vunpack.c.h.b16 %v2319
      %v2390 = vunpack.c.l.b16 %v2320
      %v2391 = vunpack.c.h.b16 %v2320
      %v2392 = vunpack.c.l.b16 %v2321
      %v2393 = vunpack.c.h.b16 %v2321
      %v2394 = vunpack.c.l.b16 %v2322
      %v2395 = vunpack.c.h.b16 %v2322
      %v2396 = vunpack.c.l.b16 %v2323
      %v2397 = vunpack.c.h.b16 %v2323
      %v2398 = vunpack.c.l.b16 %v2324
      %v2399 = vunpack.c.h.b16 %v2324
      %v2400 = vunpack.c.l.b16 %v2325
      %v2401 = vunpack.c.h.b16 %v2325
      %v2402 = vunpack.c.l.b16 %v2326
      %v2403 = vunpack.c.h.b16 %v2326
      %v2404 = vunpack.c.l.b16 %v2327
      %v2405 = vunpack.c.h.b16 %v2327
      %v2406 = vunpack.c.l.b16 %v2328
      %v2407 = vunpack.c.h.b16 %v2328
      %v2408 = vunpack.c.l.b16 %v2329
      %v2409 = vunpack.c.h.b16 %v2329
      %v2410 = vunpack.c.l.b16 %v2330
      %v2411 = vunpack.c.h.b16 %v2330
      %v2412 = vunpack.c.l.b16 %v2331
      %v2413 = vunpack.c.h.b16 %v2331
      %v2414 = vunpack.c.l.b16 %v2332
      %v2415 = vunpack.c.h.b16 %v2332
      %v2416 = vunpack.c.l.b16 %v2333
      %v2417 = vunpack.c.h.b16 %v2333
      %v2418 = vunpack.c.l.b16 %v2334
      %v2419 = vunpack.c.h.b16 %v2334
      %v2420 = vunpack.c.l.b16 %v2335
      %v2421 = vunpack.c.h.b16 %v2335
      %v2422 = vunpack.c.l.b16 %v2336
      %v2423 = vunpack.c.h.b16 %v2336
      %v2424 = vunpack.c.l.b16 %v2337
      %v2425 = vunpack.c.h.b16 %v2337
      %v2426 = vunpack.c.l.b16 %v2338
      %v2427 = vunpack.c.h.b16 %v2338
      %v2428 = vunpack.c.l.b16 %v2339
      %v2429 = vunpack.c.h.b16 %v2339
      %v2430 = vunpack.c.l.b16 %v2340
      %v2431 = vunpack.c.h.b16 %v2340
      %v2432 = vunpack.c.l.b16 %v2341
      %v2433 = vunpack.c.h.b16 %v2341
      %v2434 = vunpack.c.l.b16 %v2342
      %v2435 = vunpack.c.h.b16 %v2342
      %v2436 = vunpack.c.l.b16 %v2343
      %v2437 = vunpack.c.h.b16 %v2343
      %v2438 = vunpack.c.l.b16 %v2344
      %v2439 = vunpack.c.h.b16 %v2344
      %v2440 = vunpack.c.l.b16 %v2345
      %v2441 = vunpack.c.h.b16 %v2345
      %v2442 = vpack.c.b16 %v2386, %v2378
      %v2443 = vpack.c.b16 %v2387, %v2379
      %v2444 = vpack.c.b16 %v2388, %v2380
      %v2445 = vpack.c.b16 %v2389, %v2381
      %v2446 = vpack.c.b16 %v2390, %v2382
      %v2447 = vpack.c.b16 %v2391, %v2383
      %v2448 = vpack.c.b16 %v2392, %v2384
      %v2449 = vpack.c.b16 %v2393, %v2385
      %v2450 = vpack.c.b16 %v2402, %v2394
      %v2451 = vpack.c.b16 %v2403, %v2395
      %v2452 = vpack.c.b16 %v2404, %v2396
      %v2453 = vpack.c.b16 %v2405, %v2397
      %v2454 = vpack.c.b16 %v2406, %v2398
      %v2455 = vpack.c.b16 %v2407, %v2399
      %v2456 = vpack.c.b16 %v2408, %v2400
      %v2457 = vpack.c.b16 %v2409, %v2401
      %v2458 = vpack.c.b16 %v2418, %v2410
      %v2459 = vpack.c.b16 %v2419, %v2411
      %v2460 = vpack.c.b16 %v2420, %v2412
      %v2461 = vpack.c.b16 %v2421, %v2413
      %v2462 = vpack.c.b16 %v2422, %v2414
      %v2463 = vpack.c.b16 %v2423, %v2415
      %v2464 = vpack.c.b16 %v2424, %v2416
      %v2465 = vpack.c.b16 %v2425, %v2417
      %v2466 = vpack.c.b16 %v2434, %v2426
      %v2467 = vpack.c.b16 %v2435, %v2427
      %v2468 = vpack.c.b16 %v2436, %v2428
      %v2469 = vpack.c.b16 %v2437, %v2429
      %v2470 = vpack.c.b16 %v2438, %v2430
      %v2471 = vpack.c.b16 %v2439, %v2431
      %v2472 = vpack.c.b16 %v2440, %v2432
      %v2473 = vpack.c.b16 %v2441, %v2433
      %v2507 = vsel %vm769, %v2307, 0
      %2509 = vmatprep.subr.bf16.mxu0 0
      %2510 = vmatpush1.bf16.msra.mxu0 0
      %2511 = vmatprep.subr.bf16.mxu0 0
      %2512 = vmatpush1.bf16.msra.mxu0 0
      %2513 = vmatprep.subr.bf16.mxu0 0
      %2514 = vmatpush1.bf16.msra.mxu0 0
      %2515 = vmatprep.subr.bf16.mxu0 0
      %2516 = vmatpush1.bf16.msra.mxu0 0
      %2517 = vmatprep.subr.bf16.mxu0 %v2467
      %2518 = vmatpush1.bf16.msra.mxu0 %v2466
      %2519 = vmatprep.subr.bf16.mxu0 %v2459
      %2520 = vmatpush1.bf16.msra.mxu0 %v2458
      %2521 = vmatprep.subr.bf16.mxu0 %v2451
      %2522 = vmatpush1.bf16.msra.mxu0 %v2450
      %2523 = vmatprep.subr.bf16.mxu0 %v2443
      %2524 = vmatpush1.bf16.msra.mxu0 %v2442
      %2525 = vmatprep.subr.bf16.mxu0 0
      %2526 = vmatpush2.bf16.msra.mxu0 0
      %2527 = vmatprep.subr.bf16.mxu0 0
      %2528 = vmatpush2.bf16.msra.mxu0 0
      %2529 = vmatprep.subr.bf16.mxu0 0
      %2530 = vmatpush2.bf16.msra.mxu0 0
      %2531 = vmatprep.subr.bf16.mxu0 0
      %2532 = vmatpush2.bf16.msra.mxu0 0
      %2533 = vmatprep.subr.bf16.mxu0 0
      %2534 = vmatpush2.bf16.msra.mxu0 0
      %2535 = vmatprep.subr.bf16.mxu0 0
      %2536 = vmatpush2.bf16.msra.mxu0 0
      %2537 = vmatprep.subr.bf16.mxu0 0
      %2538 = vmatpush2.bf16.msra.mxu0 0
      %2539 = vmatprep.subr.bf16.mxu0 0
      %2540 = vmatpush2.bf16.msra.mxu0 0
      %2541 = vmatprep.mubr.bf16.mxu0 0
      %2542 = vmatmul.mubr.bf16.gmra.mxu0 %v2507
      %v2543 = vpop.f32.mrf.mxu0
      %v2544 = vadd.f32 0.0, %v2543
      %v2545 = vpop.f32.mrf.mxu0
      %v2546 = vadd.f32 0.0, %v2545
      %v2547 = vpop.f32.mrf.mxu0
      %v2548 = vpop.f32.mrf.mxu0
      %2549 = vdwg.mxu0
      %2550 = vmatprep.subr.bf16.mxu0 0
      %2551 = vmatpush1.bf16.msra.mxu0 0
      %2552 = vmatprep.subr.bf16.mxu0 0
      %2553 = vmatpush1.bf16.msra.mxu0 0
      %2554 = vmatprep.subr.bf16.mxu0 0
      %2555 = vmatpush1.bf16.msra.mxu0 0
      %2556 = vmatprep.subr.bf16.mxu0 0
      %2557 = vmatpush1.bf16.msra.mxu0 0
      %2558 = vmatprep.subr.bf16.mxu0 %v2469
      %2559 = vmatpush1.bf16.msra.mxu0 %v2468
      %2560 = vmatprep.subr.bf16.mxu0 %v2461
      %2561 = vmatpush1.bf16.msra.mxu0 %v2460
      %2562 = vmatprep.subr.bf16.mxu0 %v2453
      %2563 = vmatpush1.bf16.msra.mxu0 %v2452
      %2564 = vmatprep.subr.bf16.mxu0 %v2445
      %2565 = vmatpush1.bf16.msra.mxu0 %v2444
      %2566 = vmatprep.subr.bf16.mxu0 0
      %2567 = vmatpush2.bf16.msra.mxu0 0
      %2568 = vmatprep.subr.bf16.mxu0 0
      %2569 = vmatpush2.bf16.msra.mxu0 0
      %2570 = vmatprep.subr.bf16.mxu0 0
      %2571 = vmatpush2.bf16.msra.mxu0 0
      %2572 = vmatprep.subr.bf16.mxu0 0
      %2573 = vmatpush2.bf16.msra.mxu0 0
      %2574 = vmatprep.subr.bf16.mxu0 0
      %2575 = vmatpush2.bf16.msra.mxu0 0
      %2576 = vmatprep.subr.bf16.mxu0 0
      %2577 = vmatpush2.bf16.msra.mxu0 0
      %2578 = vmatprep.subr.bf16.mxu0 0
      %2579 = vmatpush2.bf16.msra.mxu0 0
      %2580 = vmatprep.subr.bf16.mxu0 0
      %2581 = vmatpush2.bf16.msra.mxu0 0
      %2582 = vmatprep.mubr.bf16.mxu0 0
      %2583 = vmatmul.mubr.bf16.gmra.mxu0 %v2507
      %v2584 = vpop.f32.mrf.mxu0
      %v2585 = vadd.f32 0.0, %v2584
      %v2586 = vpop.f32.mrf.mxu0
      %v2587 = vadd.f32 0.0, %v2586
      %v2588 = vpop.f32.mrf.mxu0
      %v2589 = vpop.f32.mrf.mxu0
      %2590 = vdwg.mxu0
      %2591 = vmatprep.subr.bf16.mxu0 0
      %2592 = vmatpush1.bf16.msra.mxu0 0
      %2593 = vmatprep.subr.bf16.mxu0 0
      %2594 = vmatpush1.bf16.msra.mxu0 0
      %2595 = vmatprep.subr.bf16.mxu0 0
      %2596 = vmatpush1.bf16.msra.mxu0 0
      %2597 = vmatprep.subr.bf16.mxu0 0
      %2598 = vmatpush1.bf16.msra.mxu0 0
      %2599 = vmatprep.subr.bf16.mxu0 %v2471
      %2600 = vmatpush1.bf16.msra.mxu0 %v2470
      %2601 = vmatprep.subr.bf16.mxu0 %v2463
      %2602 = vmatpush1.bf16.msra.mxu0 %v2462
      %2603 = vmatprep.subr.bf16.mxu0 %v2455
      %2604 = vmatpush1.bf16.msra.mxu0 %v2454
      %2605 = vmatprep.subr.bf16.mxu0 %v2447
      %2606 = vmatpush1.bf16.msra.mxu0 %v2446
      %2607 = vmatprep.subr.bf16.mxu0 0
      %2608 = vmatpush2.bf16.msra.mxu0 0
      %2609 = vmatprep.subr.bf16.mxu0 0
      %2610 = vmatpush2.bf16.msra.mxu0 0
      %2611 = vmatprep.subr.bf16.mxu0 0
      %2612 = vmatpush2.bf16.msra.mxu0 0
      %2613 = vmatprep.subr.bf16.mxu0 0
      %2614 = vmatpush2.bf16.msra.mxu0 0
      %2615 = vmatprep.subr.bf16.mxu0 0
      %2616 = vmatpush2.bf16.msra.mxu0 0
      %2617 = vmatprep.subr.bf16.mxu0 0
      %2618 = vmatpush2.bf16.msra.mxu0 0
      %2619 = vmatprep.subr.bf16.mxu0 0
      %2620 = vmatpush2.bf16.msra.mxu0 0
      %2621 = vmatprep.subr.bf16.mxu0 0
      %2622 = vmatpush2.bf16.msra.mxu0 0
      %2623 = vmatprep.mubr.bf16.mxu0 0
      %2624 = vmatmul.mubr.bf16.gmra.mxu0 %v2507
      %v2625 = vpop.f32.mrf.mxu0
      %v2626 = vadd.f32 0.0, %v2625
      %v2627 = vpop.f32.mrf.mxu0
      %v2628 = vadd.f32 0.0, %v2627
      %v2629 = vpop.f32.mrf.mxu0
      %v2630 = vpop.f32.mrf.mxu0
      %2631 = vdwg.mxu0
      %2632 = vmatprep.subr.bf16.mxu0 0
      %2633 = vmatpush1.bf16.msra.mxu0 0
      %2634 = vmatprep.subr.bf16.mxu0 0
      %2635 = vmatpush1.bf16.msra.mxu0 0
      %2636 = vmatprep.subr.bf16.mxu0 0
      %2637 = vmatpush1.bf16.msra.mxu0 0
      %2638 = vmatprep.subr.bf16.mxu0 0
      %2639 = vmatpush1.bf16.msra.mxu0 0
      %2640 = vmatprep.subr.bf16.mxu0 %v2473
      %2641 = vmatpush1.bf16.msra.mxu0 %v2472
      %2642 = vmatprep.subr.bf16.mxu0 %v2465
      %2643 = vmatpush1.bf16.msra.mxu0 %v2464
      %2644 = vmatprep.subr.bf16.mxu0 %v2457
      %2645 = vmatpush1.bf16.msra.mxu0 %v2456
      %2646 = vmatprep.subr.bf16.mxu0 %v2449
      %2647 = vmatpush1.bf16.msra.mxu0 %v2448
      %2648 = vmatprep.subr.bf16.mxu0 0
      %2649 = vmatpush2.bf16.msra.mxu0 0
      %2650 = vmatprep.subr.bf16.mxu0 0
      %2651 = vmatpush2.bf16.msra.mxu0 0
      %2652 = vmatprep.subr.bf16.mxu0 0
      %2653 = vmatpush2.bf16.msra.mxu0 0
      %2654 = vmatprep.subr.bf16.mxu0 0
      %2655 = vmatpush2.bf16.msra.mxu0 0
      %2656 = vmatprep.subr.bf16.mxu0 0
      %2657 = vmatpush2.bf16.msra.mxu0 0
      %2658 = vmatprep.subr.bf16.mxu0 0
      %2659 = vmatpush2.bf16.msra.mxu0 0
      %2660 = vmatprep.subr.bf16.mxu0 0
      %2661 = vmatpush2.bf16.msra.mxu0 0
      %2662 = vmatprep.subr.bf16.mxu0 0
      %2663 = vmatpush2.bf16.msra.mxu0 0
      %2664 = vmatprep.mubr.bf16.mxu0 0
      %2665 = vmatmul.mubr.bf16.gmra.mxu0 %v2507
      %v2666 = vpop.f32.mrf.mxu0
      %v2667 = vadd.f32 0.0, %v2666
      %v2668 = vpop.f32.mrf.mxu0
      %v2669 = vadd.f32 0.0, %v2668
      %v2670 = vpop.f32.mrf.mxu0
      %v2671 = vpop.f32.mrf.mxu0
      %2672 = vdwg.mxu0
      %v2674 = vsel %vm769, %v2310, 0
      %2676 = vmatprep.subr.bf16.mxu0 0
      %2677 = vmatpush1.bf16.msra.mxu0 0
      %2678 = vmatprep.subr.bf16.mxu0 0
      %2679 = vmatpush1.bf16.msra.mxu0 0
      %2680 = vmatprep.subr.bf16.mxu0 0
      %2681 = vmatpush1.bf16.msra.mxu0 0
      %2682 = vmatprep.subr.bf16.mxu0 0
      %2683 = vmatpush1.bf16.msra.mxu0 0
      %2684 = vmatprep.subr.bf16.mxu0 %v2467
      %2685 = vmatpush1.bf16.msra.mxu0 %v2466
      %2686 = vmatprep.subr.bf16.mxu0 %v2459
      %2687 = vmatpush1.bf16.msra.mxu0 %v2458
      %2688 = vmatprep.subr.bf16.mxu0 %v2451
      %2689 = vmatpush1.bf16.msra.mxu0 %v2450
      %2690 = vmatprep.subr.bf16.mxu0 %v2443
      %2691 = vmatpush1.bf16.msra.mxu0 %v2442
      %2692 = vmatprep.subr.bf16.mxu0 0
      %2693 = vmatpush2.bf16.msra.mxu0 0
      %2694 = vmatprep.subr.bf16.mxu0 0
      %2695 = vmatpush2.bf16.msra.mxu0 0
      %2696 = vmatprep.subr.bf16.mxu0 0
      %2697 = vmatpush2.bf16.msra.mxu0 0
      %2698 = vmatprep.subr.bf16.mxu0 0
      %2699 = vmatpush2.bf16.msra.mxu0 0
      %2700 = vmatprep.subr.bf16.mxu0 0
      %2701 = vmatpush2.bf16.msra.mxu0 0
      %2702 = vmatprep.subr.bf16.mxu0 0
      %2703 = vmatpush2.bf16.msra.mxu0 0
      %2704 = vmatprep.subr.bf16.mxu0 0
      %2705 = vmatpush2.bf16.msra.mxu0 0
      %2706 = vmatprep.subr.bf16.mxu0 0
      %2707 = vmatpush2.bf16.msra.mxu0 0
      %2708 = vmatprep.mubr.bf16.mxu0 0
      %2709 = vmatmul.mubr.bf16.gmra.mxu0 %v2674
      %v2710 = vpop.f32.mrf.mxu0
      %v2711 = vadd.f32 0.0, %v2710
      %v2712 = vpop.f32.mrf.mxu0
      %v2713 = vadd.f32 0.0, %v2712
      %v2714 = vpop.f32.mrf.mxu0
      %v2715 = vpop.f32.mrf.mxu0
      %2716 = vdwg.mxu0
      %2717 = vmatprep.subr.bf16.mxu0 0
      %2718 = vmatpush1.bf16.msra.mxu0 0
      %2719 = vmatprep.subr.bf16.mxu0 0
      %2720 = vmatpush1.bf16.msra.mxu0 0
      %2721 = vmatprep.subr.bf16.mxu0 0
      %2722 = vmatpush1.bf16.msra.mxu0 0
      %2723 = vmatprep.subr.bf16.mxu0 0
      %2724 = vmatpush1.bf16.msra.mxu0 0
      %2725 = vmatprep.subr.bf16.mxu0 %v2469
      %2726 = vmatpush1.bf16.msra.mxu0 %v2468
      %2727 = vmatprep.subr.bf16.mxu0 %v2461
      %2728 = vmatpush1.bf16.msra.mxu0 %v2460
      %2729 = vmatprep.subr.bf16.mxu0 %v2453
      %2730 = vmatpush1.bf16.msra.mxu0 %v2452
      %2731 = vmatprep.subr.bf16.mxu0 %v2445
      %2732 = vmatpush1.bf16.msra.mxu0 %v2444
      %2733 = vmatprep.subr.bf16.mxu0 0
      %2734 = vmatpush2.bf16.msra.mxu0 0
      %2735 = vmatprep.subr.bf16.mxu0 0
      %2736 = vmatpush2.bf16.msra.mxu0 0
      %2737 = vmatprep.subr.bf16.mxu0 0
      %2738 = vmatpush2.bf16.msra.mxu0 0
      %2739 = vmatprep.subr.bf16.mxu0 0
      %2740 = vmatpush2.bf16.msra.mxu0 0
      %2741 = vmatprep.subr.bf16.mxu0 0
      %2742 = vmatpush2.bf16.msra.mxu0 0
      %2743 = vmatprep.subr.bf16.mxu0 0
      %2744 = vmatpush2.bf16.msra.mxu0 0
      %2745 = vmatprep.subr.bf16.mxu0 0
      %2746 = vmatpush2.bf16.msra.mxu0 0
      %2747 = vmatprep.subr.bf16.mxu0 0
      %2748 = vmatpush2.bf16.msra.mxu0 0
      %2749 = vmatprep.mubr.bf16.mxu0 0
      %2750 = vmatmul.mubr.bf16.gmra.mxu0 %v2674
      %v2751 = vpop.f32.mrf.mxu0
      %v2752 = vadd.f32 0.0, %v2751
      %v2753 = vpop.f32.mrf.mxu0
      %v2754 = vadd.f32 0.0, %v2753
      %v2755 = vpop.f32.mrf.mxu0
      %v2756 = vpop.f32.mrf.mxu0
      %2757 = vdwg.mxu0
      %2758 = vmatprep.subr.bf16.mxu0 0
      %2759 = vmatpush1.bf16.msra.mxu0 0
      %2760 = vmatprep.subr.bf16.mxu0 0
      %2761 = vmatpush1.bf16.msra.mxu0 0
      %2762 = vmatprep.subr.bf16.mxu0 0
      %2763 = vmatpush1.bf16.msra.mxu0 0
      %2764 = vmatprep.subr.bf16.mxu0 0
      %2765 = vmatpush1.bf16.msra.mxu0 0
      %2766 = vmatprep.subr.bf16.mxu0 %v2471
      %2767 = vmatpush1.bf16.msra.mxu0 %v2470
      %2768 = vmatprep.subr.bf16.mxu0 %v2463
      %2769 = vmatpush1.bf16.msra.mxu0 %v2462
      %2770 = vmatprep.subr.bf16.mxu0 %v2455
      %2771 = vmatpush1.bf16.msra.mxu0 %v2454
      %2772 = vmatprep.subr.bf16.mxu0 %v2447
      %2773 = vmatpush1.bf16.msra.mxu0 %v2446
      %2774 = vmatprep.subr.bf16.mxu0 0
      %2775 = vmatpush2.bf16.msra.mxu0 0
      %2776 = vmatprep.subr.bf16.mxu0 0
      %2777 = vmatpush2.bf16.msra.mxu0 0
      %2778 = vmatprep.subr.bf16.mxu0 0
      %2779 = vmatpush2.bf16.msra.mxu0 0
      %2780 = vmatprep.subr.bf16.mxu0 0
      %2781 = vmatpush2.bf16.msra.mxu0 0
      %2782 = vmatprep.subr.bf16.mxu0 0
      %2783 = vmatpush2.bf16.msra.mxu0 0
      %2784 = vmatprep.subr.bf16.mxu0 0
      %2785 = vmatpush2.bf16.msra.mxu0 0
      %2786 = vmatprep.subr.bf16.mxu0 0
      %2787 = vmatpush2.bf16.msra.mxu0 0
      %2788 = vmatprep.subr.bf16.mxu0 0
      %2789 = vmatpush2.bf16.msra.mxu0 0
      %2790 = vmatprep.mubr.bf16.mxu0 0
      %2791 = vmatmul.mubr.bf16.gmra.mxu0 %v2674
      %v2792 = vpop.f32.mrf.mxu0
      %v2793 = vadd.f32 0.0, %v2792
      %v2794 = vpop.f32.mrf.mxu0
      %v2795 = vadd.f32 0.0, %v2794
      %v2796 = vpop.f32.mrf.mxu0
      %v2797 = vpop.f32.mrf.mxu0
      %2798 = vdwg.mxu0
      %2799 = vmatprep.subr.bf16.mxu0 0
      %2800 = vmatpush1.bf16.msra.mxu0 0
      %2801 = vmatprep.subr.bf16.mxu0 0
      %2802 = vmatpush1.bf16.msra.mxu0 0
      %2803 = vmatprep.subr.bf16.mxu0 0
      %2804 = vmatpush1.bf16.msra.mxu0 0
      %2805 = vmatprep.subr.bf16.mxu0 0
      %2806 = vmatpush1.bf16.msra.mxu0 0
      %2807 = vmatprep.subr.bf16.mxu0 %v2473
      %2808 = vmatpush1.bf16.msra.mxu0 %v2472
      %2809 = vmatprep.subr.bf16.mxu0 %v2465
      %2810 = vmatpush1.bf16.msra.mxu0 %v2464
      %2811 = vmatprep.subr.bf16.mxu0 %v2457
      %2812 = vmatpush1.bf16.msra.mxu0 %v2456
      %2813 = vmatprep.subr.bf16.mxu0 %v2449
      %2814 = vmatpush1.bf16.msra.mxu0 %v2448
      %2815 = vmatprep.subr.bf16.mxu0 0
      %2816 = vmatpush2.bf16.msra.mxu0 0
      %2817 = vmatprep.subr.bf16.mxu0 0
      %2818 = vmatpush2.bf16.msra.mxu0 0
      %2819 = vmatprep.subr.bf16.mxu0 0
      %2820 = vmatpush2.bf16.msra.mxu0 0
      %2821 = vmatprep.subr.bf16.mxu0 0
      %2822 = vmatpush2.bf16.msra.mxu0 0
      %2823 = vmatprep.subr.bf16.mxu0 0
      %2824 = vmatpush2.bf16.msra.mxu0 0
      %2825 = vmatprep.subr.bf16.mxu0 0
      %2826 = vmatpush2.bf16.msra.mxu0 0
      %2827 = vmatprep.subr.bf16.mxu0 0
      %2828 = vmatpush2.bf16.msra.mxu0 0
      %2829 = vmatprep.subr.bf16.mxu0 0
      %2830 = vmatpush2.bf16.msra.mxu0 0
      %2831 = vmatprep.mubr.bf16.mxu0 0
      %2832 = vmatmul.mubr.bf16.gmra.mxu0 %v2674
      %v2833 = vpop.f32.mrf.mxu0
      %v2834 = vadd.f32 0.0, %v2833
      %v2835 = vpop.f32.mrf.mxu0
      %v2836 = vadd.f32 0.0, %v2835
      %v2837 = vpop.f32.mrf.mxu0
      %v2838 = vpop.f32.mrf.mxu0
      %2839 = vdwg.mxu0
      %v2840 = vld [vmem:[#allocation16] sm:$0xff]
      %v2841 = vld [vmem:[#allocation16 + $0x8] sm:$0xff]
      %v2842 = vld [vmem:[#allocation16 + $0x10] sm:$0xff]
      %v2843 = vld [vmem:[#allocation16 + $0x18] sm:$0xff]
      %v2844 = vld [vmem:[#allocation16 + $0x20] sm:$0xff]
      %v2845 = vld [vmem:[#allocation16 + $0x28] sm:$0xff]
      %v2846 = vld [vmem:[#allocation16 + $0x30] sm:$0xff]
      %v2847 = vld [vmem:[#allocation16 + $0x38] sm:$0xff]
      %v2856 = vunpack.c.l.b16 %v2840
      %v2857 = vunpack.c.h.b16 %v2840
      %v2858 = vunpack.c.l.b16 %v2841
      %v2859 = vunpack.c.h.b16 %v2841
      %v2860 = vunpack.c.l.b16 %v2842
      %v2861 = vunpack.c.h.b16 %v2842
      %v2862 = vunpack.c.l.b16 %v2843
      %v2863 = vunpack.c.h.b16 %v2843
      %v2864 = vunpack.c.l.b16 %v2844
      %v2865 = vunpack.c.h.b16 %v2844
      %v2866 = vunpack.c.l.b16 %v2845
      %v2867 = vunpack.c.h.b16 %v2845
      %v2868 = vunpack.c.l.b16 %v2846
      %v2869 = vunpack.c.h.b16 %v2846
      %v2870 = vunpack.c.l.b16 %v2847
      %v2871 = vunpack.c.h.b16 %v2847
      %v2872 = vpack.c.b16 %v2864, %v2856
      %v2873 = vpack.c.b16 %v2865, %v2857
      %v2874 = vpack.c.b16 %v2866, %v2858
      %v2875 = vpack.c.b16 %v2867, %v2859
      %v2876 = vpack.c.b16 %v2868, %v2860
      %v2877 = vpack.c.b16 %v2869, %v2861
      %v2878 = vpack.c.b16 %v2870, %v2862
      %v2879 = vpack.c.b16 %v2871, %v2863
      %v2889 = vsel %vm2170, %v2313, 0
      %2891 = vmatprep.subr.bf16.mxu0 0
      %2892 = vmatpush1.bf16.msra.mxu0 0
      %2893 = vmatprep.subr.bf16.mxu0 0
      %2894 = vmatpush1.bf16.msra.mxu0 0
      %2895 = vmatprep.subr.bf16.mxu0 0
      %2896 = vmatpush1.bf16.msra.mxu0 0
      %2897 = vmatprep.subr.bf16.mxu0 0
      %2898 = vmatpush1.bf16.msra.mxu0 0
      %2899 = vmatprep.subr.bf16.mxu0 0
      %2900 = vmatpush1.bf16.msra.mxu0 0
      %2901 = vmatprep.subr.bf16.mxu0 0
      %2902 = vmatpush1.bf16.msra.mxu0 0
      %2903 = vmatprep.subr.bf16.mxu0 0
      %2904 = vmatpush1.bf16.msra.mxu0 0
      %2905 = vmatprep.subr.bf16.mxu0 %v2873
      %2906 = vmatpush1.bf16.msra.mxu0 %v2872
      %2907 = vmatprep.subr.bf16.mxu0 0
      %2908 = vmatpush2.bf16.msra.mxu0 0
      %2909 = vmatprep.subr.bf16.mxu0 0
      %2910 = vmatpush2.bf16.msra.mxu0 0
      %2911 = vmatprep.subr.bf16.mxu0 0
      %2912 = vmatpush2.bf16.msra.mxu0 0
      %2913 = vmatprep.subr.bf16.mxu0 0
      %2914 = vmatpush2.bf16.msra.mxu0 0
      %2915 = vmatprep.subr.bf16.mxu0 0
      %2916 = vmatpush2.bf16.msra.mxu0 0
      %2917 = vmatprep.subr.bf16.mxu0 0
      %2918 = vmatpush2.bf16.msra.mxu0 0
      %2919 = vmatprep.subr.bf16.mxu0 0
      %2920 = vmatpush2.bf16.msra.mxu0 0
      %2921 = vmatprep.subr.bf16.mxu0 0
      %2922 = vmatpush2.bf16.msra.mxu0 0
      %2923 = vmatprep.mubr.bf16.mxu0 0
      %2924 = vmatmul.mubr.bf16.gmra.mxu0 %v2889
      %v2925 = vpop.f32.mrf.mxu0
      %v2926 = vadd.f32 0.0, %v2925
      %v2927 = vpop.f32.mrf.mxu0
      %v2928 = vadd.f32 0.0, %v2927
      %v2929 = vpop.f32.mrf.mxu0
      %v2930 = vpop.f32.mrf.mxu0
      %2931 = vdwg.mxu0
      %2932 = vmatprep.subr.bf16.mxu0 0
      %2933 = vmatpush1.bf16.msra.mxu0 0
      %2934 = vmatprep.subr.bf16.mxu0 0
      %2935 = vmatpush1.bf16.msra.mxu0 0
      %2936 = vmatprep.subr.bf16.mxu0 0
      %2937 = vmatpush1.bf16.msra.mxu0 0
      %2938 = vmatprep.subr.bf16.mxu0 0
      %2939 = vmatpush1.bf16.msra.mxu0 0
      %2940 = vmatprep.subr.bf16.mxu0 0
      %2941 = vmatpush1.bf16.msra.mxu0 0
      %2942 = vmatprep.subr.bf16.mxu0 0
      %2943 = vmatpush1.bf16.msra.mxu0 0
      %2944 = vmatprep.subr.bf16.mxu0 0
      %2945 = vmatpush1.bf16.msra.mxu0 0
      %2946 = vmatprep.subr.bf16.mxu0 %v2875
      %2947 = vmatpush1.bf16.msra.mxu0 %v2874
      %2948 = vmatprep.subr.bf16.mxu0 0
      %2949 = vmatpush2.bf16.msra.mxu0 0
      %2950 = vmatprep.subr.bf16.mxu0 0
      %2951 = vmatpush2.bf16.msra.mxu0 0
      %2952 = vmatprep.subr.bf16.mxu0 0
      %2953 = vmatpush2.bf16.msra.mxu0 0
      %2954 = vmatprep.subr.bf16.mxu0 0
      %2955 = vmatpush2.bf16.msra.mxu0 0
      %2956 = vmatprep.subr.bf16.mxu0 0
      %2957 = vmatpush2.bf16.msra.mxu0 0
      %2958 = vmatprep.subr.bf16.mxu0 0
      %2959 = vmatpush2.bf16.msra.mxu0 0
      %2960 = vmatprep.subr.bf16.mxu0 0
      %2961 = vmatpush2.bf16.msra.mxu0 0
      %2962 = vmatprep.subr.bf16.mxu0 0
      %2963 = vmatpush2.bf16.msra.mxu0 0
      %2964 = vmatprep.mubr.bf16.mxu0 0
      %2965 = vmatmul.mubr.bf16.gmra.mxu0 %v2889
      %v2966 = vpop.f32.mrf.mxu0
      %v2967 = vadd.f32 0.0, %v2966
      %v2968 = vpop.f32.mrf.mxu0
      %v2969 = vadd.f32 0.0, %v2968
      %v2970 = vpop.f32.mrf.mxu0
      %v2971 = vpop.f32.mrf.mxu0
      %2972 = vdwg.mxu0
      %2973 = vmatprep.subr.bf16.mxu0 0
      %2974 = vmatpush1.bf16.msra.mxu0 0
      %2975 = vmatprep.subr.bf16.mxu0 0
      %2976 = vmatpush1.bf16.msra.mxu0 0
      %2977 = vmatprep.subr.bf16.mxu0 0
      %2978 = vmatpush1.bf16.msra.mxu0 0
      %2979 = vmatprep.subr.bf16.mxu0 0
      %2980 = vmatpush1.bf16.msra.mxu0 0
      %2981 = vmatprep.subr.bf16.mxu0 0
      %2982 = vmatpush1.bf16.msra.mxu0 0
      %2983 = vmatprep.subr.bf16.mxu0 0
      %2984 = vmatpush1.bf16.msra.mxu0 0
      %2985 = vmatprep.subr.bf16.mxu0 0
      %2986 = vmatpush1.bf16.msra.mxu0 0
      %2987 = vmatprep.subr.bf16.mxu0 %v2877
      %2988 = vmatpush1.bf16.msra.mxu0 %v2876
      %2989 = vmatprep.subr.bf16.mxu0 0
      %2990 = vmatpush2.bf16.msra.mxu0 0
      %2991 = vmatprep.subr.bf16.mxu0 0
      %2992 = vmatpush2.bf16.msra.mxu0 0
      %2993 = vmatprep.subr.bf16.mxu0 0
      %2994 = vmatpush2.bf16.msra.mxu0 0
      %2995 = vmatprep.subr.bf16.mxu0 0
      %2996 = vmatpush2.bf16.msra.mxu0 0
      %2997 = vmatprep.subr.bf16.mxu0 0
      %2998 = vmatpush2.bf16.msra.mxu0 0
      %2999 = vmatprep.subr.bf16.mxu0 0
      %3000 = vmatpush2.bf16.msra.mxu0 0
      %3001 = vmatprep.subr.bf16.mxu0 0
      %3002 = vmatpush2.bf16.msra.mxu0 0
      %3003 = vmatprep.subr.bf16.mxu0 0
      %3004 = vmatpush2.bf16.msra.mxu0 0
      %3005 = vmatprep.mubr.bf16.mxu0 0
      %3006 = vmatmul.mubr.bf16.gmra.mxu0 %v2889
      %v3007 = vpop.f32.mrf.mxu0
      %v3008 = vadd.f32 0.0, %v3007
      %v3009 = vpop.f32.mrf.mxu0
      %v3010 = vadd.f32 0.0, %v3009
      %v3011 = vpop.f32.mrf.mxu0
      %v3012 = vpop.f32.mrf.mxu0
      %3013 = vdwg.mxu0
      %3014 = vmatprep.subr.bf16.mxu0 0
      %3015 = vmatpush1.bf16.msra.mxu0 0
      %3016 = vmatprep.subr.bf16.mxu0 0
      %3017 = vmatpush1.bf16.msra.mxu0 0
      %3018 = vmatprep.subr.bf16.mxu0 0
      %3019 = vmatpush1.bf16.msra.mxu0 0
      %3020 = vmatprep.subr.bf16.mxu0 0
      %3021 = vmatpush1.bf16.msra.mxu0 0
      %3022 = vmatprep.subr.bf16.mxu0 0
      %3023 = vmatpush1.bf16.msra.mxu0 0
      %3024 = vmatprep.subr.bf16.mxu0 0
      %3025 = vmatpush1.bf16.msra.mxu0 0
      %3026 = vmatprep.subr.bf16.mxu0 0
      %3027 = vmatpush1.bf16.msra.mxu0 0
      %3028 = vmatprep.subr.bf16.mxu0 %v2879
      %3029 = vmatpush1.bf16.msra.mxu0 %v2878
      %3030 = vmatprep.subr.bf16.mxu0 0
      %3031 = vmatpush2.bf16.msra.mxu0 0
      %3032 = vmatprep.subr.bf16.mxu0 0
      %3033 = vmatpush2.bf16.msra.mxu0 0
      %3034 = vmatprep.subr.bf16.mxu0 0
      %3035 = vmatpush2.bf16.msra.mxu0 0
      %3036 = vmatprep.subr.bf16.mxu0 0
      %3037 = vmatpush2.bf16.msra.mxu0 0
      %3038 = vmatprep.subr.bf16.mxu0 0
      %3039 = vmatpush2.bf16.msra.mxu0 0
      %3040 = vmatprep.subr.bf16.mxu0 0
      %3041 = vmatpush2.bf16.msra.mxu0 0
      %3042 = vmatprep.subr.bf16.mxu0 0
      %3043 = vmatpush2.bf16.msra.mxu0 0
      %3044 = vmatprep.subr.bf16.mxu0 0
      %3045 = vmatpush2.bf16.msra.mxu0 0
      %3046 = vmatprep.mubr.bf16.mxu0 0
      %3047 = vmatmul.mubr.bf16.gmra.mxu0 %v2889
      %v3048 = vpop.f32.mrf.mxu0
      %v3049 = vadd.f32 0.0, %v3048
      %v3050 = vpop.f32.mrf.mxu0
      %v3051 = vadd.f32 0.0, %v3050
      %v3052 = vpop.f32.mrf.mxu0
      %v3053 = vpop.f32.mrf.mxu0
      %3054 = vdwg.mxu0
      %v3055 = vld [vmem:[#allocation15] sm:$0xff]
      %v3057 = vlaneseq
      %v3058 = vshrl.u32 %v3057, 7
      %v3059 = vsub.s32 0, %v3058
      %v3060 = vrot.slane %v3055, %v3059
      %v3061 = vlaneseq
      %v3062 = vshrl.u32 %v3061, 7
      %v3063 = vsub.s32 1, %v3062
      %v3064 = vrot.slane %v3055, %v3063
      %v3065 = vlaneseq
      %v3066 = vshrl.u32 %v3065, 7
      %v3067 = vsub.s32 2, %v3066
      %v3068 = vrot.slane %v3055, %v3067
      %v3069 = vlaneseq
      %v3070 = vshrl.u32 %v3069, 7
      %v3071 = vsub.s32 3, %v3070
      %v3072 = vrot.slane %v3055, %v3071
      %v3073 = vlaneseq
      %v3074 = vshrl.u32 %v3073, 7
      %v3075 = vsub.s32 4, %v3074
      %v3076 = vrot.slane %v3055, %v3075
      %v3077 = vlaneseq
      %v3078 = vshrl.u32 %v3077, 7
      %v3079 = vsub.s32 5, %v3078
      %v3080 = vrot.slane %v3055, %v3079
      %v3081 = vlaneseq
      %v3082 = vshrl.u32 %v3081, 7
      %v3083 = vsub.s32 6, %v3082
      %v3084 = vrot.slane %v3055, %v3083
      %v3085 = vlaneseq
      %v3086 = vshrl.u32 %v3085, 7
      %v3087 = vsub.s32 7, %v3086
      %v3088 = vrot.slane %v3055, %v3087
      %v3097 = vmul.f32 %v2544, %v3060
      %v3098 = vmul.f32 %v2546, %v3064
      %v3099 = vmul.f32 %v2585, %v3068
      %v3100 = vmul.f32 %v2587, %v3072
      %v3101 = vmul.f32 %v2626, %v3076
      %v3102 = vmul.f32 %v2628, %v3080
      %v3103 = vmul.f32 %v2667, %v3084
      %v3104 = vmul.f32 %v2669, %v3088
      %v3105 = vmul.f32 %v3097, 1.442695
      %v3106 = vpow.pop %v3105
      %v3107 = vmul.f32 %v3098, 1.442695
      %v3108 = vpow.pop %v3107
      %v3109 = vmul.f32 %v3099, 1.442695
      %v3110 = vpow.pop %v3109
      %v3111 = vmul.f32 %v3100, 1.442695
      %v3112 = vpow.pop %v3111
      %v3113 = vmul.f32 %v3101, 1.442695
      %v3114 = vpow.pop %v3113
      %v3115 = vmul.f32 %v3102, 1.442695
      %v3116 = vpow.pop %v3115
      %v3117 = vmul.f32 %v3103, 1.442695
      %v3118 = vpow.pop %v3117
      %v3119 = vmul.f32 %v3104, 1.442695
      %v3120 = vpow.pop %v3119
      %v3121 = vmul.f32 %v2711, %v2926
      %v3122 = vmul.f32 %v2713, %v2928
      %v3123 = vmul.f32 %v2752, %v2967
      %v3124 = vmul.f32 %v2754, %v2969
      %v3125 = vmul.f32 %v2793, %v3008
      %v3126 = vmul.f32 %v2795, %v3010
      %v3127 = vmul.f32 %v2834, %v3049
      %v3128 = vmul.f32 %v2836, %v3051
      %vm3129 = vcmp.ge.s32.totalorder %v895, 1
      %v3130 = vsel %vm3129, 1, 0
      %v3131 = vcvt.s32.f32 %v3130
      %v3132 = vrot.slane %v3106, 7
      %v3133 = vrot.slane %v3108, 7
      %v3134 = vrot.slane %v3110, 7
      %v3135 = vrot.slane %v3112, 7
      %v3136 = vrot.slane %v3114, 7
      %v3137 = vrot.slane %v3116, 7
      %v3138 = vrot.slane %v3118, 7
      %v3139 = vrot.slane %v3120, 7
      %v3140 = vrot.slane %v3121, 7
      %v3141 = vrot.slane %v3122, 7
      %v3142 = vrot.slane %v3123, 7
      %v3143 = vrot.slane %v3124, 7
      %v3144 = vrot.slane %v3125, 7
      %v3145 = vrot.slane %v3126, 7
      %v3146 = vrot.slane %v3127, 7
      %v3147 = vrot.slane %v3128, 7
      %v3148 = vmul.f32 %v3106, %v3140
      %v3149 = vmul.f32 %v3108, %v3141
      %v3150 = vmul.f32 %v3110, %v3142
      %v3151 = vmul.f32 %v3112, %v3143
      %v3152 = vmul.f32 %v3114, %v3144
      %v3153 = vmul.f32 %v3116, %v3145
      %v3154 = vmul.f32 %v3118, %v3146
      %v3155 = vmul.f32 %v3120, %v3147
      %v3156 = vmul.f32 %v3131, %v3148
      %v3157 = vmul.f32 %v3131, %v3149
      %v3158 = vmul.f32 %v3131, %v3150
      %v3159 = vmul.f32 %v3131, %v3151
      %v3160 = vmul.f32 %v3131, %v3152
      %v3161 = vmul.f32 %v3131, %v3153
      %v3162 = vmul.f32 %v3131, %v3154
      %v3163 = vmul.f32 %v3131, %v3155
      %v3164 = vadd.f32 %v3121, %v3156
      %v3165 = vadd.f32 %v3122, %v3157
      %v3166 = vadd.f32 %v3123, %v3158
      %v3167 = vadd.f32 %v3124, %v3159
      %v3168 = vadd.f32 %v3125, %v3160
      %v3169 = vadd.f32 %v3126, %v3161
      %v3170 = vadd.f32 %v3127, %v3162
      %v3171 = vadd.f32 %v3128, %v3163
      %v3172 = vmul.f32 %v3132, %v3131
      %v3173 = vmul.f32 %v3133, %v3131
      %v3174 = vmul.f32 %v3134, %v3131
      %v3175 = vmul.f32 %v3135, %v3131
      %v3176 = vmul.f32 %v3136, %v3131
      %v3177 = vmul.f32 %v3137, %v3131
      %v3178 = vmul.f32 %v3138, %v3131
      %v3179 = vmul.f32 %v3139, %v3131
      %v3180 = vsub.f32 1.0, %v3131
      %v3181 = vadd.f32 %v3172, %v3180
      %v3182 = vadd.f32 %v3173, %v3180
      %v3183 = vadd.f32 %v3174, %v3180
      %v3184 = vadd.f32 %v3175, %v3180
      %v3185 = vadd.f32 %v3176, %v3180
      %v3186 = vadd.f32 %v3177, %v3180
      %v3187 = vadd.f32 %v3178, %v3180
      %v3188 = vadd.f32 %v3179, %v3180
      %v3189 = vmul.f32 %v3106, %v3181
      %v3190 = vmul.f32 %v3108, %v3182
      %v3191 = vmul.f32 %v3110, %v3183
      %v3192 = vmul.f32 %v3112, %v3184
      %v3193 = vmul.f32 %v3114, %v3185
      %v3194 = vmul.f32 %v3116, %v3186
      %v3195 = vmul.f32 %v3118, %v3187
      %v3196 = vmul.f32 %v3120, %v3188
      %vm3197 = vcmp.ge.s32.totalorder %v895, 2
      %v3198 = vsel %vm3197, 1, 0
      %v3199 = vcvt.s32.f32 %v3198
      %v3200 = vrot.slane %v3189, 6
      %v3201 = vrot.slane %v3190, 6
      %v3202 = vrot.slane %v3191, 6
      %v3203 = vrot.slane %v3192, 6
      %v3204 = vrot.slane %v3193, 6
      %v3205 = vrot.slane %v3194, 6
      %v3206 = vrot.slane %v3195, 6
      %v3207 = vrot.slane %v3196, 6
      %v3208 = vrot.slane %v3164, 6
      %v3209 = vrot.slane %v3165, 6
      %v3210 = vrot.slane %v3166, 6
      %v3211 = vrot.slane %v3167, 6
      %v3212 = vrot.slane %v3168, 6
      %v3213 = vrot.slane %v3169, 6
      %v3214 = vrot.slane %v3170, 6
      %v3215 = vrot.slane %v3171, 6
      %v3216 = vmul.f32 %v3189, %v3208
      %v3217 = vmul.f32 %v3190, %v3209
      %v3218 = vmul.f32 %v3191, %v3210
      %v3219 = vmul.f32 %v3192, %v3211
      %v3220 = vmul.f32 %v3193, %v3212
      %v3221 = vmul.f32 %v3194, %v3213
      %v3222 = vmul.f32 %v3195, %v3214
      %v3223 = vmul.f32 %v3196, %v3215
      %v3224 = vmul.f32 %v3199, %v3216
      %v3225 = vmul.f32 %v3199, %v3217
      %v3226 = vmul.f32 %v3199, %v3218
      %v3227 = vmul.f32 %v3199, %v3219
      %v3228 = vmul.f32 %v3199, %v3220
      %v3229 = vmul.f32 %v3199, %v3221
      %v3230 = vmul.f32 %v3199, %v3222
      %v3231 = vmul.f32 %v3199, %v3223
      %v3232 = vadd.f32 %v3164, %v3224
      %v3233 = vadd.f32 %v3165, %v3225
      %v3234 = vadd.f32 %v3166, %v3226
      %v3235 = vadd.f32 %v3167, %v3227
      %v3236 = vadd.f32 %v3168, %v3228
      %v3237 = vadd.f32 %v3169, %v3229
      %v3238 = vadd.f32 %v3170, %v3230
      %v3239 = vadd.f32 %v3171, %v3231
      %v3240 = vmul.f32 %v3200, %v3199
      %v3241 = vmul.f32 %v3201, %v3199
      %v3242 = vmul.f32 %v3202, %v3199
      %v3243 = vmul.f32 %v3203, %v3199
      %v3244 = vmul.f32 %v3204, %v3199
      %v3245 = vmul.f32 %v3205, %v3199
      %v3246 = vmul.f32 %v3206, %v3199
      %v3247 = vmul.f32 %v3207, %v3199
      %v3248 = vsub.f32 1.0, %v3199
      %v3249 = vadd.f32 %v3240, %v3248
      %v3250 = vadd.f32 %v3241, %v3248
      %v3251 = vadd.f32 %v3242, %v3248
      %v3252 = vadd.f32 %v3243, %v3248
      %v3253 = vadd.f32 %v3244, %v3248
      %v3254 = vadd.f32 %v3245, %v3248
      %v3255 = vadd.f32 %v3246, %v3248
      %v3256 = vadd.f32 %v3247, %v3248
      %v3257 = vmul.f32 %v3189, %v3249
      %v3258 = vmul.f32 %v3190, %v3250
      %v3259 = vmul.f32 %v3191, %v3251
      %v3260 = vmul.f32 %v3192, %v3252
      %v3261 = vmul.f32 %v3193, %v3253
      %v3262 = vmul.f32 %v3194, %v3254
      %v3263 = vmul.f32 %v3195, %v3255
      %v3264 = vmul.f32 %v3196, %v3256
      %vm3265 = vcmp.ge.s32.totalorder %v895, 4
      %v3266 = vsel %vm3265, 1, 0
      %v3267 = vcvt.s32.f32 %v3266
      %v3268 = vrot.slane %v3257, 4
      %v3269 = vrot.slane %v3258, 4
      %v3270 = vrot.slane %v3259, 4
      %v3271 = vrot.slane %v3260, 4
      %v3272 = vrot.slane %v3261, 4
      %v3273 = vrot.slane %v3262, 4
      %v3274 = vrot.slane %v3263, 4
      %v3275 = vrot.slane %v3264, 4
      %v3276 = vrot.slane %v3232, 4
      %v3277 = vrot.slane %v3233, 4
      %v3278 = vrot.slane %v3234, 4
      %v3279 = vrot.slane %v3235, 4
      %v3280 = vrot.slane %v3236, 4
      %v3281 = vrot.slane %v3237, 4
      %v3282 = vrot.slane %v3238, 4
      %v3283 = vrot.slane %v3239, 4
      %v3284 = vmul.f32 %v3257, %v3276
      %v3285 = vmul.f32 %v3258, %v3277
      %v3286 = vmul.f32 %v3259, %v3278
      %v3287 = vmul.f32 %v3260, %v3279
      %v3288 = vmul.f32 %v3261, %v3280
      %v3289 = vmul.f32 %v3262, %v3281
      %v3290 = vmul.f32 %v3263, %v3282
      %v3291 = vmul.f32 %v3264, %v3283
      %v3292 = vmul.f32 %v3267, %v3284
      %v3293 = vmul.f32 %v3267, %v3285
      %v3294 = vmul.f32 %v3267, %v3286
      %v3295 = vmul.f32 %v3267, %v3287
      %v3296 = vmul.f32 %v3267, %v3288
      %v3297 = vmul.f32 %v3267, %v3289
      %v3298 = vmul.f32 %v3267, %v3290
      %v3299 = vmul.f32 %v3267, %v3291
      %v3300 = vadd.f32 %v3232, %v3292
      %v3301 = vadd.f32 %v3233, %v3293
      %v3302 = vadd.f32 %v3234, %v3294
      %v3303 = vadd.f32 %v3235, %v3295
      %v3304 = vadd.f32 %v3236, %v3296
      %v3305 = vadd.f32 %v3237, %v3297
      %v3306 = vadd.f32 %v3238, %v3298
      %v3307 = vadd.f32 %v3239, %v3299
      %v3308 = vmul.f32 %v3268, %v3267
      %v3309 = vmul.f32 %v3269, %v3267
      %v3310 = vmul.f32 %v3270, %v3267
      %v3311 = vmul.f32 %v3271, %v3267
      %v3312 = vmul.f32 %v3272, %v3267
      %v3313 = vmul.f32 %v3273, %v3267
      %v3314 = vmul.f32 %v3274, %v3267
      %v3315 = vmul.f32 %v3275, %v3267
      %v3316 = vsub.f32 1.0, %v3267
      %v3317 = vadd.f32 %v3308, %v3316
      %v3318 = vadd.f32 %v3309, %v3316
      %v3319 = vadd.f32 %v3310, %v3316
      %v3320 = vadd.f32 %v3311, %v3316
      %v3321 = vadd.f32 %v3312, %v3316
      %v3322 = vadd.f32 %v3313, %v3316
      %v3323 = vadd.f32 %v3314, %v3316
      %v3324 = vadd.f32 %v3315, %v3316
      %v3325 = vmul.f32 %v3257, %v3317
      %v3326 = vmul.f32 %v3258, %v3318
      %v3327 = vmul.f32 %v3259, %v3319
      %v3328 = vmul.f32 %v3260, %v3320
      %v3329 = vmul.f32 %v3261, %v3321
      %v3330 = vmul.f32 %v3262, %v3322
      %v3331 = vmul.f32 %v3263, %v3323
      %v3332 = vmul.f32 %v3264, %v3324
      %p3333 = scmp.lt.s32.totalorder %s2291, 0
      %s3334 = ssub.s32 0, %s2291
      %s3335 = scalar_select %p3333, %s3334, %s2291
      %s3336 = sand.u32 %s3335, 7
      %s3337 = ssub.s32 0, %s3336
      %s3338 = scalar_select %p3333, %s3337, %s3336
      %p3339 = scmp.ne.s32.totalorder %s3338, 0
      %p3340 = scmp.lt.s32.totalorder %s3338, 0
      %p3341 = pnand %p3340, %p3339
      %p3342 = pneg %p3341
      %s3343 = sadd.s32 %s3338, 8
      %s3344 = scalar_select %p3342, %s3343, %s3338
      %p3345 = scmp.ne.s32.totalorder %s3344, 0
      %s3346 = scalar_select %p3345, 1, 0
      %s3347 = scvt.s32.f32 %s3346
      %v3348 = vstv %s3347
      %v3349 = vmul.f32 %v2296, %v3348
      %v3350 = vmul.f32 %v2297, %v3348
      %v3351 = vmul.f32 %v2298, %v3348
      %v3352 = vmul.f32 %v2299, %v3348
      %v3353 = vmul.f32 %v2300, %v3348
      %v3354 = vmul.f32 %v2301, %v3348
      %v3355 = vmul.f32 %v2302, %v3348
      %v3356 = vmul.f32 %v2303, %v3348
      %v3357 = vlaneseq
      %v3358 = vshrl.u32 %v3357, 7
      %v3359 = vsub.s32 7, %v3358
      %v3360 = vrot.slane %v3349, %v3359
      %v3361 = vlaneseq
      %v3362 = vshrl.u32 %v3361, 7
      %v3363 = vsub.s32 7, %v3362
      %v3364 = vrot.slane %v3350, %v3363
      %v3365 = vlaneseq
      %v3366 = vshrl.u32 %v3365, 7
      %v3367 = vsub.s32 7, %v3366
      %v3368 = vrot.slane %v3351, %v3367
      %v3369 = vlaneseq
      %v3370 = vshrl.u32 %v3369, 7
      %v3371 = vsub.s32 7, %v3370
      %v3372 = vrot.slane %v3352, %v3371
      %v3373 = vlaneseq
      %v3374 = vshrl.u32 %v3373, 7
      %v3375 = vsub.s32 7, %v3374
      %v3376 = vrot.slane %v3353, %v3375
      %v3377 = vlaneseq
      %v3378 = vshrl.u32 %v3377, 7
      %v3379 = vsub.s32 7, %v3378
      %v3380 = vrot.slane %v3354, %v3379
      %v3381 = vlaneseq
      %v3382 = vshrl.u32 %v3381, 7
      %v3383 = vsub.s32 7, %v3382
      %v3384 = vrot.slane %v3355, %v3383
      %v3385 = vlaneseq
      %v3386 = vshrl.u32 %v3385, 7
      %v3387 = vsub.s32 7, %v3386
      %v3388 = vrot.slane %v3356, %v3387
      %v3389 = vmul.f32 %v3325, %v3360
      %v3390 = vmul.f32 %v3326, %v3364
      %v3391 = vmul.f32 %v3327, %v3368
      %v3392 = vmul.f32 %v3328, %v3372
      %v3393 = vmul.f32 %v3329, %v3376
      %v3394 = vmul.f32 %v3330, %v3380
      %v3395 = vmul.f32 %v3331, %v3384
      %v3396 = vmul.f32 %v3332, %v3388
      %v3397 = vadd.f32 %v3389, %v3300
      %v3398 = vadd.f32 %v3390, %v3301
      %v3399 = vadd.f32 %v3391, %v3302
      %v3400 = vadd.f32 %v3392, %v3303
      %v3401 = vadd.f32 %v3393, %v3304
      %v3402 = vadd.f32 %v3394, %v3305
      %v3403 = vadd.f32 %v3395, %v3306
      %v3404 = vadd.f32 %v3396, %v3307
      %s3405 = scalar_lea.vmem [#allocation5], %s2304
      %v3406 = vld [vmem:[%s3405] sm:$0xff]
      %v3407 = vpack.c.bf16 %v3406, %v3406
      %v3409 = vsel %vm2170, %v3407, 0
      %3411 = vmatprep.subr.bf16.mxu0 0
      %3412 = vmatpush1.bf16.msra.mxu0 0
      %3413 = vmatprep.subr.bf16.mxu0 0
      %3414 = vmatpush1.bf16.msra.mxu0 0
      %3415 = vmatprep.subr.bf16.mxu0 0
      %3416 = vmatpush1.bf16.msra.mxu0 0
      %3417 = vmatprep.subr.bf16.mxu0 0
      %3418 = vmatpush1.bf16.msra.mxu0 0
      %3419 = vmatprep.subr.bf16.mxu0 0
      %3420 = vmatpush1.bf16.msra.mxu0 0
      %3421 = vmatprep.subr.bf16.mxu0 0
      %3422 = vmatpush1.bf16.msra.mxu0 0
      %3423 = vmatprep.subr.bf16.mxu0 0
      %3424 = vmatpush1.bf16.msra.mxu0 0
      %3425 = vmatprep.subr.bf16.mxu0 %v2873
      %3426 = vmatpush1.bf16.msra.mxu0 %v2872
      %3427 = vmatprep.subr.bf16.mxu0 0
      %3428 = vmatpush2.bf16.msra.mxu0 0
      %3429 = vmatprep.subr.bf16.mxu0 0
      %3430 = vmatpush2.bf16.msra.mxu0 0
      %3431 = vmatprep.subr.bf16.mxu0 0
      %3432 = vmatpush2.bf16.msra.mxu0 0
      %3433 = vmatprep.subr.bf16.mxu0 0
      %3434 = vmatpush2.bf16.msra.mxu0 0
      %3435 = vmatprep.subr.bf16.mxu0 0
      %3436 = vmatpush2.bf16.msra.mxu0 0
      %3437 = vmatprep.subr.bf16.mxu0 0
      %3438 = vmatpush2.bf16.msra.mxu0 0
      %3439 = vmatprep.subr.bf16.mxu0 0
      %3440 = vmatpush2.bf16.msra.mxu0 0
      %3441 = vmatprep.subr.bf16.mxu0 0
      %3442 = vmatpush2.bf16.msra.mxu0 0
      %3443 = vmatprep.mubr.bf16.mxu0 0
      %3444 = vmatmul.mubr.bf16.gmra.mxu0 %v3409
      %v3445 = vpop.f32.mrf.mxu0
      %v3446 = vadd.f32 0.0, %v3445
      %v3447 = vpop.f32.mrf.mxu0
      %v3448 = vadd.f32 0.0, %v3447
      %v3449 = vpop.f32.mrf.mxu0
      %v3450 = vpop.f32.mrf.mxu0
      %3451 = vdwg.mxu0
      %3452 = vmatprep.subr.bf16.mxu0 0
      %3453 = vmatpush1.bf16.msra.mxu0 0
      %3454 = vmatprep.subr.bf16.mxu0 0
      %3455 = vmatpush1.bf16.msra.mxu0 0
      %3456 = vmatprep.subr.bf16.mxu0 0
      %3457 = vmatpush1.bf16.msra.mxu0 0
      %3458 = vmatprep.subr.bf16.mxu0 0
      %3459 = vmatpush1.bf16.msra.mxu0 0
      %3460 = vmatprep.subr.bf16.mxu0 0
      %3461 = vmatpush1.bf16.msra.mxu0 0
      %3462 = vmatprep.subr.bf16.mxu0 0
      %3463 = vmatpush1.bf16.msra.mxu0 0
      %3464 = vmatprep.subr.bf16.mxu0 0
      %3465 = vmatpush1.bf16.msra.mxu0 0
      %3466 = vmatprep.subr.bf16.mxu0 %v2875
      %3467 = vmatpush1.bf16.msra.mxu0 %v2874
      %3468 = vmatprep.subr.bf16.mxu0 0
      %3469 = vmatpush2.bf16.msra.mxu0 0
      %3470 = vmatprep.subr.bf16.mxu0 0
      %3471 = vmatpush2.bf16.msra.mxu0 0
      %3472 = vmatprep.subr.bf16.mxu0 0
      %3473 = vmatpush2.bf16.msra.mxu0 0
      %3474 = vmatprep.subr.bf16.mxu0 0
      %3475 = vmatpush2.bf16.msra.mxu0 0
      %3476 = vmatprep.subr.bf16.mxu0 0
      %3477 = vmatpush2.bf16.msra.mxu0 0
      %3478 = vmatprep.subr.bf16.mxu0 0
      %3479 = vmatpush2.bf16.msra.mxu0 0
      %3480 = vmatprep.subr.bf16.mxu0 0
      %3481 = vmatpush2.bf16.msra.mxu0 0
      %3482 = vmatprep.subr.bf16.mxu0 0
      %3483 = vmatpush2.bf16.msra.mxu0 0
      %3484 = vmatprep.mubr.bf16.mxu0 0
      %3485 = vmatmul.mubr.bf16.gmra.mxu0 %v3409
      %v3486 = vpop.f32.mrf.mxu0
      %v3487 = vadd.f32 0.0, %v3486
      %v3488 = vpop.f32.mrf.mxu0
      %v3489 = vadd.f32 0.0, %v3488
      %v3490 = vpop.f32.mrf.mxu0
      %v3491 = vpop.f32.mrf.mxu0
      %3492 = vdwg.mxu0
      %3493 = vmatprep.subr.bf16.mxu0 0
      %3494 = vmatpush1.bf16.msra.mxu0 0
      %3495 = vmatprep.subr.bf16.mxu0 0
      %3496 = vmatpush1.bf16.msra.mxu0 0
      %3497 = vmatprep.subr.bf16.mxu0 0
      %3498 = vmatpush1.bf16.msra.mxu0 0
      %3499 = vmatprep.subr.bf16.mxu0 0
      %3500 = vmatpush1.bf16.msra.mxu0 0
      %3501 = vmatprep.subr.bf16.mxu0 0
      %3502 = vmatpush1.bf16.msra.mxu0 0
      %3503 = vmatprep.subr.bf16.mxu0 0
      %3504 = vmatpush1.bf16.msra.mxu0 0
      %3505 = vmatprep.subr.bf16.mxu0 0
      %3506 = vmatpush1.bf16.msra.mxu0 0
      %3507 = vmatprep.subr.bf16.mxu0 %v2877
      %3508 = vmatpush1.bf16.msra.mxu0 %v2876
      %3509 = vmatprep.subr.bf16.mxu0 0
      %3510 = vmatpush2.bf16.msra.mxu0 0
      %3511 = vmatprep.subr.bf16.mxu0 0
      %3512 = vmatpush2.bf16.msra.mxu0 0
      %3513 = vmatprep.subr.bf16.mxu0 0
      %3514 = vmatpush2.bf16.msra.mxu0 0
      %3515 = vmatprep.subr.bf16.mxu0 0
      %3516 = vmatpush2.bf16.msra.mxu0 0
      %3517 = vmatprep.subr.bf16.mxu0 0
      %3518 = vmatpush2.bf16.msra.mxu0 0
      %3519 = vmatprep.subr.bf16.mxu0 0
      %3520 = vmatpush2.bf16.msra.mxu0 0
      %3521 = vmatprep.subr.bf16.mxu0 0
      %3522 = vmatpush2.bf16.msra.mxu0 0
      %3523 = vmatprep.subr.bf16.mxu0 0
      %3524 = vmatpush2.bf16.msra.mxu0 0
      %3525 = vmatprep.mubr.bf16.mxu0 0
      %3526 = vmatmul.mubr.bf16.gmra.mxu0 %v3409
      %v3527 = vpop.f32.mrf.mxu0
      %v3528 = vadd.f32 0.0, %v3527
      %v3529 = vpop.f32.mrf.mxu0
      %v3530 = vadd.f32 0.0, %v3529
      %v3531 = vpop.f32.mrf.mxu0
      %v3532 = vpop.f32.mrf.mxu0
      %3533 = vdwg.mxu0
      %3534 = vmatprep.subr.bf16.mxu0 0
      %3535 = vmatpush1.bf16.msra.mxu0 0
      %3536 = vmatprep.subr.bf16.mxu0 0
      %3537 = vmatpush1.bf16.msra.mxu0 0
      %3538 = vmatprep.subr.bf16.mxu0 0
      %3539 = vmatpush1.bf16.msra.mxu0 0
      %3540 = vmatprep.subr.bf16.mxu0 0
      %3541 = vmatpush1.bf16.msra.mxu0 0
      %3542 = vmatprep.subr.bf16.mxu0 0
      %3543 = vmatpush1.bf16.msra.mxu0 0
      %3544 = vmatprep.subr.bf16.mxu0 0
      %3545 = vmatpush1.bf16.msra.mxu0 0
      %3546 = vmatprep.subr.bf16.mxu0 0
      %3547 = vmatpush1.bf16.msra.mxu0 0
      %3548 = vmatprep.subr.bf16.mxu0 %v2879
      %3549 = vmatpush1.bf16.msra.mxu0 %v2878
      %3550 = vmatprep.subr.bf16.mxu0 0
      %3551 = vmatpush2.bf16.msra.mxu0 0
      %3552 = vmatprep.subr.bf16.mxu0 0
      %3553 = vmatpush2.bf16.msra.mxu0 0
      %3554 = vmatprep.subr.bf16.mxu0 0
      %3555 = vmatpush2.bf16.msra.mxu0 0
      %3556 = vmatprep.subr.bf16.mxu0 0
      %3557 = vmatpush2.bf16.msra.mxu0 0
      %3558 = vmatprep.subr.bf16.mxu0 0
      %3559 = vmatpush2.bf16.msra.mxu0 0
      %3560 = vmatprep.subr.bf16.mxu0 0
      %3561 = vmatpush2.bf16.msra.mxu0 0
      %3562 = vmatprep.subr.bf16.mxu0 0
      %3563 = vmatpush2.bf16.msra.mxu0 0
      %3564 = vmatprep.subr.bf16.mxu0 0
      %3565 = vmatpush2.bf16.msra.mxu0 0
      %3566 = vmatprep.mubr.bf16.mxu0 0
      %3567 = vmatmul.mubr.bf16.gmra.mxu0 %v3409
      %v3568 = vpop.f32.mrf.mxu0
      %v3569 = vadd.f32 0.0, %v3568
      %v3570 = vpop.f32.mrf.mxu0
      %v3571 = vadd.f32 0.0, %v3570
      %v3572 = vpop.f32.mrf.mxu0
      %v3573 = vpop.f32.mrf.mxu0
      %3574 = vdwg.mxu0
      %v3575 = vmul.f32 %v3446, %v3397
      %v3576 = vmul.f32 %v3448, %v3398
      %v3577 = vmul.f32 %v3487, %v3399
      %v3578 = vmul.f32 %v3489, %v3400
      %v3579 = vmul.f32 %v3528, %v3401
      %v3580 = vmul.f32 %v3530, %v3402
      %v3581 = vmul.f32 %v3569, %v3403
      %v3582 = vmul.f32 %v3571, %v3404
      %v3583 = vpack.c.bf16 %v3575, %v3575
      %v3584 = vpack.c.bf16 %v3576, %v3576
      %v3585 = vpack.c.bf16 %v3577, %v3577
      %v3586 = vpack.c.bf16 %v3578, %v3578
      %v3587 = vpack.c.bf16 %v3579, %v3579
      %v3588 = vpack.c.bf16 %v3580, %v3580
      %v3589 = vpack.c.bf16 %v3581, %v3581
      %v3590 = vpack.c.bf16 %v3582, %v3582
      %3591 = vmatprep.subr.bf16.mxu0 0
      %3592 = vmatpush1.bf16.xpose.msra.mxu0 0
      %3593 = vmatprep.subr.bf16.mxu0 0
      %3594 = vmatpush1.bf16.xpose.msra.mxu0 0
      %3595 = vmatprep.subr.bf16.mxu0 0
      %3596 = vmatpush1.bf16.xpose.msra.mxu0 0
      %3597 = vmatprep.subr.bf16.mxu0 0
      %3598 = vmatpush1.bf16.xpose.msra.mxu0 0
      %3599 = vmatprep.subr.bf16.mxu0 %v2467
      %3600 = vmatpush1.bf16.xpose.msra.mxu0 %v2466
      %3601 = vmatprep.subr.bf16.mxu0 %v2459
      %3602 = vmatpush1.bf16.xpose.msra.mxu0 %v2458
      %3603 = vmatprep.subr.bf16.mxu0 %v2451
      %3604 = vmatpush1.bf16.xpose.msra.mxu0 %v2450
      %3605 = vmatprep.subr.bf16.mxu0 %v2443
      %3606 = vmatpush1.bf16.xpose.msra.mxu0 %v2442
      %3607 = vmatprep.subr.bf16.mxu0 0
      %3608 = vmatpush2.bf16.xpose.msra.mxu0 0
      %3609 = vmatprep.subr.bf16.mxu0 0
      %3610 = vmatpush2.bf16.xpose.msra.mxu0 0
      %3611 = vmatprep.subr.bf16.mxu0 0
      %3612 = vmatpush2.bf16.xpose.msra.mxu0 0
      %3613 = vmatprep.subr.bf16.mxu0 0
      %3614 = vmatpush2.bf16.xpose.msra.mxu0 0
      %3615 = vmatprep.subr.bf16.mxu0 0
      %3616 = vmatpush2.bf16.xpose.msra.mxu0 0
      %3617 = vmatprep.subr.bf16.mxu0 0
      %3618 = vmatpush2.bf16.xpose.msra.mxu0 0
      %3619 = vmatprep.subr.bf16.mxu0 0
      %3620 = vmatpush2.bf16.xpose.msra.mxu0 0
      %3621 = vmatprep.subr.bf16.mxu0 0
      %3622 = vmatpush2.bf16.xpose.msra.mxu0 0
      %3623 = vmatprep.mubr.bf16.mxu0 %v3584
      %3624 = vmatmul.mubr.bf16.gmra.mxu0 %v3583
      %v3625 = vpop.f32.mrf.mxu0
      %v3626 = vadd.f32 0.0, %v3625
      %v3627 = vpop.f32.mrf.mxu0
      %v3628 = vpop.f32.mrf.mxu0
      %v3629 = vpop.f32.mrf.mxu0
      %3630 = vdwg.mxu0
      %3631 = vmatprep.subr.bf16.mxu0 0
      %3632 = vmatpush1.bf16.xpose.msra.mxu0 0
      %3633 = vmatprep.subr.bf16.mxu0 0
      %3634 = vmatpush1.bf16.xpose.msra.mxu0 0
      %3635 = vmatprep.subr.bf16.mxu0 0
      %3636 = vmatpush1.bf16.xpose.msra.mxu0 0
      %3637 = vmatprep.subr.bf16.mxu0 0
      %3638 = vmatpush1.bf16.xpose.msra.mxu0 0
      %3639 = vmatprep.subr.bf16.mxu0 %v2469
      %3640 = vmatpush1.bf16.xpose.msra.mxu0 %v2468
      %3641 = vmatprep.subr.bf16.mxu0 %v2461
      %3642 = vmatpush1.bf16.xpose.msra.mxu0 %v2460
      %3643 = vmatprep.subr.bf16.mxu0 %v2453
      %3644 = vmatpush1.bf16.xpose.msra.mxu0 %v2452
      %3645 = vmatprep.subr.bf16.mxu0 %v2445
      %3646 = vmatpush1.bf16.xpose.msra.mxu0 %v2444
      %3647 = vmatprep.subr.bf16.mxu0 0
      %3648 = vmatpush2.bf16.xpose.msra.mxu0 0
      %3649 = vmatprep.subr.bf16.mxu0 0
      %3650 = vmatpush2.bf16.xpose.msra.mxu0 0
      %3651 = vmatprep.subr.bf16.mxu0 0
      %3652 = vmatpush2.bf16.xpose.msra.mxu0 0
      %3653 = vmatprep.subr.bf16.mxu0 0
      %3654 = vmatpush2.bf16.xpose.msra.mxu0 0
      %3655 = vmatprep.subr.bf16.mxu0 0
      %3656 = vmatpush2.bf16.xpose.msra.mxu0 0
      %3657 = vmatprep.subr.bf16.mxu0 0
      %3658 = vmatpush2.bf16.xpose.msra.mxu0 0
      %3659 = vmatprep.subr.bf16.mxu0 0
      %3660 = vmatpush2.bf16.xpose.msra.mxu0 0
      %3661 = vmatprep.subr.bf16.mxu0 0
      %3662 = vmatpush2.bf16.xpose.msra.mxu0 0
      %3663 = vmatprep.mubr.bf16.mxu0 %v3586
      %3664 = vmatmul.mubr.bf16.gmra.mxu0 %v3585
      %v3665 = vpop.f32.mrf.mxu0
      %v3666 = vadd.f32 %v3626, %v3665
      %v3667 = vpop.f32.mrf.mxu0
      %v3668 = vpop.f32.mrf.mxu0
      %v3669 = vpop.f32.mrf.mxu0
      %3670 = vdwg.mxu0
      %3671 = vmatprep.subr.bf16.mxu0 0
      %3672 = vmatpush1.bf16.xpose.msra.mxu0 0
      %3673 = vmatprep.subr.bf16.mxu0 0
      %3674 = vmatpush1.bf16.xpose.msra.mxu0 0
      %3675 = vmatprep.subr.bf16.mxu0 0
      %3676 = vmatpush1.bf16.xpose.msra.mxu0 0
      %3677 = vmatprep.subr.bf16.mxu0 0
      %3678 = vmatpush1.bf16.xpose.msra.mxu0 0
      %3679 = vmatprep.subr.bf16.mxu0 %v2471
      %3680 = vmatpush1.bf16.xpose.msra.mxu0 %v2470
      %3681 = vmatprep.subr.bf16.mxu0 %v2463
      %3682 = vmatpush1.bf16.xpose.msra.mxu0 %v2462
      %3683 = vmatprep.subr.bf16.mxu0 %v2455
      %3684 = vmatpush1.bf16.xpose.msra.mxu0 %v2454
      %3685 = vmatprep.subr.bf16.mxu0 %v2447
      %3686 = vmatpush1.bf16.xpose.msra.mxu0 %v2446
      %3687 = vmatprep.subr.bf16.mxu0 0
      %3688 = vmatpush2.bf16.xpose.msra.mxu0 0
      %3689 = vmatprep.subr.bf16.mxu0 0
      %3690 = vmatpush2.bf16.xpose.msra.mxu0 0
      %3691 = vmatprep.subr.bf16.mxu0 0
      %3692 = vmatpush2.bf16.xpose.msra.mxu0 0
      %3693 = vmatprep.subr.bf16.mxu0 0
      %3694 = vmatpush2.bf16.xpose.msra.mxu0 0
      %3695 = vmatprep.subr.bf16.mxu0 0
      %3696 = vmatpush2.bf16.xpose.msra.mxu0 0
      %3697 = vmatprep.subr.bf16.mxu0 0
      %3698 = vmatpush2.bf16.xpose.msra.mxu0 0
      %3699 = vmatprep.subr.bf16.mxu0 0
      %3700 = vmatpush2.bf16.xpose.msra.mxu0 0
      %3701 = vmatprep.subr.bf16.mxu0 0
      %3702 = vmatpush2.bf16.xpose.msra.mxu0 0
      %3703 = vmatprep.mubr.bf16.mxu0 %v3588
      %3704 = vmatmul.mubr.bf16.gmra.mxu0 %v3587
      %v3705 = vpop.f32.mrf.mxu0
      %v3706 = vadd.f32 %v3666, %v3705
      %v3707 = vpop.f32.mrf.mxu0
      %v3708 = vpop.f32.mrf.mxu0
      %v3709 = vpop.f32.mrf.mxu0
      %3710 = vdwg.mxu0
      %3711 = vmatprep.subr.bf16.mxu0 0
      %3712 = vmatpush1.bf16.xpose.msra.mxu0 0
      %3713 = vmatprep.subr.bf16.mxu0 0
      %3714 = vmatpush1.bf16.xpose.msra.mxu0 0
      %3715 = vmatprep.subr.bf16.mxu0 0
      %3716 = vmatpush1.bf16.xpose.msra.mxu0 0
      %3717 = vmatprep.subr.bf16.mxu0 0
      %3718 = vmatpush1.bf16.xpose.msra.mxu0 0
      %3719 = vmatprep.subr.bf16.mxu0 %v2473
      %3720 = vmatpush1.bf16.xpose.msra.mxu0 %v2472
      %3721 = vmatprep.subr.bf16.mxu0 %v2465
      %3722 = vmatpush1.bf16.xpose.msra.mxu0 %v2464
      %3723 = vmatprep.subr.bf16.mxu0 %v2457
      %3724 = vmatpush1.bf16.xpose.msra.mxu0 %v2456
      %3725 = vmatprep.subr.bf16.mxu0 %v2449
      %3726 = vmatpush1.bf16.xpose.msra.mxu0 %v2448
      %3727 = vmatprep.subr.bf16.mxu0 0
      %3728 = vmatpush2.bf16.xpose.msra.mxu0 0
      %3729 = vmatprep.subr.bf16.mxu0 0
      %3730 = vmatpush2.bf16.xpose.msra.mxu0 0
      %3731 = vmatprep.subr.bf16.mxu0 0
      %3732 = vmatpush2.bf16.xpose.msra.mxu0 0
      %3733 = vmatprep.subr.bf16.mxu0 0
      %3734 = vmatpush2.bf16.xpose.msra.mxu0 0
      %3735 = vmatprep.subr.bf16.mxu0 0
      %3736 = vmatpush2.bf16.xpose.msra.mxu0 0
      %3737 = vmatprep.subr.bf16.mxu0 0
      %3738 = vmatpush2.bf16.xpose.msra.mxu0 0
      %3739 = vmatprep.subr.bf16.mxu0 0
      %3740 = vmatpush2.bf16.xpose.msra.mxu0 0
      %3741 = vmatprep.subr.bf16.mxu0 0
      %3742 = vmatpush2.bf16.xpose.msra.mxu0 0
      %3743 = vmatprep.mubr.bf16.mxu0 %v3590
      %3744 = vmatmul.mubr.bf16.gmra.mxu0 %v3589
      %v3745 = vpop.f32.mrf.mxu0
      %v3746 = vadd.f32 %v3706, %v3745
      %v3747 = vpop.f32.mrf.mxu0
      %v3748 = vpop.f32.mrf.mxu0
      %v3749 = vpop.f32.mrf.mxu0
      %3750 = vdwg.mxu0
      %s3751 = scalar_lea.vmem [#allocation6], %s2304
      %v3752 = vld [vmem:[%s3751] sm:$0xff]
      %v3753 = vadd.f32 %v3752, %v3746
      %3754 = vst.msk [vmem:[%s3751] sm:$0xff] %vm769, %v3753
    $region98: #{mamba_layer_forward.1} parent=1 // loop_footer
      %s2295 = sadd.s32 1, %s2291
    $region99: #{mamba_layer_forward.1} parent=1 // loop_footer_branch
      %2290 = sbr.rel target = $region95
    $region100: #{mamba_layer_forward.1} parent=1 // loop_exit
      _
    %v3755 = vld [vmem:[#allocation6] sm:$0xff]
    %v3756 = vld [vmem:[#allocation6 + $0x8] sm:$0xff]
    %v3757 = vld [vmem:[#allocation6 + $0x10] sm:$0xff]
    %v3758 = vld [vmem:[#allocation6 + $0x18] sm:$0xff]
    %v3759 = vld [vmem:[#allocation6 + $0x20] sm:$0xff]
    %v3760 = vld [vmem:[#allocation6 + $0x28] sm:$0xff]
    %v3761 = vld [vmem:[#allocation6 + $0x30] sm:$0xff]
    %v3762 = vld [vmem:[#allocation6 + $0x38] sm:$0xff]
    %v3763 = vld [vmem:[#allocation6 + $0x40] sm:$0xff]
    %v3764 = vld [vmem:[#allocation6 + $0x48] sm:$0xff]
    %v3765 = vld [vmem:[#allocation6 + $0x50] sm:$0xff]
    %v3766 = vld [vmem:[#allocation6 + $0x58] sm:$0xff]
    %v3767 = vld [vmem:[#allocation6 + $0x60] sm:$0xff]
    %v3768 = vld [vmem:[#allocation6 + $0x68] sm:$0xff]
    %v3769 = vld [vmem:[#allocation6 + $0x70] sm:$0xff]
    %v3770 = vld [vmem:[#allocation6 + $0x78] sm:$0xff]
    %v3771 = vld [vmem:[#allocation7] sm:$0xff]
    %v3772 = vld [vmem:[#allocation7 + $0x8] sm:$0xff]
    %v3773 = vld [vmem:[#allocation7 + $0x10] sm:$0xff]
    %v3774 = vld [vmem:[#allocation7 + $0x18] sm:$0xff]
    %v3775 = vld [vmem:[#allocation7 + $0x20] sm:$0xff]
    %v3776 = vld [vmem:[#allocation7 + $0x28] sm:$0xff]
    %v3777 = vld [vmem:[#allocation7 + $0x30] sm:$0xff]
    %v3778 = vld [vmem:[#allocation7 + $0x38] sm:$0xff]
    %v3779 = vld [vmem:[#allocation7 + $0x40] sm:$0xff]
    %v3780 = vld [vmem:[#allocation7 + $0x48] sm:$0xff]
    %v3781 = vld [vmem:[#allocation7 + $0x50] sm:$0xff]
    %v3782 = vld [vmem:[#allocation7 + $0x58] sm:$0xff]
    %v3783 = vld [vmem:[#allocation7 + $0x60] sm:$0xff]
    %v3784 = vld [vmem:[#allocation7 + $0x68] sm:$0xff]
    %v3785 = vld [vmem:[#allocation7 + $0x70] sm:$0xff]
    %v3786 = vld [vmem:[#allocation7 + $0x78] sm:$0xff]
    %v3787 = vmul.f32 %v3755, %v3771
    %v3788 = vmul.f32 %v3756, %v3772
    %v3789 = vmul.f32 %v3757, %v3773
    %v3790 = vmul.f32 %v3758, %v3774
    %v3791 = vmul.f32 %v3759, %v3775
    %v3792 = vmul.f32 %v3760, %v3776
    %v3793 = vmul.f32 %v3761, %v3777
    %v3794 = vmul.f32 %v3762, %v3778
    %v3795 = vmul.f32 %v3763, %v3779
    %v3796 = vmul.f32 %v3764, %v3780
    %v3797 = vmul.f32 %v3765, %v3781
    %v3798 = vmul.f32 %v3766, %v3782
    %v3799 = vmul.f32 %v3767, %v3783
    %v3800 = vmul.f32 %v3768, %v3784
    %v3801 = vmul.f32 %v3769, %v3785
    %v3802 = vmul.f32 %v3770, %v3786
    %v3803 = vpack.c.bf16 %v3788, %v3787
    %v3804 = vpack.c.bf16 %v3790, %v3789
    %v3805 = vpack.c.bf16 %v3792, %v3791
    %v3806 = vpack.c.bf16 %v3794, %v3793
    %v3807 = vpack.c.bf16 %v3796, %v3795
    %v3808 = vpack.c.bf16 %v3798, %v3797
    %v3809 = vpack.c.bf16 %v3800, %v3799
    %v3810 = vpack.c.bf16 %v3802, %v3801
    %v3811 = vld [vmem:[#allocation21] sm:$0xf]
    %v3812 = vld [vmem:[#allocation21 + $0x4] sm:$0xf]
    %v3813 = vld [vmem:[#allocation21 + $0x8] sm:$0xf]
    %v3814 = vld [vmem:[#allocation21 + $0xc] sm:$0xf]
    %v3819 = vunpack.c.l.b16 %v3811
    %v3820 = vunpack.c.l.b16 %v3812
    %v3821 = vunpack.c.l.b16 %v3813
    %v3822 = vunpack.c.l.b16 %v3814
    %v3823 = vpack.c.b16 %v3820, %v3819
    %v3824 = vpack.c.b16 %v3822, %v3821
    %v3826 = vsel %vm769, %v3823, 0
    %v3829 = vsel %vm769, %v3824, 0
    %v3832 = vsel %vm769, %v3803, 0
    %v3835 = vsel %vm769, %v3804, 0
    %v3838 = vsel %vm769, %v3805, 0
    %v3841 = vsel %vm769, %v3806, 0
    %v3844 = vsel %vm769, %v3807, 0
    %v3847 = vsel %vm769, %v3808, 0
    %v3850 = vsel %vm769, %v3809, 0
    %v3853 = vsel %vm769, %v3810, 0
    %3855 = vmatprep.subr.bf16.mxu0 0
    %3856 = vmatpush1.bf16.xpose.msra.mxu0 %v3853
    %3857 = vmatprep.subr.bf16.mxu0 0
    %3858 = vmatpush1.bf16.xpose.msra.mxu0 %v3850
    %3859 = vmatprep.subr.bf16.mxu0 0
    %3860 = vmatpush1.bf16.xpose.msra.mxu0 %v3847
    %3861 = vmatprep.subr.bf16.mxu0 0
    %3862 = vmatpush1.bf16.xpose.msra.mxu0 %v3844
    %3863 = vmatprep.subr.bf16.mxu0 0
    %3864 = vmatpush1.bf16.xpose.msra.mxu0 %v3841
    %3865 = vmatprep.subr.bf16.mxu0 0
    %3866 = vmatpush1.bf16.xpose.msra.mxu0 %v3838
    %3867 = vmatprep.subr.bf16.mxu0 0
    %3868 = vmatpush1.bf16.xpose.msra.mxu0 %v3835
    %3869 = vmatprep.subr.bf16.mxu0 0
    %3870 = vmatpush1.bf16.xpose.msra.mxu0 %v3832
    %3871 = vmatprep.subr.bf16.mxu0 0
    %3872 = vmatpush2.bf16.xpose.msra.mxu0 0
    %3873 = vmatprep.subr.bf16.mxu0 0
    %3874 = vmatpush2.bf16.xpose.msra.mxu0 0
    %3875 = vmatprep.subr.bf16.mxu0 0
    %3876 = vmatpush2.bf16.xpose.msra.mxu0 0
    %3877 = vmatprep.subr.bf16.mxu0 0
    %3878 = vmatpush2.bf16.xpose.msra.mxu0 0
    %3879 = vmatprep.subr.bf16.mxu0 0
    %3880 = vmatpush2.bf16.xpose.msra.mxu0 0
    %3881 = vmatprep.subr.bf16.mxu0 0
    %3882 = vmatpush2.bf16.xpose.msra.mxu0 0
    %3883 = vmatprep.subr.bf16.mxu0 0
    %3884 = vmatpush2.bf16.xpose.msra.mxu0 0
    %3885 = vmatprep.subr.bf16.mxu0 0
    %3886 = vmatpush2.bf16.xpose.msra.mxu0 0
    %3887 = vmatprep.mubr.bf16.mxu0 0
    %3888 = vmatmul.mubr.bf16.gmra.mxu0 %v3826
    %v3889 = vpop.f32.mrf.mxu0
    %v3890 = vadd.f32 0.0, %v3889
    %v3891 = vpop.f32.mrf.mxu0
    %v3892 = vpop.f32.mrf.mxu0
    %v3893 = vadd.f32 0.0, %v3892
    %v3894 = vpop.f32.mrf.mxu0
    %3895 = vmatprep.mubr.bf16.mxu0 0
    %3896 = vmatmul.mubr.bf16.gmra.mxu0 %v3829
    %v3897 = vpop.f32.mrf.mxu0
    %v3898 = vadd.f32 0.0, %v3897
    %v3899 = vpop.f32.mrf.mxu0
    %v3900 = vpop.f32.mrf.mxu0
    %v3901 = vadd.f32 0.0, %v3900
    %v3902 = vpop.f32.mrf.mxu0
    %3903 = vdwg.mxu0
    %3904 = vst [vmem:[%s14] sm:$0xff] %v3890
    %3905 = vst [vmem:[%s14 + $0x8] sm:$0xff] %v3893
    %3906 = vst [vmem:[%s14 + $0x10] sm:$0xff] %v3898
    %3907 = vst [vmem:[%s14 + $0x18] sm:$0xff] %v3901
    // Predicated region
    $region101: #{mamba_layer_forward.1} parent=1 // pred_check
      _
    $region102: #{mamba_layer_forward.1} parent=1 // pred_check_branch
      %3909 = sbr.rel (0) target = $region104
    $region103: #{mamba_layer_forward.1} parent=1 // pred_region
      _
    $region104: #{mamba_layer_forward.1} parent=1 // pred_fallthru
      _
    // Predicated region
    $region105: #{mamba_layer_forward.1} parent=1 // pred_check
      _
    $region106: #{mamba_layer_forward.1} parent=1 // pred_check_branch
      %3911 = sbr.rel (0) target = $region108
    $region107: #{mamba_layer_forward.1} parent=1 // pred_region
      _
    $region108: #{mamba_layer_forward.1} parent=1 // pred_fallthru
      _
    %3912 = vsyncpa [#allocation9], 1
    %3913 = vsyncpa [#allocation11], 1
    %3914 = vsyncpa [#allocation14], 1
    %3915 = vsyncpa [#allocation17], 1
    %3916 = vsyncpa [#allocation20], 1

</llo_original>
